<compile_context>
chip_gen: v6e
topology: v6e:2x2x1
jax: 0.10.0
libtpu: 0.0.40
codegen_flags: <defaults>
</compile_context>

<pallas_src>
import functools
import math

import jax
import jax.numpy as jnp
from jax.experimental import pallas as pl
from jax.experimental.pallas import tpu as pltpu


# --------------------------------------------------------------------------
# Fused kernel: channel mean/max pool -> zero-pad -> 7x7 conv (VPU) -> sigmoid
# --------------------------------------------------------------------------
def _spatial_attention_kernel(x_ref, w_ref, o_ref,
                              sum_acc, max_acc, pads_ref, shifted_ref,
                              *, ksize, channels, height, width, nb):
    """One (batch-tile, C-tile) grid step.

    x_ref       : (nb, c_blk, H*W)   input slab, native dtype, lane-dense
    w_ref       : (2*k*k,) f32       conv weights in SMEM (ch0=avg, ch1=max)
    o_ref       : (nb, 1, H, W)      output block (revisited across C axis)
    sum_acc     : (nb, H*W) f32      running channel-sum   (VMEM scratch)
    max_acc     : (nb, H*W) f32      running channel-max   (VMEM scratch)
    pads_ref    : (2, H+2p, W+2p) f32   zero-padded pooled maps
    shifted_ref : (2, k, H+2p, W) f32   dw-pre-shifted copies of padded maps
    """
    pad = (ksize - 1) // 2
    H, W = height, width
    kk = ksize * ksize

    c_idx = pl.program_id(1)
    n_c = pl.num_programs(1)

    # ---- init accumulators at the first C-tile of every sample block.
    #      (Per-n init at c==0 is megacore-safe: for a given n the C axis runs
    #       sequentially on one core.)
    @pl.when(c_idx == 0)
    def _():
        sum_acc[...] = jnp.zeros_like(sum_acc)
        max_acc[...] = jnp.full_like(max_acc, -jnp.inf)

    # ---- lane-dense channel pooling on the (c_blk, H*W) view.
    #      Single upcast to f32 (v5e has no bf16 VALU); mean accumulates in f32.
    for s in range(nb):
        xs32 = x_ref[s].astype(jnp.float32)              # (c_blk, HW)
        sum_acc[pl.ds(s, 1), :] += jnp.sum(xs32, axis=0, keepdims=True)
        max_acc[pl.ds(s, 1), :] = jnp.maximum(
            max_acc[pl.ds(s, 1), :],
            jnp.max(xs32, axis=0, keepdims=True))

    # ---- after the last C-tile: pad, 7x7 conv on the VPU, sigmoid, store.
    @pl.when(c_idx == n_c - 1)
    def _():
        inv_c = 1.0 / channels
        for s in range(nb):
            avg_flat = sum_acc[pl.ds(s, 1), :] * inv_c   # (1, HW) f32
            max_flat = max_acc[pl.ds(s, 1), :]           # (1, HW) f32

            # Zero the (tiny) padded scratch so the conv halo never sees stale
            # data from a previous grid step / sample, then scatter the pooled
            # rows into the interior (this is also the flat->2D relayout).
            pads_ref[...] = jnp.zeros_like(pads_ref)
            for i in range(H):
                row = slice(i * W, (i + 1) * W)
                pads_ref[0, pl.ds(pad + i, 1), pl.ds(pad, W)] = avg_flat[:, row]
                pads_ref[1, pl.ds(pad + i, 1), pl.ds(pad, W)] = max_flat[:, row]

            # Hoist the dw (lane-direction) window shifts out of the tap loop:
            # 2*k lane-offset copies instead of 2*k*k per-tap lane shifts.
            for m in range(2):
                for dw in range(ksize):
                    shifted_ref[m, dw, :, :] = pads_ref[m, :, pl.ds(dw, W)]

            # 7x7 (2 -> 1) conv as 2*k*k scalar*vector multiply-adds on the
            # VPU; weights come from SMEM as scalars.  The inner reads only
            # need a sublane offset now.
            acc = jnp.zeros((H, W), jnp.float32)
            for m in range(2):
                for dh in range(ksize):
                    for dw in range(ksize):
                        wgt = w_ref[m * kk + dh * ksize + dw]
                        acc = acc + wgt * shifted_ref[m, dw, pl.ds(dh, H), :]

            o_ref[s, 0] = jax.nn.sigmoid(acc).astype(o_ref.dtype)


def _choose_c_block(C, HW, itemsize, budget_bytes=4 * 1024 * 1024):
    """Largest C-tile (divisor of C, multiple of 8) whose input slab fits a
    conservative per-buffer VMEM budget (double-buffering + scratch leave
    ample headroom below the default scoped-VMEM limit on v5e/v6e/v7x)."""
    if C * HW * itemsize <= budget_bytes or C % 8 != 0:
        return C
    best = 8
    cand = 8
    while cand <= C:
        if C % cand == 0 and cand * HW * itemsize <= budget_bytes:
            best = cand
        cand += 8
    return best


def spatial_attention_forward(x, conv1_w, kernel_size=7, samples_per_step=1):
    """x: (N, C, H, W); conv1_w: (1, 2, k, k) conv weight (no bias).

    Returns sigmoid(conv7x7([mean_C(x), max_C(x)])) with shape (N, 1, H, W).

    `samples_per_step` folds several samples into one grid step — useful on
    single-TC chips (v5e/v6e) to amortize per-step overhead; keep it at 1 on
    v7x so the "parallel" batch axis feeds both TensorCores.
    """
    assert kernel_size in (3, 7), "kernel size must be 3 or 7"
    pad = (kernel_size - 1) // 2
    N, C, H, W = x.shape
    HW = H * W
    nb = samples_per_step
    assert N % nb == 0, "samples_per_step must divide the batch size"

    # Lane-dense view of the input (row-major reshape, no copy); keep native
    # dtype — the kernel upcasts per C-tile, halving HBM traffic for bf16.
    x_flat = x.reshape(N, C, HW)
    w_flat = conv1_w.reshape(-1).astype(jnp.float32)     # (2*k*k,) -> SMEM

    c_blk = _choose_c_block(C, HW, x.dtype.itemsize)

    kernel = functools.partial(
        _spatial_attention_kernel, ksize=kernel_size, channels=C,
        height=H, width=W, nb=nb)

    out = pl.pallas_call(
        kernel,
        out_shape=jax.ShapeDtypeStruct((N, 1, H, W), x.dtype),
        grid=(N // nb, C // c_blk),
        in_specs=[
            pl.BlockSpec((nb, c_blk, HW), lambda n, c: (n, c, 0)),
            pl.BlockSpec(memory_space=pltpu.MemorySpace.SMEM),
        ],
        out_specs=pl.BlockSpec((nb, 1, H, W), lambda n, c: (n, 0, 0, 0)),
        scratch_shapes=[
            pltpu.VMEM((nb, HW), jnp.float32),                        # sum acc
            pltpu.VMEM((nb, HW), jnp.float32),                        # max acc
            pltpu.VMEM((2, H + 2 * pad, W + 2 * pad), jnp.float32),   # padded maps
            pltpu.VMEM((2, kernel_size, H + 2 * pad, W), jnp.float32),# dw-shifted
        ],
        compiler_params=pltpu.CompilerParams(
            dimension_semantics=("parallel", "arbitrary")),
    )(x_flat, w_flat)
    return out


# --------------------------------------------------------------------------
# Pure-JAX reference (for correctness verification only)
# --------------------------------------------------------------------------
def spatial_attention_ref(x, conv1_w, kernel_size=7):
    pad = (kernel_size - 1) // 2
    avg = jnp.mean(x, axis=1, keepdims=True)
    mx = jnp.max(x, axis=1, keepdims=True)
    s = jnp.concatenate([avg, mx], axis=1)
    y = jax.lax.conv_general_dilated(
        s, conv1_w, window_strides=(1, 1),
        padding=((pad, pad), (pad, pad)),
        dimension_numbers=("NCHW", "OIHW", "NCHW"),
        precision=jax.lax.Precision.HIGHEST)
    return jax.nn.sigmoid(y)


if __name__ == "__main__":
    B, C, H, W = 2, 64, 16, 16
    k_x, k_w = jax.random.split(jax.random.PRNGKey(0))
    x = jax.random.normal(k_x, (B, C, H, W), jnp.float32)
    # nn.Conv2d(2, 1, 7, padding=3, bias=False) weight
    w = jax.random.normal(k_w, (1, 2, 7, 7), jnp.float32) / math.sqrt(2 * 7 * 7)

    ref = jax.block_until_ready(spatial_attention_ref(x, w))

    # One sample per grid step (parallel batch axis — v7x / megacore friendly).
    fwd1 = jax.jit(functools.partial(spatial_attention_forward,
                                     samples_per_step=1))
    out1 = jax.block_until_ready(fwd1(x, w))
    assert out1.shape == (B, 1, H, W) and out1.dtype == jnp.float32
    err1 = float(jnp.max(jnp.abs(out1 - ref)))
    assert err1 < 1e-3, f"mismatch vs reference (nb=1): max abs err {err1}"

    # Whole batch folded into one grid step (amortizes per-step overhead on
    # single-TC chips, v5e / v6e).
    fwd2 = jax.jit(functools.partial(spatial_attention_forward,
                                     samples_per_step=2))
    out2 = jax.block_until_ready(fwd2(x, w))
    err2 = float(jnp.max(jnp.abs(out2 - ref)))
    assert err2 < 1e-3, f"mismatch vs reference (nb=2): max abs err {err2}"

    print("KERNEL_OK")
</pallas_src>

<mosaic_0001>
module attributes {stable_mosaic.version = 11 : i64} {
  func.func @_spatial_attention_kernel(%arg0: i32, %arg1: i32, %arg2: memref<1x64x256xf32, #tpu.memory_space<vmem>>, %arg3: memref<98xf32, #tpu.memory_space<smem>>, %arg4: memref<1x1x16x16xf32, #tpu.memory_space<vmem>>, %arg5: memref<1x256xf32, #tpu.memory_space<vmem>>, %arg6: memref<1x256xf32, #tpu.memory_space<vmem>>, %arg7: memref<2x22x22xf32, #tpu.memory_space<vmem>>, %arg8: memref<2x7x22x16xf32, #tpu.memory_space<vmem>>) attributes {dimension_semantics = [#tpu.dimension_semantics<parallel>, #tpu.dimension_semantics<arbitrary>], iteration_bounds = array<i64: 2, 1>, scalar_prefetch = 0 : i64, scratch_operands = 4 : i64, tpu.core_type = #tpu.core_type<tc>, window_params = [{transform_indices = @transform_0, window_bounds = array<i64: 1, 64, 256>}, {transform_indices = @transform_1, window_bounds = array<i64: 98>}, {transform_indices = @transform_2, window_bounds = array<i64: 1, 1, 16, 16>}]} {
    %c0_i32 = arith.constant 0 : i32
    %0 = arith.cmpi eq, %arg1, %c0_i32 : i32
    %1 = arith.extui %0 : i1 to i32
    %c0_i32_0 = arith.constant 0 : i32
    %2 = arith.cmpi ne, %1, %c0_i32_0 : i32
    scf.if %2 {
      %cst_14 = arith.constant 0.000000e+00 : f32
      %18 = vector.broadcast %cst_14 : f32 to vector<1x256xf32>
      %c0_15 = arith.constant 0 : index
      %c0_16 = arith.constant 0 : index
      %19 = vector.load %arg5[%c0_15, %c0_16] : memref<1x256xf32, #tpu.memory_space<vmem>>, vector<1x256xf32>
      tpu.vector_store %arg5[%c0_15, %c0_16], %18 {strides = array<i32>} : memref<1x256xf32, #tpu.memory_space<vmem>>, vector<1x256xf32>,
      %cst_17 = arith.constant 0xFF800000 : f32
      %20 = vector.broadcast %cst_17 : f32 to vector<1x256xf32>
      %c0_18 = arith.constant 0 : index
      %c0_19 = arith.constant 0 : index
      %21 = vector.load %arg6[%c0_18, %c0_19] : memref<1x256xf32, #tpu.memory_space<vmem>>, vector<1x256xf32>
      tpu.vector_store %arg6[%c0_18, %c0_19], %20 {strides = array<i32>} : memref<1x256xf32, #tpu.memory_space<vmem>>, vector<1x256xf32>,
    } else {
    }
    %c0 = arith.constant 0 : index
    %c0_1 = arith.constant 0 : index
    %c0_2 = arith.constant 0 : index
    %3 = vector.load %arg2[%c0, %c0_1, %c0_2] : memref<1x64x256xf32, #tpu.memory_space<vmem>>, vector<1x64x256xf32>
    %4 = vector.shape_cast %3 : vector<1x64x256xf32> to vector<64x256xf32>
    %c0_3 = arith.constant 0 : index
    %c0_4 = arith.constant 0 : index
    %5 = vector.load %arg5[%c0_3, %c0_4] : memref<1x256xf32, #tpu.memory_space<vmem>>, vector<1x256xf32>
    %cst = arith.constant dense<0.000000e+00> : vector<256xf32>
    %6 = vector.multi_reduction <add>, %4, %cst [0] : vector<64x256xf32> to vector<256xf32>
    %7 = vector.shape_cast %6 : vector<256xf32> to vector<1x256xf32>
    %8 = arith.addf %5, %7 : vector<1x256xf32>
    %c0_5 = arith.constant 0 : index
    %c0_6 = arith.constant 0 : index
    %9 = vector.load %arg5[%c0_5, %c0_6] : memref<1x256xf32, #tpu.memory_space<vmem>>, vector<1x256xf32>
    tpu.vector_store %arg5[%c0_5, %c0_6], %8 {strides = array<i32>} : memref<1x256xf32, #tpu.memory_space<vmem>>, vector<1x256xf32>,
    %c0_7 = arith.constant 0 : index
    %c0_8 = arith.constant 0 : index
    %10 = vector.load %arg6[%c0_7, %c0_8] : memref<1x256xf32, #tpu.memory_space<vmem>>, vector<1x256xf32>
    %cst_9 = arith.constant dense<0xFF800000> : vector<256xf32>
    %11 = vector.multi_reduction <maximumf>, %4, %cst_9 [0] : vector<64x256xf32> to vector<256xf32>
    %12 = vector.shape_cast %11 : vector<256xf32> to vector<1x256xf32>
    %13 = arith.maximumf %10, %12 : vector<1x256xf32>
    %c0_10 = arith.constant 0 : index
    %c0_11 = arith.constant 0 : index
    %14 = vector.load %arg6[%c0_10, %c0_11] : memref<1x256xf32, #tpu.memory_space<vmem>>, vector<1x256xf32>
    tpu.vector_store %arg6[%c0_10, %c0_11], %13 {strides = array<i32>} : memref<1x256xf32, #tpu.memory_space<vmem>>, vector<1x256xf32>,
    %c0_i32_12 = arith.constant 0 : i32
    %15 = arith.cmpi eq, %arg1, %c0_i32_12 : i32
    %16 = arith.extui %15 : i1 to i32
    %c0_i32_13 = arith.constant 0 : i32
    %17 = arith.cmpi ne, %16, %c0_i32_13 : i32
    scf.if %17 {
      %c0_14 = arith.constant 0 : index
      %c0_15 = arith.constant 0 : index
      %18 = vector.load %arg5[%c0_14, %c0_15] : memref<1x256xf32, #tpu.memory_space<vmem>>, vector<1x256xf32>
      %cst_16 = arith.constant 1.562500e-02 : f32
      %19 = vector.broadcast %cst_16 : f32 to vector<1x256xf32>
      %20 = arith.mulf %18, %19 : vector<1x256xf32>
      %c0_17 = arith.constant 0 : index
      %c0_18 = arith.constant 0 : index
      %21 = vector.load %arg6[%c0_17, %c0_18] : memref<1x256xf32, #tpu.memory_space<vmem>>, vector<1x256xf32>
      %cst_19 = arith.constant 0.000000e+00 : f32
      %22 = vector.broadcast %cst_19 : f32 to vector<2x22x22xf32>
      %c0_20 = arith.constant 0 : index
      %c0_21 = arith.constant 0 : index
      %c0_22 = arith.constant 0 : index
      %23 = vector.load %arg7[%c0_20, %c0_21, %c0_22] : memref<2x22x22xf32, #tpu.memory_space<vmem>>, vector<2x22x22xf32>
      tpu.vector_store %arg7[%c0_20, %c0_21, %c0_22], %22 {strides = array<i32>} : memref<2x22x22xf32, #tpu.memory_space<vmem>>, vector<2x22x22xf32>,
      %24 = vector.extract_strided_slice %20 {offsets = [0, 0], sizes = [1, 16], strides = [1, 1]} : vector<1x256xf32> to vector<1x16xf32>
      %c0_23 = arith.constant 0 : index
      %c3 = arith.constant 3 : index
      %c3_24 = arith.constant 3 : index
      %25 = vector.load %arg7[%c0_23, %c3, %c3_24] : memref<2x22x22xf32, #tpu.memory_space<vmem>>, vector<1x1x16xf32>
      %26 = vector.shape_cast %25 : vector<1x1x16xf32> to vector<1x16xf32>
      %27 = vector.shape_cast %24 : vector<1x16xf32> to vector<1x1x16xf32>
      tpu.vector_store %arg7[%c0_23, %c3, %c3_24], %27 {strides = array<i32>} : memref<2x22x22xf32, #tpu.memory_space<vmem>>, vector<1x1x16xf32>,
      %28 = vector.extract_strided_slice %21 {offsets = [0, 0], sizes = [1, 16], strides = [1, 1]} : vector<1x256xf32> to vector<1x16xf32>
      %c1 = arith.constant 1 : index
      %c3_25 = arith.constant 3 : index
      %c3_26 = arith.constant 3 : index
      %29 = vector.load %arg7[%c1, %c3_25, %c3_26] : memref<2x22x22xf32, #tpu.memory_space<vmem>>, vector<1x1x16xf32>
      %30 = vector.shape_cast %29 : vector<1x1x16xf32> to vector<1x16xf32>
      %31 = vector.shape_cast %28 : vector<1x16xf32> to vector<1x1x16xf32>
      tpu.vector_store %arg7[%c1, %c3_25, %c3_26], %31 {strides = array<i32>} : memref<2x22x22xf32, #tpu.memory_space<vmem>>, vector<1x1x16xf32>,
      %32 = vector.extract_strided_slice %20 {offsets = [0, 16], sizes = [1, 16], strides = [1, 1]} : vector<1x256xf32> to vector<1x16xf32>
      %c0_27 = arith.constant 0 : index
      %c4 = arith.constant 4 : index
      %c3_28 = arith.constant 3 : index
      %33 = vector.load %arg7[%c0_27, %c4, %c3_28] : memref<2x22x22xf32, #tpu.memory_space<vmem>>, vector<1x1x16xf32>
      %34 = vector.shape_cast %33 : vector<1x1x16xf32> to vector<1x16xf32>
      %35 = vector.shape_cast %32 : vector<1x16xf32> to vector<1x1x16xf32>
      tpu.vector_store %arg7[%c0_27, %c4, %c3_28], %35 {strides = array<i32>} : memref<2x22x22xf32, #tpu.memory_space<vmem>>, vector<1x1x16xf32>,
      %36 = vector.extract_strided_slice %21 {offsets = [0, 16], sizes = [1, 16], strides = [1, 1]} : vector<1x256xf32> to vector<1x16xf32>
      %c1_29 = arith.constant 1 : index
      %c4_30 = arith.constant 4 : index
      %c3_31 = arith.constant 3 : index
      %37 = vector.load %arg7[%c1_29, %c4_30, %c3_31] : memref<2x22x22xf32, #tpu.memory_space<vmem>>, vector<1x1x16xf32>
      %38 = vector.shape_cast %37 : vector<1x1x16xf32> to vector<1x16xf32>
      %39 = vector.shape_cast %36 : vector<1x16xf32> to vector<1x1x16xf32>
      tpu.vector_store %arg7[%c1_29, %c4_30, %c3_31], %39 {strides = array<i32>} : memref<2x22x22xf32, #tpu.memory_space<vmem>>, vector<1x1x16xf32>,
      %40 = vector.extract_strided_slice %20 {offsets = [0, 32], sizes = [1, 16], strides = [1, 1]} : vector<1x256xf32> to vector<1x16xf32>
      %c0_32 = arith.constant 0 : index
      %c5 = arith.constant 5 : index
      %c3_33 = arith.constant 3 : index
      %41 = vector.load %arg7[%c0_32, %c5, %c3_33] : memref<2x22x22xf32, #tpu.memory_space<vmem>>, vector<1x1x16xf32>
      %42 = vector.shape_cast %41 : vector<1x1x16xf32> to vector<1x16xf32>
      %43 = vector.shape_cast %40 : vector<1x16xf32> to vector<1x1x16xf32>
      tpu.vector_store %arg7[%c0_32, %c5, %c3_33], %43 {strides = array<i32>} : memref<2x22x22xf32, #tpu.memory_space<vmem>>, vector<1x1x16xf32>,
      %44 = vector.extract_strided_slice %21 {offsets = [0, 32], sizes = [1, 16], strides = [1, 1]} : vector<1x256xf32> to vector<1x16xf32>
      %c1_34 = arith.constant 1 : index
      %c5_35 = arith.constant 5 : index
      %c3_36 = arith.constant 3 : index
      %45 = vector.load %arg7[%c1_34, %c5_35, %c3_36] : memref<2x22x22xf32, #tpu.memory_space<vmem>>, vector<1x1x16xf32>
      %46 = vector.shape_cast %45 : vector<1x1x16xf32> to vector<1x16xf32>
      %47 = vector.shape_cast %44 : vector<1x16xf32> to vector<1x1x16xf32>
      tpu.vector_store %arg7[%c1_34, %c5_35, %c3_36], %47 {strides = array<i32>} : memref<2x22x22xf32, #tpu.memory_space<vmem>>, vector<1x1x16xf32>,
      %48 = vector.extract_strided_slice %20 {offsets = [0, 48], sizes = [1, 16], strides = [1, 1]} : vector<1x256xf32> to vector<1x16xf32>
      %c0_37 = arith.constant 0 : index
      %c6 = arith.constant 6 : index
      %c3_38 = arith.constant 3 : index
      %49 = vector.load %arg7[%c0_37, %c6, %c3_38] : memref<2x22x22xf32, #tpu.memory_space<vmem>>, vector<1x1x16xf32>
      %50 = vector.shape_cast %49 : vector<1x1x16xf32> to vector<1x16xf32>
      %51 = vector.shape_cast %48 : vector<1x16xf32> to vector<1x1x16xf32>
      tpu.vector_store %arg7[%c0_37, %c6, %c3_38], %51 {strides = array<i32>} : memref<2x22x22xf32, #tpu.memory_space<vmem>>, vector<1x1x16xf32>,
      %52 = vector.extract_strided_slice %21 {offsets = [0, 48], sizes = [1, 16], strides = [1, 1]} : vector<1x256xf32> to vector<1x16xf32>
      %c1_39 = arith.constant 1 : index
      %c6_40 = arith.constant 6 : index
      %c3_41 = arith.constant 3 : index
      %53 = vector.load %arg7[%c1_39, %c6_40, %c3_41] : memref<2x22x22xf32, #tpu.memory_space<vmem>>, vector<1x1x16xf32>
      %54 = vector.shape_cast %53 : vector<1x1x16xf32> to vector<1x16xf32>
      %55 = vector.shape_cast %52 : vector<1x16xf32> to vector<1x1x16xf32>
      tpu.vector_store %arg7[%c1_39, %c6_40, %c3_41], %55 {strides = array<i32>} : memref<2x22x22xf32, #tpu.memory_space<vmem>>, vector<1x1x16xf32>,
      %56 = vector.extract_strided_slice %20 {offsets = [0, 64], sizes = [1, 16], strides = [1, 1]} : vector<1x256xf32> to vector<1x16xf32>
      %c0_42 = arith.constant 0 : index
      %c7 = arith.constant 7 : index
      %c3_43 = arith.constant 3 : index
      %57 = vector.load %arg7[%c0_42, %c7, %c3_43] : memref<2x22x22xf32, #tpu.memory_space<vmem>>, vector<1x1x16xf32>
      %58 = vector.shape_cast %57 : vector<1x1x16xf32> to vector<1x16xf32>
      %59 = vector.shape_cast %56 : vector<1x16xf32> to vector<1x1x16xf32>
      tpu.vector_store %arg7[%c0_42, %c7, %c3_43], %59 {strides = array<i32>} : memref<2x22x22xf32, #tpu.memory_space<vmem>>, vector<1x1x16xf32>,
      %60 = vector.extract_strided_slice %21 {offsets = [0, 64], sizes = [1, 16], strides = [1, 1]} : vector<1x256xf32> to vector<1x16xf32>
      %c1_44 = arith.constant 1 : index
      %c7_45 = arith.constant 7 : index
      %c3_46 = arith.constant 3 : index
      %61 = vector.load %arg7[%c1_44, %c7_45, %c3_46] : memref<2x22x22xf32, #tpu.memory_space<vmem>>, vector<1x1x16xf32>
      %62 = vector.shape_cast %61 : vector<1x1x16xf32> to vector<1x16xf32>
      %63 = vector.shape_cast %60 : vector<1x16xf32> to vector<1x1x16xf32>
      tpu.vector_store %arg7[%c1_44, %c7_45, %c3_46], %63 {strides = array<i32>} : memref<2x22x22xf32, #tpu.memory_space<vmem>>, vector<1x1x16xf32>,
      %64 = vector.extract_strided_slice %20 {offsets = [0, 80], sizes = [1, 16], strides = [1, 1]} : vector<1x256xf32> to vector<1x16xf32>
      %c0_47 = arith.constant 0 : index
      %c8 = arith.constant 8 : index
      %c3_48 = arith.constant 3 : index
      %65 = vector.load %arg7[%c0_47, %c8, %c3_48] : memref<2x22x22xf32, #tpu.memory_space<vmem>>, vector<1x1x16xf32>
      %66 = vector.shape_cast %65 : vector<1x1x16xf32> to vector<1x16xf32>
      %67 = vector.shape_cast %64 : vector<1x16xf32> to vector<1x1x16xf32>
      tpu.vector_store %arg7[%c0_47, %c8, %c3_48], %67 {strides = array<i32>} : memref<2x22x22xf32, #tpu.memory_space<vmem>>, vector<1x1x16xf32>,
      %68 = vector.extract_strided_slice %21 {offsets = [0, 80], sizes = [1, 16], strides = [1, 1]} : vector<1x256xf32> to vector<1x16xf32>
      %c1_49 = arith.constant 1 : index
      %c8_50 = arith.constant 8 : index
      %c3_51 = arith.constant 3 : index
      %69 = vector.load %arg7[%c1_49, %c8_50, %c3_51] : memref<2x22x22xf32, #tpu.memory_space<vmem>>, vector<1x1x16xf32>
      %70 = vector.shape_cast %69 : vector<1x1x16xf32> to vector<1x16xf32>
      %71 = vector.shape_cast %68 : vector<1x16xf32> to vector<1x1x16xf32>
      tpu.vector_store %arg7[%c1_49, %c8_50, %c3_51], %71 {strides = array<i32>} : memref<2x22x22xf32, #tpu.memory_space<vmem>>, vector<1x1x16xf32>,
      %72 = vector.extract_strided_slice %20 {offsets = [0, 96], sizes = [1, 16], strides = [1, 1]} : vector<1x256xf32> to vector<1x16xf32>
      %c0_52 = arith.constant 0 : index
      %c9 = arith.constant 9 : index
      %c3_53 = arith.constant 3 : index
      %73 = vector.load %arg7[%c0_52, %c9, %c3_53] : memref<2x22x22xf32, #tpu.memory_space<vmem>>, vector<1x1x16xf32>
      %74 = vector.shape_cast %73 : vector<1x1x16xf32> to vector<1x16xf32>
      %75 = vector.shape_cast %72 : vector<1x16xf32> to vector<1x1x16xf32>
      tpu.vector_store %arg7[%c0_52, %c9, %c3_53], %75 {strides = array<i32>} : memref<2x22x22xf32, #tpu.memory_space<vmem>>, vector<1x1x16xf32>,
      %76 = vector.extract_strided_slice %21 {offsets = [0, 96], sizes = [1, 16], strides = [1, 1]} : vector<1x256xf32> to vector<1x16xf32>
      %c1_54 = arith.constant 1 : index
      %c9_55 = arith.constant 9 : index
      %c3_56 = arith.constant 3 : index
      %77 = vector.load %arg7[%c1_54, %c9_55, %c3_56] : memref<2x22x22xf32, #tpu.memory_space<vmem>>, vector<1x1x16xf32>
      %78 = vector.shape_cast %77 : vector<1x1x16xf32> to vector<1x16xf32>
      %79 = vector.shape_cast %76 : vector<1x16xf32> to vector<1x1x16xf32>
      tpu.vector_store %arg7[%c1_54, %c9_55, %c3_56], %79 {strides = array<i32>} : memref<2x22x22xf32, #tpu.memory_space<vmem>>, vector<1x1x16xf32>,
      %80 = vector.extract_strided_slice %20 {offsets = [0, 112], sizes = [1, 16], strides = [1, 1]} : vector<1x256xf32> to vector<1x16xf32>
      %c0_57 = arith.constant 0 : index
      %c10 = arith.constant 10 : index
      %c3_58 = arith.constant 3 : index
      %81 = vector.load %arg7[%c0_57, %c10, %c3_58] : memref<2x22x22xf32, #tpu.memory_space<vmem>>, vector<1x1x16xf32>
      %82 = vector.shape_cast %81 : vector<1x1x16xf32> to vector<1x16xf32>
      %83 = vector.shape_cast %80 : vector<1x16xf32> to vector<1x1x16xf32>
      tpu.vector_store %arg7[%c0_57, %c10, %c3_58], %83 {strides = array<i32>} : memref<2x22x22xf32, #tpu.memory_space<vmem>>, vector<1x1x16xf32>,
      %84 = vector.extract_strided_slice %21 {offsets = [0, 112], sizes = [1, 16], strides = [1, 1]} : vector<1x256xf32> to vector<1x16xf32>
      %c1_59 = arith.constant 1 : index
      %c10_60 = arith.constant 10 : index
      %c3_61 = arith.constant 3 : index
      %85 = vector.load %arg7[%c1_59, %c10_60, %c3_61] : memref<2x22x22xf32, #tpu.memory_space<vmem>>, vector<1x1x16xf32>
      %86 = vector.shape_cast %85 : vector<1x1x16xf32> to vector<1x16xf32>
      %87 = vector.shape_cast %84 : vector<1x16xf32> to vector<1x1x16xf32>
      tpu.vector_store %arg7[%c1_59, %c10_60, %c3_61], %87 {strides = array<i32>} : memref<2x22x22xf32, #tpu.memory_space<vmem>>, vector<1x1x16xf32>,
      %88 = vector.extract_strided_slice %20 {offsets = [0, 128], sizes = [1, 16], strides = [1, 1]} : vector<1x256xf32> to vector<1x16xf32>
      %c0_62 = arith.constant 0 : index
      %c11 = arith.constant 11 : index
      %c3_63 = arith.constant 3 : index
      %89 = vector.load %arg7[%c0_62, %c11, %c3_63] : memref<2x22x22xf32, #tpu.memory_space<vmem>>, vector<1x1x16xf32>
      %90 = vector.shape_cast %89 : vector<1x1x16xf32> to vector<1x16xf32>
      %91 = vector.shape_cast %88 : vector<1x16xf32> to vector<1x1x16xf32>
      tpu.vector_store %arg7[%c0_62, %c11, %c3_63], %91 {strides = array<i32>} : memref<2x22x22xf32, #tpu.memory_space<vmem>>, vector<1x1x16xf32>,
      %92 = vector.extract_strided_slice %21 {offsets = [0, 128], sizes = [1, 16], strides = [1, 1]} : vector<1x256xf32> to vector<1x16xf32>
      %c1_64 = arith.constant 1 : index
      %c11_65 = arith.constant 11 : index
      %c3_66 = arith.constant 3 : index
      %93 = vector.load %arg7[%c1_64, %c11_65, %c3_66] : memref<2x22x22xf32, #tpu.memory_space<vmem>>, vector<1x1x16xf32>
      %94 = vector.shape_cast %93 : vector<1x1x16xf32> to vector<1x16xf32>
      %95 = vector.shape_cast %92 : vector<1x16xf32> to vector<1x1x16xf32>
      tpu.vector_store %arg7[%c1_64, %c11_65, %c3_66], %95 {strides = array<i32>} : memref<2x22x22xf32, #tpu.memory_space<vmem>>, vector<1x1x16xf32>,
      %96 = vector.extract_strided_slice %20 {offsets = [0, 144], sizes = [1, 16], strides = [1, 1]} : vector<1x256xf32> to vector<1x16xf32>
      %c0_67 = arith.constant 0 : index
      %c12 = arith.constant 12 : index
      %c3_68 = arith.constant 3 : index
      %97 = vector.load %arg7[%c0_67, %c12, %c3_68] : memref<2x22x22xf32, #tpu.memory_space<vmem>>, vector<1x1x16xf32>
      %98 = vector.shape_cast %97 : vector<1x1x16xf32> to vector<1x16xf32>
      %99 = vector.shape_cast %96 : vector<1x16xf32> to vector<1x1x16xf32>
      tpu.vector_store %arg7[%c0_67, %c12, %c3_68], %99 {strides = array<i32>} : memref<2x22x22xf32, #tpu.memory_space<vmem>>, vector<1x1x16xf32>,
      %100 = vector.extract_strided_slice %21 {offsets = [0, 144], sizes = [1, 16], strides = [1, 1]} : vector<1x256xf32> to vector<1x16xf32>
      %c1_69 = arith.constant 1 : index
      %c12_70 = arith.constant 12 : index
      %c3_71 = arith.constant 3 : index
      %101 = vector.load %arg7[%c1_69, %c12_70, %c3_71] : memref<2x22x22xf32, #tpu.memory_space<vmem>>, vector<1x1x16xf32>
      %102 = vector.shape_cast %101 : vector<1x1x16xf32> to vector<1x16xf32>
      %103 = vector.shape_cast %100 : vector<1x16xf32> to vector<1x1x16xf32>
      tpu.vector_store %arg7[%c1_69, %c12_70, %c3_71], %103 {strides = array<i32>} : memref<2x22x22xf32, #tpu.memory_space<vmem>>, vector<1x1x16xf32>,
      %104 = vector.extract_strided_slice %20 {offsets = [0, 160], sizes = [1, 16], strides = [1, 1]} : vector<1x256xf32> to vector<1x16xf32>
      %c0_72 = arith.constant 0 : index
      %c13 = arith.constant 13 : index
      %c3_73 = arith.constant 3 : index
      %105 = vector.load %arg7[%c0_72, %c13, %c3_73] : memref<2x22x22xf32, #tpu.memory_space<vmem>>, vector<1x1x16xf32>
      %106 = vector.shape_cast %105 : vector<1x1x16xf32> to vector<1x16xf32>
      %107 = vector.shape_cast %104 : vector<1x16xf32> to vector<1x1x16xf32>
      tpu.vector_store %arg7[%c0_72, %c13, %c3_73], %107 {strides = array<i32>} : memref<2x22x22xf32, #tpu.memory_space<vmem>>, vector<1x1x16xf32>,
      %108 = vector.extract_strided_slice %21 {offsets = [0, 160], sizes = [1, 16], strides = [1, 1]} : vector<1x256xf32> to vector<1x16xf32>
      %c1_74 = arith.constant 1 : index
      %c13_75 = arith.constant 13 : index
      %c3_76 = arith.constant 3 : index
      %109 = vector.load %arg7[%c1_74, %c13_75, %c3_76] : memref<2x22x22xf32, #tpu.memory_space<vmem>>, vector<1x1x16xf32>
      %110 = vector.shape_cast %109 : vector<1x1x16xf32> to vector<1x16xf32>
      %111 = vector.shape_cast %108 : vector<1x16xf32> to vector<1x1x16xf32>
      tpu.vector_store %arg7[%c1_74, %c13_75, %c3_76], %111 {strides = array<i32>} : memref<2x22x22xf32, #tpu.memory_space<vmem>>, vector<1x1x16xf32>,
      %112 = vector.extract_strided_slice %20 {offsets = [0, 176], sizes = [1, 16], strides = [1, 1]} : vector<1x256xf32> to vector<1x16xf32>
      %c0_77 = arith.constant 0 : index
      %c14 = arith.constant 14 : index
      %c3_78 = arith.constant 3 : index
      %113 = vector.load %arg7[%c0_77, %c14, %c3_78] : memref<2x22x22xf32, #tpu.memory_space<vmem>>, vector<1x1x16xf32>
      %114 = vector.shape_cast %113 : vector<1x1x16xf32> to vector<1x16xf32>
      %115 = vector.shape_cast %112 : vector<1x16xf32> to vector<1x1x16xf32>
      tpu.vector_store %arg7[%c0_77, %c14, %c3_78], %115 {strides = array<i32>} : memref<2x22x22xf32, #tpu.memory_space<vmem>>, vector<1x1x16xf32>,
      %116 = vector.extract_strided_slice %21 {offsets = [0, 176], sizes = [1, 16], strides = [1, 1]} : vector<1x256xf32> to vector<1x16xf32>
      %c1_79 = arith.constant 1 : index
      %c14_80 = arith.constant 14 : index
      %c3_81 = arith.constant 3 : index
      %117 = vector.load %arg7[%c1_79, %c14_80, %c3_81] : memref<2x22x22xf32, #tpu.memory_space<vmem>>, vector<1x1x16xf32>
      %118 = vector.shape_cast %117 : vector<1x1x16xf32> to vector<1x16xf32>
      %119 = vector.shape_cast %116 : vector<1x16xf32> to vector<1x1x16xf32>
      tpu.vector_store %arg7[%c1_79, %c14_80, %c3_81], %119 {strides = array<i32>} : memref<2x22x22xf32, #tpu.memory_space<vmem>>, vector<1x1x16xf32>,
      %120 = vector.extract_strided_slice %20 {offsets = [0, 192], sizes = [1, 16], strides = [1, 1]} : vector<1x256xf32> to vector<1x16xf32>
      %c0_82 = arith.constant 0 : index
      %c15 = arith.constant 15 : index
      %c3_83 = arith.constant 3 : index
      %121 = vector.load %arg7[%c0_82, %c15, %c3_83] : memref<2x22x22xf32, #tpu.memory_space<vmem>>, vector<1x1x16xf32>
      %122 = vector.shape_cast %121 : vector<1x1x16xf32> to vector<1x16xf32>
      %123 = vector.shape_cast %120 : vector<1x16xf32> to vector<1x1x16xf32>
      tpu.vector_store %arg7[%c0_82, %c15, %c3_83], %123 {strides = array<i32>} : memref<2x22x22xf32, #tpu.memory_space<vmem>>, vector<1x1x16xf32>,
      %124 = vector.extract_strided_slice %21 {offsets = [0, 192], sizes = [1, 16], strides = [1, 1]} : vector<1x256xf32> to vector<1x16xf32>
      %c1_84 = arith.constant 1 : index
      %c15_85 = arith.constant 15 : index
      %c3_86 = arith.constant 3 : index
      %125 = vector.load %arg7[%c1_84, %c15_85, %c3_86] : memref<2x22x22xf32, #tpu.memory_space<vmem>>, vector<1x1x16xf32>
      %126 = vector.shape_cast %125 : vector<1x1x16xf32> to vector<1x16xf32>
      %127 = vector.shape_cast %124 : vector<1x16xf32> to vector<1x1x16xf32>
      tpu.vector_store %arg7[%c1_84, %c15_85, %c3_86], %127 {strides = array<i32>} : memref<2x22x22xf32, #tpu.memory_space<vmem>>, vector<1x1x16xf32>,
      %128 = vector.extract_strided_slice %20 {offsets = [0, 208], sizes = [1, 16], strides = [1, 1]} : vector<1x256xf32> to vector<1x16xf32>
      %c0_87 = arith.constant 0 : index
      %c16 = arith.constant 16 : index
      %c3_88 = arith.constant 3 : index
      %129 = vector.load %arg7[%c0_87, %c16, %c3_88] : memref<2x22x22xf32, #tpu.memory_space<vmem>>, vector<1x1x16xf32>
      %130 = vector.shape_cast %129 : vector<1x1x16xf32> to vector<1x16xf32>
      %131 = vector.shape_cast %128 : vector<1x16xf32> to vector<1x1x16xf32>
      tpu.vector_store %arg7[%c0_87, %c16, %c3_88], %131 {strides = array<i32>} : memref<2x22x22xf32, #tpu.memory_space<vmem>>, vector<1x1x16xf32>,
      %132 = vector.extract_strided_slice %21 {offsets = [0, 208], sizes = [1, 16], strides = [1, 1]} : vector<1x256xf32> to vector<1x16xf32>
      %c1_89 = arith.constant 1 : index
      %c16_90 = arith.constant 16 : index
      %c3_91 = arith.constant 3 : index
      %133 = vector.load %arg7[%c1_89, %c16_90, %c3_91] : memref<2x22x22xf32, #tpu.memory_space<vmem>>, vector<1x1x16xf32>
      %134 = vector.shape_cast %133 : vector<1x1x16xf32> to vector<1x16xf32>
      %135 = vector.shape_cast %132 : vector<1x16xf32> to vector<1x1x16xf32>
      tpu.vector_store %arg7[%c1_89, %c16_90, %c3_91], %135 {strides = array<i32>} : memref<2x22x22xf32, #tpu.memory_space<vmem>>, vector<1x1x16xf32>,
      %136 = vector.extract_strided_slice %20 {offsets = [0, 224], sizes = [1, 16], strides = [1, 1]} : vector<1x256xf32> to vector<1x16xf32>
      %c0_92 = arith.constant 0 : index
      %c17 = arith.constant 17 : index
      %c3_93 = arith.constant 3 : index
      %137 = vector.load %arg7[%c0_92, %c17, %c3_93] : memref<2x22x22xf32, #tpu.memory_space<vmem>>, vector<1x1x16xf32>
      %138 = vector.shape_cast %137 : vector<1x1x16xf32> to vector<1x16xf32>
      %139 = vector.shape_cast %136 : vector<1x16xf32> to vector<1x1x16xf32>
      tpu.vector_store %arg7[%c0_92, %c17, %c3_93], %139 {strides = array<i32>} : memref<2x22x22xf32, #tpu.memory_space<vmem>>, vector<1x1x16xf32>,
      %140 = vector.extract_strided_slice %21 {offsets = [0, 224], sizes = [1, 16], strides = [1, 1]} : vector<1x256xf32> to vector<1x16xf32>
      %c1_94 = arith.constant 1 : index
      %c17_95 = arith.constant 17 : index
      %c3_96 = arith.constant 3 : index
      %141 = vector.load %arg7[%c1_94, %c17_95, %c3_96] : memref<2x22x22xf32, #tpu.memory_space<vmem>>, vector<1x1x16xf32>
      %142 = vector.shape_cast %141 : vector<1x1x16xf32> to vector<1x16xf32>
      %143 = vector.shape_cast %140 : vector<1x16xf32> to vector<1x1x16xf32>
      tpu.vector_store %arg7[%c1_94, %c17_95, %c3_96], %143 {strides = array<i32>} : memref<2x22x22xf32, #tpu.memory_space<vmem>>, vector<1x1x16xf32>,
      %144 = vector.extract_strided_slice %20 {offsets = [0, 240], sizes = [1, 16], strides = [1, 1]} : vector<1x256xf32> to vector<1x16xf32>
      %c0_97 = arith.constant 0 : index
      %c18 = arith.constant 18 : index
      %c3_98 = arith.constant 3 : index
      %145 = vector.load %arg7[%c0_97, %c18, %c3_98] : memref<2x22x22xf32, #tpu.memory_space<vmem>>, vector<1x1x16xf32>
      %146 = vector.shape_cast %145 : vector<1x1x16xf32> to vector<1x16xf32>
      %147 = vector.shape_cast %144 : vector<1x16xf32> to vector<1x1x16xf32>
      tpu.vector_store %arg7[%c0_97, %c18, %c3_98], %147 {strides = array<i32>} : memref<2x22x22xf32, #tpu.memory_space<vmem>>, vector<1x1x16xf32>,
      %148 = vector.extract_strided_slice %21 {offsets = [0, 240], sizes = [1, 16], strides = [1, 1]} : vector<1x256xf32> to vector<1x16xf32>
      %c1_99 = arith.constant 1 : index
      %c18_100 = arith.constant 18 : index
      %c3_101 = arith.constant 3 : index
      %149 = vector.load %arg7[%c1_99, %c18_100, %c3_101] : memref<2x22x22xf32, #tpu.memory_space<vmem>>, vector<1x1x16xf32>
      %150 = vector.shape_cast %149 : vector<1x1x16xf32> to vector<1x16xf32>
      %151 = vector.shape_cast %148 : vector<1x16xf32> to vector<1x1x16xf32>
      tpu.vector_store %arg7[%c1_99, %c18_100, %c3_101], %151 {strides = array<i32>} : memref<2x22x22xf32, #tpu.memory_space<vmem>>, vector<1x1x16xf32>,
      %c0_102 = arith.constant 0 : index
      %c0_103 = arith.constant 0 : index
      %c0_104 = arith.constant 0 : index
      %152 = vector.load %arg7[%c0_102, %c0_103, %c0_104] : memref<2x22x22xf32, #tpu.memory_space<vmem>>, vector<1x22x16xf32>
      %153 = vector.shape_cast %152 : vector<1x22x16xf32> to vector<22x16xf32>
      %c0_105 = arith.constant 0 : index
      %c0_106 = arith.constant 0 : index
      %c0_107 = arith.constant 0 : index
      %c0_108 = arith.constant 0 : index
      %154 = vector.load %arg8[%c0_105, %c0_106, %c0_107, %c0_108] : memref<2x7x22x16xf32, #tpu.memory_space<vmem>>, vector<1x1x22x16xf32>
      %155 = vector.shape_cast %154 : vector<1x1x22x16xf32> to vector<22x16xf32>
      %156 = vector.shape_cast %153 : vector<22x16xf32> to vector<1x1x22x16xf32>
      tpu.vector_store %arg8[%c0_105, %c0_106, %c0_107, %c0_108], %156 {strides = array<i32>} : memref<2x7x22x16xf32, #tpu.memory_space<vmem>>, vector<1x1x22x16xf32>,
      %c0_109 = arith.constant 0 : index
      %c0_110 = arith.constant 0 : index
      %c1_111 = arith.constant 1 : index
      %157 = vector.load %arg7[%c0_109, %c0_110, %c1_111] : memref<2x22x22xf32, #tpu.memory_space<vmem>>, vector<1x22x16xf32>
      %158 = vector.shape_cast %157 : vector<1x22x16xf32> to vector<22x16xf32>
      %c0_112 = arith.constant 0 : index
      %c1_113 = arith.constant 1 : index
      %c0_114 = arith.constant 0 : index
      %c0_115 = arith.constant 0 : index
      %159 = vector.load %arg8[%c0_112, %c1_113, %c0_114, %c0_115] : memref<2x7x22x16xf32, #tpu.memory_space<vmem>>, vector<1x1x22x16xf32>
      %160 = vector.shape_cast %159 : vector<1x1x22x16xf32> to vector<22x16xf32>
      %161 = vector.shape_cast %158 : vector<22x16xf32> to vector<1x1x22x16xf32>
      tpu.vector_store %arg8[%c0_112, %c1_113, %c0_114, %c0_115], %161 {strides = array<i32>} : memref<2x7x22x16xf32, #tpu.memory_space<vmem>>, vector<1x1x22x16xf32>,
      %c0_116 = arith.constant 0 : index
      %c0_117 = arith.constant 0 : index
      %c2 = arith.constant 2 : index
      %162 = vector.load %arg7[%c0_116, %c0_117, %c2] : memref<2x22x22xf32, #tpu.memory_space<vmem>>, vector<1x22x16xf32>
      %163 = vector.shape_cast %162 : vector<1x22x16xf32> to vector<22x16xf32>
      %c0_118 = arith.constant 0 : index
      %c2_119 = arith.constant 2 : index
      %c0_120 = arith.constant 0 : index
      %c0_121 = arith.constant 0 : index
      %164 = vector.load %arg8[%c0_118, %c2_119, %c0_120, %c0_121] : memref<2x7x22x16xf32, #tpu.memory_space<vmem>>, vector<1x1x22x16xf32>
      %165 = vector.shape_cast %164 : vector<1x1x22x16xf32> to vector<22x16xf32>
      %166 = vector.shape_cast %163 : vector<22x16xf32> to vector<1x1x22x16xf32>
      tpu.vector_store %arg8[%c0_118, %c2_119, %c0_120, %c0_121], %166 {strides = array<i32>} : memref<2x7x22x16xf32, #tpu.memory_space<vmem>>, vector<1x1x22x16xf32>,
      %c0_122 = arith.constant 0 : index
      %c0_123 = arith.constant 0 : index
      %c3_124 = arith.constant 3 : index
      %167 = vector.load %arg7[%c0_122, %c0_123, %c3_124] : memref<2x22x22xf32, #tpu.memory_space<vmem>>, vector<1x22x16xf32>
      %168 = vector.shape_cast %167 : vector<1x22x16xf32> to vector<22x16xf32>
      %c0_125 = arith.constant 0 : index
      %c3_126 = arith.constant 3 : index
      %c0_127 = arith.constant 0 : index
      %c0_128 = arith.constant 0 : index
      %169 = vector.load %arg8[%c0_125, %c3_126, %c0_127, %c0_128] : memref<2x7x22x16xf32, #tpu.memory_space<vmem>>, vector<1x1x22x16xf32>
      %170 = vector.shape_cast %169 : vector<1x1x22x16xf32> to vector<22x16xf32>
      %171 = vector.shape_cast %168 : vector<22x16xf32> to vector<1x1x22x16xf32>
      tpu.vector_store %arg8[%c0_125, %c3_126, %c0_127, %c0_128], %171 {strides = array<i32>} : memref<2x7x22x16xf32, #tpu.memory_space<vmem>>, vector<1x1x22x16xf32>,
      %c0_129 = arith.constant 0 : index
      %c0_130 = arith.constant 0 : index
      %c4_131 = arith.constant 4 : index
      %172 = vector.load %arg7[%c0_129, %c0_130, %c4_131] : memref<2x22x22xf32, #tpu.memory_space<vmem>>, vector<1x22x16xf32>
      %173 = vector.shape_cast %172 : vector<1x22x16xf32> to vector<22x16xf32>
      %c0_132 = arith.constant 0 : index
      %c4_133 = arith.constant 4 : index
      %c0_134 = arith.constant 0 : index
      %c0_135 = arith.constant 0 : index
      %174 = vector.load %arg8[%c0_132, %c4_133, %c0_134, %c0_135] : memref<2x7x22x16xf32, #tpu.memory_space<vmem>>, vector<1x1x22x16xf32>
      %175 = vector.shape_cast %174 : vector<1x1x22x16xf32> to vector<22x16xf32>
      %176 = vector.shape_cast %173 : vector<22x16xf32> to vector<1x1x22x16xf32>
      tpu.vector_store %arg8[%c0_132, %c4_133, %c0_134, %c0_135], %176 {strides = array<i32>} : memref<2x7x22x16xf32, #tpu.memory_space<vmem>>, vector<1x1x22x16xf32>,
      %c0_136 = arith.constant 0 : index
      %c0_137 = arith.constant 0 : index
      %c5_138 = arith.constant 5 : index
      %177 = vector.load %arg7[%c0_136, %c0_137, %c5_138] : memref<2x22x22xf32, #tpu.memory_space<vmem>>, vector<1x22x16xf32>
      %178 = vector.shape_cast %177 : vector<1x22x16xf32> to vector<22x16xf32>
      %c0_139 = arith.constant 0 : index
      %c5_140 = arith.constant 5 : index
      %c0_141 = arith.constant 0 : index
      %c0_142 = arith.constant 0 : index
      %179 = vector.load %arg8[%c0_139, %c5_140, %c0_141, %c0_142] : memref<2x7x22x16xf32, #tpu.memory_space<vmem>>, vector<1x1x22x16xf32>
      %180 = vector.shape_cast %179 : vector<1x1x22x16xf32> to vector<22x16xf32>
      %181 = vector.shape_cast %178 : vector<22x16xf32> to vector<1x1x22x16xf32>
      tpu.vector_store %arg8[%c0_139, %c5_140, %c0_141, %c0_142], %181 {strides = array<i32>} : memref<2x7x22x16xf32, #tpu.memory_space<vmem>>, vector<1x1x22x16xf32>,
      %c0_143 = arith.constant 0 : index
      %c0_144 = arith.constant 0 : index
      %c6_145 = arith.constant 6 : index
      %182 = vector.load %arg7[%c0_143, %c0_144, %c6_145] : memref<2x22x22xf32, #tpu.memory_space<vmem>>, vector<1x22x16xf32>
      %183 = vector.shape_cast %182 : vector<1x22x16xf32> to vector<22x16xf32>
      %c0_146 = arith.constant 0 : index
      %c6_147 = arith.constant 6 : index
      %c0_148 = arith.constant 0 : index
      %c0_149 = arith.constant 0 : index
      %184 = vector.load %arg8[%c0_146, %c6_147, %c0_148, %c0_149] : memref<2x7x22x16xf32, #tpu.memory_space<vmem>>, vector<1x1x22x16xf32>
      %185 = vector.shape_cast %184 : vector<1x1x22x16xf32> to vector<22x16xf32>
      %186 = vector.shape_cast %183 : vector<22x16xf32> to vector<1x1x22x16xf32>
      tpu.vector_store %arg8[%c0_146, %c6_147, %c0_148, %c0_149], %186 {strides = array<i32>} : memref<2x7x22x16xf32, #tpu.memory_space<vmem>>, vector<1x1x22x16xf32>,
      %c1_150 = arith.constant 1 : index
      %c0_151 = arith.constant 0 : index
      %c0_152 = arith.constant 0 : index
      %187 = vector.load %arg7[%c1_150, %c0_151, %c0_152] : memref<2x22x22xf32, #tpu.memory_space<vmem>>, vector<1x22x16xf32>
      %188 = vector.shape_cast %187 : vector<1x22x16xf32> to vector<22x16xf32>
      %c1_153 = arith.constant 1 : index
      %c0_154 = arith.constant 0 : index
      %c0_155 = arith.constant 0 : index
      %c0_156 = arith.constant 0 : index
      %189 = vector.load %arg8[%c1_153, %c0_154, %c0_155, %c0_156] : memref<2x7x22x16xf32, #tpu.memory_space<vmem>>, vector<1x1x22x16xf32>
      %190 = vector.shape_cast %189 : vector<1x1x22x16xf32> to vector<22x16xf32>
      %191 = vector.shape_cast %188 : vector<22x16xf32> to vector<1x1x22x16xf32>
      tpu.vector_store %arg8[%c1_153, %c0_154, %c0_155, %c0_156], %191 {strides = array<i32>} : memref<2x7x22x16xf32, #tpu.memory_space<vmem>>, vector<1x1x22x16xf32>,
      %c1_157 = arith.constant 1 : index
      %c0_158 = arith.constant 0 : index
      %c1_159 = arith.constant 1 : index
      %192 = vector.load %arg7[%c1_157, %c0_158, %c1_159] : memref<2x22x22xf32, #tpu.memory_space<vmem>>, vector<1x22x16xf32>
      %193 = vector.shape_cast %192 : vector<1x22x16xf32> to vector<22x16xf32>
      %c1_160 = arith.constant 1 : index
      %c1_161 = arith.constant 1 : index
      %c0_162 = arith.constant 0 : index
      %c0_163 = arith.constant 0 : index
      %194 = vector.load %arg8[%c1_160, %c1_161, %c0_162, %c0_163] : memref<2x7x22x16xf32, #tpu.memory_space<vmem>>, vector<1x1x22x16xf32>
      %195 = vector.shape_cast %194 : vector<1x1x22x16xf32> to vector<22x16xf32>
      %196 = vector.shape_cast %193 : vector<22x16xf32> to vector<1x1x22x16xf32>
      tpu.vector_store %arg8[%c1_160, %c1_161, %c0_162, %c0_163], %196 {strides = array<i32>} : memref<2x7x22x16xf32, #tpu.memory_space<vmem>>, vector<1x1x22x16xf32>,
      %c1_164 = arith.constant 1 : index
      %c0_165 = arith.constant 0 : index
      %c2_166 = arith.constant 2 : index
      %197 = vector.load %arg7[%c1_164, %c0_165, %c2_166] : memref<2x22x22xf32, #tpu.memory_space<vmem>>, vector<1x22x16xf32>
      %198 = vector.shape_cast %197 : vector<1x22x16xf32> to vector<22x16xf32>
      %c1_167 = arith.constant 1 : index
      %c2_168 = arith.constant 2 : index
      %c0_169 = arith.constant 0 : index
      %c0_170 = arith.constant 0 : index
      %199 = vector.load %arg8[%c1_167, %c2_168, %c0_169, %c0_170] : memref<2x7x22x16xf32, #tpu.memory_space<vmem>>, vector<1x1x22x16xf32>
      %200 = vector.shape_cast %199 : vector<1x1x22x16xf32> to vector<22x16xf32>
      %201 = vector.shape_cast %198 : vector<22x16xf32> to vector<1x1x22x16xf32>
      tpu.vector_store %arg8[%c1_167, %c2_168, %c0_169, %c0_170], %201 {strides = array<i32>} : memref<2x7x22x16xf32, #tpu.memory_space<vmem>>, vector<1x1x22x16xf32>,
      %c1_171 = arith.constant 1 : index
      %c0_172 = arith.constant 0 : index
      %c3_173 = arith.constant 3 : index
      %202 = vector.load %arg7[%c1_171, %c0_172, %c3_173] : memref<2x22x22xf32, #tpu.memory_space<vmem>>, vector<1x22x16xf32>
      %203 = vector.shape_cast %202 : vector<1x22x16xf32> to vector<22x16xf32>
      %c1_174 = arith.constant 1 : index
      %c3_175 = arith.constant 3 : index
      %c0_176 = arith.constant 0 : index
      %c0_177 = arith.constant 0 : index
      %204 = vector.load %arg8[%c1_174, %c3_175, %c0_176, %c0_177] : memref<2x7x22x16xf32, #tpu.memory_space<vmem>>, vector<1x1x22x16xf32>
      %205 = vector.shape_cast %204 : vector<1x1x22x16xf32> to vector<22x16xf32>
      %206 = vector.shape_cast %203 : vector<22x16xf32> to vector<1x1x22x16xf32>
      tpu.vector_store %arg8[%c1_174, %c3_175, %c0_176, %c0_177], %206 {strides = array<i32>} : memref<2x7x22x16xf32, #tpu.memory_space<vmem>>, vector<1x1x22x16xf32>,
      %c1_178 = arith.constant 1 : index
      %c0_179 = arith.constant 0 : index
      %c4_180 = arith.constant 4 : index
      %207 = vector.load %arg7[%c1_178, %c0_179, %c4_180] : memref<2x22x22xf32, #tpu.memory_space<vmem>>, vector<1x22x16xf32>
      %208 = vector.shape_cast %207 : vector<1x22x16xf32> to vector<22x16xf32>
      %c1_181 = arith.constant 1 : index
      %c4_182 = arith.constant 4 : index
      %c0_183 = arith.constant 0 : index
      %c0_184 = arith.constant 0 : index
      %209 = vector.load %arg8[%c1_181, %c4_182, %c0_183, %c0_184] : memref<2x7x22x16xf32, #tpu.memory_space<vmem>>, vector<1x1x22x16xf32>
      %210 = vector.shape_cast %209 : vector<1x1x22x16xf32> to vector<22x16xf32>
      %211 = vector.shape_cast %208 : vector<22x16xf32> to vector<1x1x22x16xf32>
      tpu.vector_store %arg8[%c1_181, %c4_182, %c0_183, %c0_184], %211 {strides = array<i32>} : memref<2x7x22x16xf32, #tpu.memory_space<vmem>>, vector<1x1x22x16xf32>,
      %c1_185 = arith.constant 1 : index
      %c0_186 = arith.constant 0 : index
      %c5_187 = arith.constant 5 : index
      %212 = vector.load %arg7[%c1_185, %c0_186, %c5_187] : memref<2x22x22xf32, #tpu.memory_space<vmem>>, vector<1x22x16xf32>
      %213 = vector.shape_cast %212 : vector<1x22x16xf32> to vector<22x16xf32>
      %c1_188 = arith.constant 1 : index
      %c5_189 = arith.constant 5 : index
      %c0_190 = arith.constant 0 : index
      %c0_191 = arith.constant 0 : index
      %214 = vector.load %arg8[%c1_188, %c5_189, %c0_190, %c0_191] : memref<2x7x22x16xf32, #tpu.memory_space<vmem>>, vector<1x1x22x16xf32>
      %215 = vector.shape_cast %214 : vector<1x1x22x16xf32> to vector<22x16xf32>
      %216 = vector.shape_cast %213 : vector<22x16xf32> to vector<1x1x22x16xf32>
      tpu.vector_store %arg8[%c1_188, %c5_189, %c0_190, %c0_191], %216 {strides = array<i32>} : memref<2x7x22x16xf32, #tpu.memory_space<vmem>>, vector<1x1x22x16xf32>,
      %c1_192 = arith.constant 1 : index
      %c0_193 = arith.constant 0 : index
      %c6_194 = arith.constant 6 : index
      %217 = vector.load %arg7[%c1_192, %c0_193, %c6_194] : memref<2x22x22xf32, #tpu.memory_space<vmem>>, vector<1x22x16xf32>
      %218 = vector.shape_cast %217 : vector<1x22x16xf32> to vector<22x16xf32>
      %c1_195 = arith.constant 1 : index
      %c6_196 = arith.constant 6 : index
      %c0_197 = arith.constant 0 : index
      %c0_198 = arith.constant 0 : index
      %219 = vector.load %arg8[%c1_195, %c6_196, %c0_197, %c0_198] : memref<2x7x22x16xf32, #tpu.memory_space<vmem>>, vector<1x1x22x16xf32>
      %220 = vector.shape_cast %219 : vector<1x1x22x16xf32> to vector<22x16xf32>
      %221 = vector.shape_cast %218 : vector<22x16xf32> to vector<1x1x22x16xf32>
      tpu.vector_store %arg8[%c1_195, %c6_196, %c0_197, %c0_198], %221 {strides = array<i32>} : memref<2x7x22x16xf32, #tpu.memory_space<vmem>>, vector<1x1x22x16xf32>,
      %cst_199 = arith.constant 0.000000e+00 : f32
      %222 = vector.broadcast %cst_199 : f32 to vector<16x16xf32>
      %c0_200 = arith.constant 0 : index
      %223 = memref.load %arg3[%c0_200] : memref<98xf32, #tpu.memory_space<smem>>
      %c0_201 = arith.constant 0 : index
      %c0_202 = arith.constant 0 : index
      %c0_203 = arith.constant 0 : index
      %c0_204 = arith.constant 0 : index
      %224 = vector.load %arg8[%c0_201, %c0_202, %c0_203, %c0_204] : memref<2x7x22x16xf32, #tpu.memory_space<vmem>>, vector<1x1x16x16xf32>
      %225 = vector.shape_cast %224 : vector<1x1x16x16xf32> to vector<16x16xf32>
      %226 = vector.broadcast %223 : f32 to vector<16x16xf32>
      %227 = arith.mulf %226, %225 : vector<16x16xf32>
      %228 = arith.addf %222, %227 : vector<16x16xf32>
      %c1_205 = arith.constant 1 : index
      %229 = memref.load %arg3[%c1_205] : memref<98xf32, #tpu.memory_space<smem>>
      %c0_206 = arith.constant 0 : index
      %c1_207 = arith.constant 1 : index
      %c0_208 = arith.constant 0 : index
      %c0_209 = arith.constant 0 : index
      %230 = vector.load %arg8[%c0_206, %c1_207, %c0_208, %c0_209] : memref<2x7x22x16xf32, #tpu.memory_space<vmem>>, vector<1x1x16x16xf32>
      %231 = vector.shape_cast %230 : vector<1x1x16x16xf32> to vector<16x16xf32>
      %232 = vector.broadcast %229 : f32 to vector<16x16xf32>
      %233 = arith.mulf %232, %231 : vector<16x16xf32>
      %234 = arith.addf %228, %233 : vector<16x16xf32>
      %c2_210 = arith.constant 2 : index
      %235 = memref.load %arg3[%c2_210] : memref<98xf32, #tpu.memory_space<smem>>
      %c0_211 = arith.constant 0 : index
      %c2_212 = arith.constant 2 : index
      %c0_213 = arith.constant 0 : index
      %c0_214 = arith.constant 0 : index
      %236 = vector.load %arg8[%c0_211, %c2_212, %c0_213, %c0_214] : memref<2x7x22x16xf32, #tpu.memory_space<vmem>>, vector<1x1x16x16xf32>
      %237 = vector.shape_cast %236 : vector<1x1x16x16xf32> to vector<16x16xf32>
      %238 = vector.broadcast %235 : f32 to vector<16x16xf32>
      %239 = arith.mulf %238, %237 : vector<16x16xf32>
      %240 = arith.addf %234, %239 : vector<16x16xf32>
      %c3_215 = arith.constant 3 : index
      %241 = memref.load %arg3[%c3_215] : memref<98xf32, #tpu.memory_space<smem>>
      %c0_216 = arith.constant 0 : index
      %c3_217 = arith.constant 3 : index
      %c0_218 = arith.constant 0 : index
      %c0_219 = arith.constant 0 : index
      %242 = vector.load %arg8[%c0_216, %c3_217, %c0_218, %c0_219] : memref<2x7x22x16xf32, #tpu.memory_space<vmem>>, vector<1x1x16x16xf32>
      %243 = vector.shape_cast %242 : vector<1x1x16x16xf32> to vector<16x16xf32>
      %244 = vector.broadcast %241 : f32 to vector<16x16xf32>
      %245 = arith.mulf %244, %243 : vector<16x16xf32>
      %246 = arith.addf %240, %245 : vector<16x16xf32>
      %c4_220 = arith.constant 4 : index
      %247 = memref.load %arg3[%c4_220] : memref<98xf32, #tpu.memory_space<smem>>
      %c0_221 = arith.constant 0 : index
      %c4_222 = arith.constant 4 : index
      %c0_223 = arith.constant 0 : index
      %c0_224 = arith.constant 0 : index
      %248 = vector.load %arg8[%c0_221, %c4_222, %c0_223, %c0_224] : memref<2x7x22x16xf32, #tpu.memory_space<vmem>>, vector<1x1x16x16xf32>
      %249 = vector.shape_cast %248 : vector<1x1x16x16xf32> to vector<16x16xf32>
      %250 = vector.broadcast %247 : f32 to vector<16x16xf32>
      %251 = arith.mulf %250, %249 : vector<16x16xf32>
      %252 = arith.addf %246, %251 : vector<16x16xf32>
      %c5_225 = arith.constant 5 : index
      %253 = memref.load %arg3[%c5_225] : memref<98xf32, #tpu.memory_space<smem>>
      %c0_226 = arith.constant 0 : index
      %c5_227 = arith.constant 5 : index
      %c0_228 = arith.constant 0 : index
      %c0_229 = arith.constant 0 : index
      %254 = vector.load %arg8[%c0_226, %c5_227, %c0_228, %c0_229] : memref<2x7x22x16xf32, #tpu.memory_space<vmem>>, vector<1x1x16x16xf32>
      %255 = vector.shape_cast %254 : vector<1x1x16x16xf32> to vector<16x16xf32>
      %256 = vector.broadcast %253 : f32 to vector<16x16xf32>
      %257 = arith.mulf %256, %255 : vector<16x16xf32>
      %258 = arith.addf %252, %257 : vector<16x16xf32>
      %c6_230 = arith.constant 6 : index
      %259 = memref.load %arg3[%c6_230] : memref<98xf32, #tpu.memory_space<smem>>
      %c0_231 = arith.constant 0 : index
      %c6_232 = arith.constant 6 : index
      %c0_233 = arith.constant 0 : index
      %c0_234 = arith.constant 0 : index
      %260 = vector.load %arg8[%c0_231, %c6_232, %c0_233, %c0_234] : memref<2x7x22x16xf32, #tpu.memory_space<vmem>>, vector<1x1x16x16xf32>
      %261 = vector.shape_cast %260 : vector<1x1x16x16xf32> to vector<16x16xf32>
      %262 = vector.broadcast %259 : f32 to vector<16x16xf32>
      %263 = arith.mulf %262, %261 : vector<16x16xf32>
      %264 = arith.addf %258, %263 : vector<16x16xf32>
      %c7_235 = arith.constant 7 : index
      %265 = memref.load %arg3[%c7_235] : memref<98xf32, #tpu.memory_space<smem>>
      %c0_236 = arith.constant 0 : index
      %c0_237 = arith.constant 0 : index
      %c1_238 = arith.constant 1 : index
      %c0_239 = arith.constant 0 : index
      %266 = vector.load %arg8[%c0_236, %c0_237, %c1_238, %c0_239] : memref<2x7x22x16xf32, #tpu.memory_space<vmem>>, vector<1x1x16x16xf32>
      %267 = vector.shape_cast %266 : vector<1x1x16x16xf32> to vector<16x16xf32>
      %268 = vector.broadcast %265 : f32 to vector<16x16xf32>
      %269 = arith.mulf %268, %267 : vector<16x16xf32>
      %270 = arith.addf %264, %269 : vector<16x16xf32>
      %c8_240 = arith.constant 8 : index
      %271 = memref.load %arg3[%c8_240] : memref<98xf32, #tpu.memory_space<smem>>
      %c0_241 = arith.constant 0 : index
      %c1_242 = arith.constant 1 : index
      %c1_243 = arith.constant 1 : index
      %c0_244 = arith.constant 0 : index
      %272 = vector.load %arg8[%c0_241, %c1_242, %c1_243, %c0_244] : memref<2x7x22x16xf32, #tpu.memory_space<vmem>>, vector<1x1x16x16xf32>
      %273 = vector.shape_cast %272 : vector<1x1x16x16xf32> to vector<16x16xf32>
      %274 = vector.broadcast %271 : f32 to vector<16x16xf32>
      %275 = arith.mulf %274, %273 : vector<16x16xf32>
      %276 = arith.addf %270, %275 : vector<16x16xf32>
      %c9_245 = arith.constant 9 : index
      %277 = memref.load %arg3[%c9_245] : memref<98xf32, #tpu.memory_space<smem>>
      %c0_246 = arith.constant 0 : index
      %c2_247 = arith.constant 2 : index
      %c1_248 = arith.constant 1 : index
      %c0_249 = arith.constant 0 : index
      %278 = vector.load %arg8[%c0_246, %c2_247, %c1_248, %c0_249] : memref<2x7x22x16xf32, #tpu.memory_space<vmem>>, vector<1x1x16x16xf32>
      %279 = vector.shape_cast %278 : vector<1x1x16x16xf32> to vector<16x16xf32>
      %280 = vector.broadcast %277 : f32 to vector<16x16xf32>
      %281 = arith.mulf %280, %279 : vector<16x16xf32>
      %282 = arith.addf %276, %281 : vector<16x16xf32>
      %c10_250 = arith.constant 10 : index
      %283 = memref.load %arg3[%c10_250] : memref<98xf32, #tpu.memory_space<smem>>
      %c0_251 = arith.constant 0 : index
      %c3_252 = arith.constant 3 : index
      %c1_253 = arith.constant 1 : index
      %c0_254 = arith.constant 0 : index
      %284 = vector.load %arg8[%c0_251, %c3_252, %c1_253, %c0_254] : memref<2x7x22x16xf32, #tpu.memory_space<vmem>>, vector<1x1x16x16xf32>
      %285 = vector.shape_cast %284 : vector<1x1x16x16xf32> to vector<16x16xf32>
      %286 = vector.broadcast %283 : f32 to vector<16x16xf32>
      %287 = arith.mulf %286, %285 : vector<16x16xf32>
      %288 = arith.addf %282, %287 : vector<16x16xf32>
      %c11_255 = arith.constant 11 : index
      %289 = memref.load %arg3[%c11_255] : memref<98xf32, #tpu.memory_space<smem>>
      %c0_256 = arith.constant 0 : index
      %c4_257 = arith.constant 4 : index
      %c1_258 = arith.constant 1 : index
      %c0_259 = arith.constant 0 : index
      %290 = vector.load %arg8[%c0_256, %c4_257, %c1_258, %c0_259] : memref<2x7x22x16xf32, #tpu.memory_space<vmem>>, vector<1x1x16x16xf32>
      %291 = vector.shape_cast %290 : vector<1x1x16x16xf32> to vector<16x16xf32>
      %292 = vector.broadcast %289 : f32 to vector<16x16xf32>
      %293 = arith.mulf %292, %291 : vector<16x16xf32>
      %294 = arith.addf %288, %293 : vector<16x16xf32>
      %c12_260 = arith.constant 12 : index
      %295 = memref.load %arg3[%c12_260] : memref<98xf32, #tpu.memory_space<smem>>
      %c0_261 = arith.constant 0 : index
      %c5_262 = arith.constant 5 : index
      %c1_263 = arith.constant 1 : index
      %c0_264 = arith.constant 0 : index
      %296 = vector.load %arg8[%c0_261, %c5_262, %c1_263, %c0_264] : memref<2x7x22x16xf32, #tpu.memory_space<vmem>>, vector<1x1x16x16xf32>
      %297 = vector.shape_cast %296 : vector<1x1x16x16xf32> to vector<16x16xf32>
      %298 = vector.broadcast %295 : f32 to vector<16x16xf32>
      %299 = arith.mulf %298, %297 : vector<16x16xf32>
      %300 = arith.addf %294, %299 : vector<16x16xf32>
      %c13_265 = arith.constant 13 : index
      %301 = memref.load %arg3[%c13_265] : memref<98xf32, #tpu.memory_space<smem>>
      %c0_266 = arith.constant 0 : index
      %c6_267 = arith.constant 6 : index
      %c1_268 = arith.constant 1 : index
      %c0_269 = arith.constant 0 : index
      %302 = vector.load %arg8[%c0_266, %c6_267, %c1_268, %c0_269] : memref<2x7x22x16xf32, #tpu.memory_space<vmem>>, vector<1x1x16x16xf32>
      %303 = vector.shape_cast %302 : vector<1x1x16x16xf32> to vector<16x16xf32>
      %304 = vector.broadcast %301 : f32 to vector<16x16xf32>
      %305 = arith.mulf %304, %303 : vector<16x16xf32>
      %306 = arith.addf %300, %305 : vector<16x16xf32>
      %c14_270 = arith.constant 14 : index
      %307 = memref.load %arg3[%c14_270] : memref<98xf32, #tpu.memory_space<smem>>
      %c0_271 = arith.constant 0 : index
      %c0_272 = arith.constant 0 : index
      %c2_273 = arith.constant 2 : index
      %c0_274 = arith.constant 0 : index
      %308 = vector.load %arg8[%c0_271, %c0_272, %c2_273, %c0_274] : memref<2x7x22x16xf32, #tpu.memory_space<vmem>>, vector<1x1x16x16xf32>
      %309 = vector.shape_cast %308 : vector<1x1x16x16xf32> to vector<16x16xf32>
      %310 = vector.broadcast %307 : f32 to vector<16x16xf32>
      %311 = arith.mulf %310, %309 : vector<16x16xf32>
      %312 = arith.addf %306, %311 : vector<16x16xf32>
      %c15_275 = arith.constant 15 : index
      %313 = memref.load %arg3[%c15_275] : memref<98xf32, #tpu.memory_space<smem>>
      %c0_276 = arith.constant 0 : index
      %c1_277 = arith.constant 1 : index
      %c2_278 = arith.constant 2 : index
      %c0_279 = arith.constant 0 : index
      %314 = vector.load %arg8[%c0_276, %c1_277, %c2_278, %c0_279] : memref<2x7x22x16xf32, #tpu.memory_space<vmem>>, vector<1x1x16x16xf32>
      %315 = vector.shape_cast %314 : vector<1x1x16x16xf32> to vector<16x16xf32>
      %316 = vector.broadcast %313 : f32 to vector<16x16xf32>
      %317 = arith.mulf %316, %315 : vector<16x16xf32>
      %318 = arith.addf %312, %317 : vector<16x16xf32>
      %c16_280 = arith.constant 16 : index
      %319 = memref.load %arg3[%c16_280] : memref<98xf32, #tpu.memory_space<smem>>
      %c0_281 = arith.constant 0 : index
      %c2_282 = arith.constant 2 : index
      %c2_283 = arith.constant 2 : index
      %c0_284 = arith.constant 0 : index
      %320 = vector.load %arg8[%c0_281, %c2_282, %c2_283, %c0_284] : memref<2x7x22x16xf32, #tpu.memory_space<vmem>>, vector<1x1x16x16xf32>
      %321 = vector.shape_cast %320 : vector<1x1x16x16xf32> to vector<16x16xf32>
      %322 = vector.broadcast %319 : f32 to vector<16x16xf32>
      %323 = arith.mulf %322, %321 : vector<16x16xf32>
      %324 = arith.addf %318, %323 : vector<16x16xf32>
      %c17_285 = arith.constant 17 : index
      %325 = memref.load %arg3[%c17_285] : memref<98xf32, #tpu.memory_space<smem>>
      %c0_286 = arith.constant 0 : index
      %c3_287 = arith.constant 3 : index
      %c2_288 = arith.constant 2 : index
      %c0_289 = arith.constant 0 : index
      %326 = vector.load %arg8[%c0_286, %c3_287, %c2_288, %c0_289] : memref<2x7x22x16xf32, #tpu.memory_space<vmem>>, vector<1x1x16x16xf32>
      %327 = vector.shape_cast %326 : vector<1x1x16x16xf32> to vector<16x16xf32>
      %328 = vector.broadcast %325 : f32 to vector<16x16xf32>
      %329 = arith.mulf %328, %327 : vector<16x16xf32>
      %330 = arith.addf %324, %329 : vector<16x16xf32>
      %c18_290 = arith.constant 18 : index
      %331 = memref.load %arg3[%c18_290] : memref<98xf32, #tpu.memory_space<smem>>
      %c0_291 = arith.constant 0 : index
      %c4_292 = arith.constant 4 : index
      %c2_293 = arith.constant 2 : index
      %c0_294 = arith.constant 0 : index
      %332 = vector.load %arg8[%c0_291, %c4_292, %c2_293, %c0_294] : memref<2x7x22x16xf32, #tpu.memory_space<vmem>>, vector<1x1x16x16xf32>
      %333 = vector.shape_cast %332 : vector<1x1x16x16xf32> to vector<16x16xf32>
      %334 = vector.broadcast %331 : f32 to vector<16x16xf32>
      %335 = arith.mulf %334, %333 : vector<16x16xf32>
      %336 = arith.addf %330, %335 : vector<16x16xf32>
      %c19 = arith.constant 19 : index
      %337 = memref.load %arg3[%c19] : memref<98xf32, #tpu.memory_space<smem>>
      %c0_295 = arith.constant 0 : index
      %c5_296 = arith.constant 5 : index
      %c2_297 = arith.constant 2 : index
      %c0_298 = arith.constant 0 : index
      %338 = vector.load %arg8[%c0_295, %c5_296, %c2_297, %c0_298] : memref<2x7x22x16xf32, #tpu.memory_space<vmem>>, vector<1x1x16x16xf32>
      %339 = vector.shape_cast %338 : vector<1x1x16x16xf32> to vector<16x16xf32>
      %340 = vector.broadcast %337 : f32 to vector<16x16xf32>
      %341 = arith.mulf %340, %339 : vector<16x16xf32>
      %342 = arith.addf %336, %341 : vector<16x16xf32>
      %c20 = arith.constant 20 : index
      %343 = memref.load %arg3[%c20] : memref<98xf32, #tpu.memory_space<smem>>
      %c0_299 = arith.constant 0 : index
      %c6_300 = arith.constant 6 : index
      %c2_301 = arith.constant 2 : index
      %c0_302 = arith.constant 0 : index
      %344 = vector.load %arg8[%c0_299, %c6_300, %c2_301, %c0_302] : memref<2x7x22x16xf32, #tpu.memory_space<vmem>>, vector<1x1x16x16xf32>
      %345 = vector.shape_cast %344 : vector<1x1x16x16xf32> to vector<16x16xf32>
      %346 = vector.broadcast %343 : f32 to vector<16x16xf32>
      %347 = arith.mulf %346, %345 : vector<16x16xf32>
      %348 = arith.addf %342, %347 : vector<16x16xf32>
      %c21 = arith.constant 21 : index
      %349 = memref.load %arg3[%c21] : memref<98xf32, #tpu.memory_space<smem>>
      %c0_303 = arith.constant 0 : index
      %c0_304 = arith.constant 0 : index
      %c3_305 = arith.constant 3 : index
      %c0_306 = arith.constant 0 : index
      %350 = vector.load %arg8[%c0_303, %c0_304, %c3_305, %c0_306] : memref<2x7x22x16xf32, #tpu.memory_space<vmem>>, vector<1x1x16x16xf32>
      %351 = vector.shape_cast %350 : vector<1x1x16x16xf32> to vector<16x16xf32>
      %352 = vector.broadcast %349 : f32 to vector<16x16xf32>
      %353 = arith.mulf %352, %351 : vector<16x16xf32>
      %354 = arith.addf %348, %353 : vector<16x16xf32>
      %c22 = arith.constant 22 : index
      %355 = memref.load %arg3[%c22] : memref<98xf32, #tpu.memory_space<smem>>
      %c0_307 = arith.constant 0 : index
      %c1_308 = arith.constant 1 : index
      %c3_309 = arith.constant 3 : index
      %c0_310 = arith.constant 0 : index
      %356 = vector.load %arg8[%c0_307, %c1_308, %c3_309, %c0_310] : memref<2x7x22x16xf32, #tpu.memory_space<vmem>>, vector<1x1x16x16xf32>
      %357 = vector.shape_cast %356 : vector<1x1x16x16xf32> to vector<16x16xf32>
      %358 = vector.broadcast %355 : f32 to vector<16x16xf32>
      %359 = arith.mulf %358, %357 : vector<16x16xf32>
      %360 = arith.addf %354, %359 : vector<16x16xf32>
      %c23 = arith.constant 23 : index
      %361 = memref.load %arg3[%c23] : memref<98xf32, #tpu.memory_space<smem>>
      %c0_311 = arith.constant 0 : index
      %c2_312 = arith.constant 2 : index
      %c3_313 = arith.constant 3 : index
      %c0_314 = arith.constant 0 : index
      %362 = vector.load %arg8[%c0_311, %c2_312, %c3_313, %c0_314] : memref<2x7x22x16xf32, #tpu.memory_space<vmem>>, vector<1x1x16x16xf32>
      %363 = vector.shape_cast %362 : vector<1x1x16x16xf32> to vector<16x16xf32>
      %364 = vector.broadcast %361 : f32 to vector<16x16xf32>
      %365 = arith.mulf %364, %363 : vector<16x16xf32>
      %366 = arith.addf %360, %365 : vector<16x16xf32>
      %c24 = arith.constant 24 : index
      %367 = memref.load %arg3[%c24] : memref<98xf32, #tpu.memory_space<smem>>
      %c0_315 = arith.constant 0 : index
      %c3_316 = arith.constant 3 : index
      %c3_317 = arith.constant 3 : index
      %c0_318 = arith.constant 0 : index
      %368 = vector.load %arg8[%c0_315, %c3_316, %c3_317, %c0_318] : memref<2x7x22x16xf32, #tpu.memory_space<vmem>>, vector<1x1x16x16xf32>
      %369 = vector.shape_cast %368 : vector<1x1x16x16xf32> to vector<16x16xf32>
      %370 = vector.broadcast %367 : f32 to vector<16x16xf32>
      %371 = arith.mulf %370, %369 : vector<16x16xf32>
      %372 = arith.addf %366, %371 : vector<16x16xf32>
      %c25 = arith.constant 25 : index
      %373 = memref.load %arg3[%c25] : memref<98xf32, #tpu.memory_space<smem>>
      %c0_319 = arith.constant 0 : index
      %c4_320 = arith.constant 4 : index
      %c3_321 = arith.constant 3 : index
      %c0_322 = arith.constant 0 : index
      %374 = vector.load %arg8[%c0_319, %c4_320, %c3_321, %c0_322] : memref<2x7x22x16xf32, #tpu.memory_space<vmem>>, vector<1x1x16x16xf32>
      %375 = vector.shape_cast %374 : vector<1x1x16x16xf32> to vector<16x16xf32>
      %376 = vector.broadcast %373 : f32 to vector<16x16xf32>
      %377 = arith.mulf %376, %375 : vector<16x16xf32>
      %378 = arith.addf %372, %377 : vector<16x16xf32>
      %c26 = arith.constant 26 : index
      %379 = memref.load %arg3[%c26] : memref<98xf32, #tpu.memory_space<smem>>
      %c0_323 = arith.constant 0 : index
      %c5_324 = arith.constant 5 : index
      %c3_325 = arith.constant 3 : index
      %c0_326 = arith.constant 0 : index
      %380 = vector.load %arg8[%c0_323, %c5_324, %c3_325, %c0_326] : memref<2x7x22x16xf32, #tpu.memory_space<vmem>>, vector<1x1x16x16xf32>
      %381 = vector.shape_cast %380 : vector<1x1x16x16xf32> to vector<16x16xf32>
      %382 = vector.broadcast %379 : f32 to vector<16x16xf32>
      %383 = arith.mulf %382, %381 : vector<16x16xf32>
      %384 = arith.addf %378, %383 : vector<16x16xf32>
      %c27 = arith.constant 27 : index
      %385 = memref.load %arg3[%c27] : memref<98xf32, #tpu.memory_space<smem>>
      %c0_327 = arith.constant 0 : index
      %c6_328 = arith.constant 6 : index
      %c3_329 = arith.constant 3 : index
      %c0_330 = arith.constant 0 : index
      %386 = vector.load %arg8[%c0_327, %c6_328, %c3_329, %c0_330] : memref<2x7x22x16xf32, #tpu.memory_space<vmem>>, vector<1x1x16x16xf32>
      %387 = vector.shape_cast %386 : vector<1x1x16x16xf32> to vector<16x16xf32>
      %388 = vector.broadcast %385 : f32 to vector<16x16xf32>
      %389 = arith.mulf %388, %387 : vector<16x16xf32>
      %390 = arith.addf %384, %389 : vector<16x16xf32>
      %c28 = arith.constant 28 : index
      %391 = memref.load %arg3[%c28] : memref<98xf32, #tpu.memory_space<smem>>
      %c0_331 = arith.constant 0 : index
      %c0_332 = arith.constant 0 : index
      %c4_333 = arith.constant 4 : index
      %c0_334 = arith.constant 0 : index
      %392 = vector.load %arg8[%c0_331, %c0_332, %c4_333, %c0_334] : memref<2x7x22x16xf32, #tpu.memory_space<vmem>>, vector<1x1x16x16xf32>
      %393 = vector.shape_cast %392 : vector<1x1x16x16xf32> to vector<16x16xf32>
      %394 = vector.broadcast %391 : f32 to vector<16x16xf32>
      %395 = arith.mulf %394, %393 : vector<16x16xf32>
      %396 = arith.addf %390, %395 : vector<16x16xf32>
      %c29 = arith.constant 29 : index
      %397 = memref.load %arg3[%c29] : memref<98xf32, #tpu.memory_space<smem>>
      %c0_335 = arith.constant 0 : index
      %c1_336 = arith.constant 1 : index
      %c4_337 = arith.constant 4 : index
      %c0_338 = arith.constant 0 : index
      %398 = vector.load %arg8[%c0_335, %c1_336, %c4_337, %c0_338] : memref<2x7x22x16xf32, #tpu.memory_space<vmem>>, vector<1x1x16x16xf32>
      %399 = vector.shape_cast %398 : vector<1x1x16x16xf32> to vector<16x16xf32>
      %400 = vector.broadcast %397 : f32 to vector<16x16xf32>
      %401 = arith.mulf %400, %399 : vector<16x16xf32>
      %402 = arith.addf %396, %401 : vector<16x16xf32>
      %c30 = arith.constant 30 : index
      %403 = memref.load %arg3[%c30] : memref<98xf32, #tpu.memory_space<smem>>
      %c0_339 = arith.constant 0 : index
      %c2_340 = arith.constant 2 : index
      %c4_341 = arith.constant 4 : index
      %c0_342 = arith.constant 0 : index
      %404 = vector.load %arg8[%c0_339, %c2_340, %c4_341, %c0_342] : memref<2x7x22x16xf32, #tpu.memory_space<vmem>>, vector<1x1x16x16xf32>
      %405 = vector.shape_cast %404 : vector<1x1x16x16xf32> to vector<16x16xf32>
      %406 = vector.broadcast %403 : f32 to vector<16x16xf32>
      %407 = arith.mulf %406, %405 : vector<16x16xf32>
      %408 = arith.addf %402, %407 : vector<16x16xf32>
      %c31 = arith.constant 31 : index
      %409 = memref.load %arg3[%c31] : memref<98xf32, #tpu.memory_space<smem>>
      %c0_343 = arith.constant 0 : index
      %c3_344 = arith.constant 3 : index
      %c4_345 = arith.constant 4 : index
      %c0_346 = arith.constant 0 : index
      %410 = vector.load %arg8[%c0_343, %c3_344, %c4_345, %c0_346] : memref<2x7x22x16xf32, #tpu.memory_space<vmem>>, vector<1x1x16x16xf32>
      %411 = vector.shape_cast %410 : vector<1x1x16x16xf32> to vector<16x16xf32>
      %412 = vector.broadcast %409 : f32 to vector<16x16xf32>
      %413 = arith.mulf %412, %411 : vector<16x16xf32>
      %414 = arith.addf %408, %413 : vector<16x16xf32>
      %c32 = arith.constant 32 : index
      %415 = memref.load %arg3[%c32] : memref<98xf32, #tpu.memory_space<smem>>
      %c0_347 = arith.constant 0 : index
      %c4_348 = arith.constant 4 : index
      %c4_349 = arith.constant 4 : index
      %c0_350 = arith.constant 0 : index
      %416 = vector.load %arg8[%c0_347, %c4_348, %c4_349, %c0_350] : memref<2x7x22x16xf32, #tpu.memory_space<vmem>>, vector<1x1x16x16xf32>
      %417 = vector.shape_cast %416 : vector<1x1x16x16xf32> to vector<16x16xf32>
      %418 = vector.broadcast %415 : f32 to vector<16x16xf32>
      %419 = arith.mulf %418, %417 : vector<16x16xf32>
      %420 = arith.addf %414, %419 : vector<16x16xf32>
      %c33 = arith.constant 33 : index
      %421 = memref.load %arg3[%c33] : memref<98xf32, #tpu.memory_space<smem>>
      %c0_351 = arith.constant 0 : index
      %c5_352 = arith.constant 5 : index
      %c4_353 = arith.constant 4 : index
      %c0_354 = arith.constant 0 : index
      %422 = vector.load %arg8[%c0_351, %c5_352, %c4_353, %c0_354] : memref<2x7x22x16xf32, #tpu.memory_space<vmem>>, vector<1x1x16x16xf32>
      %423 = vector.shape_cast %422 : vector<1x1x16x16xf32> to vector<16x16xf32>
      %424 = vector.broadcast %421 : f32 to vector<16x16xf32>
      %425 = arith.mulf %424, %423 : vector<16x16xf32>
      %426 = arith.addf %420, %425 : vector<16x16xf32>
      %c34 = arith.constant 34 : index
      %427 = memref.load %arg3[%c34] : memref<98xf32, #tpu.memory_space<smem>>
      %c0_355 = arith.constant 0 : index
      %c6_356 = arith.constant 6 : index
      %c4_357 = arith.constant 4 : index
      %c0_358 = arith.constant 0 : index
      %428 = vector.load %arg8[%c0_355, %c6_356, %c4_357, %c0_358] : memref<2x7x22x16xf32, #tpu.memory_space<vmem>>, vector<1x1x16x16xf32>
      %429 = vector.shape_cast %428 : vector<1x1x16x16xf32> to vector<16x16xf32>
      %430 = vector.broadcast %427 : f32 to vector<16x16xf32>
      %431 = arith.mulf %430, %429 : vector<16x16xf32>
      %432 = arith.addf %426, %431 : vector<16x16xf32>
      %c35 = arith.constant 35 : index
      %433 = memref.load %arg3[%c35] : memref<98xf32, #tpu.memory_space<smem>>
      %c0_359 = arith.constant 0 : index
      %c0_360 = arith.constant 0 : index
      %c5_361 = arith.constant 5 : index
      %c0_362 = arith.constant 0 : index
      %434 = vector.load %arg8[%c0_359, %c0_360, %c5_361, %c0_362] : memref<2x7x22x16xf32, #tpu.memory_space<vmem>>, vector<1x1x16x16xf32>
      %435 = vector.shape_cast %434 : vector<1x1x16x16xf32> to vector<16x16xf32>
      %436 = vector.broadcast %433 : f32 to vector<16x16xf32>
      %437 = arith.mulf %436, %435 : vector<16x16xf32>
      %438 = arith.addf %432, %437 : vector<16x16xf32>
      %c36 = arith.constant 36 : index
      %439 = memref.load %arg3[%c36] : memref<98xf32, #tpu.memory_space<smem>>
      %c0_363 = arith.constant 0 : index
      %c1_364 = arith.constant 1 : index
      %c5_365 = arith.constant 5 : index
      %c0_366 = arith.constant 0 : index
      %440 = vector.load %arg8[%c0_363, %c1_364, %c5_365, %c0_366] : memref<2x7x22x16xf32, #tpu.memory_space<vmem>>, vector<1x1x16x16xf32>
      %441 = vector.shape_cast %440 : vector<1x1x16x16xf32> to vector<16x16xf32>
      %442 = vector.broadcast %439 : f32 to vector<16x16xf32>
      %443 = arith.mulf %442, %441 : vector<16x16xf32>
      %444 = arith.addf %438, %443 : vector<16x16xf32>
      %c37 = arith.constant 37 : index
      %445 = memref.load %arg3[%c37] : memref<98xf32, #tpu.memory_space<smem>>
      %c0_367 = arith.constant 0 : index
      %c2_368 = arith.constant 2 : index
      %c5_369 = arith.constant 5 : index
      %c0_370 = arith.constant 0 : index
      %446 = vector.load %arg8[%c0_367, %c2_368, %c5_369, %c0_370] : memref<2x7x22x16xf32, #tpu.memory_space<vmem>>, vector<1x1x16x16xf32>
      %447 = vector.shape_cast %446 : vector<1x1x16x16xf32> to vector<16x16xf32>
      %448 = vector.broadcast %445 : f32 to vector<16x16xf32>
      %449 = arith.mulf %448, %447 : vector<16x16xf32>
      %450 = arith.addf %444, %449 : vector<16x16xf32>
      %c38 = arith.constant 38 : index
      %451 = memref.load %arg3[%c38] : memref<98xf32, #tpu.memory_space<smem>>
      %c0_371 = arith.constant 0 : index
      %c3_372 = arith.constant 3 : index
      %c5_373 = arith.constant 5 : index
      %c0_374 = arith.constant 0 : index
      %452 = vector.load %arg8[%c0_371, %c3_372, %c5_373, %c0_374] : memref<2x7x22x16xf32, #tpu.memory_space<vmem>>, vector<1x1x16x16xf32>
      %453 = vector.shape_cast %452 : vector<1x1x16x16xf32> to vector<16x16xf32>
      %454 = vector.broadcast %451 : f32 to vector<16x16xf32>
      %455 = arith.mulf %454, %453 : vector<16x16xf32>
      %456 = arith.addf %450, %455 : vector<16x16xf32>
      %c39 = arith.constant 39 : index
      %457 = memref.load %arg3[%c39] : memref<98xf32, #tpu.memory_space<smem>>
      %c0_375 = arith.constant 0 : index
      %c4_376 = arith.constant 4 : index
      %c5_377 = arith.constant 5 : index
      %c0_378 = arith.constant 0 : index
      %458 = vector.load %arg8[%c0_375, %c4_376, %c5_377, %c0_378] : memref<2x7x22x16xf32, #tpu.memory_space<vmem>>, vector<1x1x16x16xf32>
      %459 = vector.shape_cast %458 : vector<1x1x16x16xf32> to vector<16x16xf32>
      %460 = vector.broadcast %457 : f32 to vector<16x16xf32>
      %461 = arith.mulf %460, %459 : vector<16x16xf32>
      %462 = arith.addf %456, %461 : vector<16x16xf32>
      %c40 = arith.constant 40 : index
      %463 = memref.load %arg3[%c40] : memref<98xf32, #tpu.memory_space<smem>>
      %c0_379 = arith.constant 0 : index
      %c5_380 = arith.constant 5 : index
      %c5_381 = arith.constant 5 : index
      %c0_382 = arith.constant 0 : index
      %464 = vector.load %arg8[%c0_379, %c5_380, %c5_381, %c0_382] : memref<2x7x22x16xf32, #tpu.memory_space<vmem>>, vector<1x1x16x16xf32>
      %465 = vector.shape_cast %464 : vector<1x1x16x16xf32> to vector<16x16xf32>
      %466 = vector.broadcast %463 : f32 to vector<16x16xf32>
      %467 = arith.mulf %466, %465 : vector<16x16xf32>
      %468 = arith.addf %462, %467 : vector<16x16xf32>
      %c41 = arith.constant 41 : index
      %469 = memref.load %arg3[%c41] : memref<98xf32, #tpu.memory_space<smem>>
      %c0_383 = arith.constant 0 : index
      %c6_384 = arith.constant 6 : index
      %c5_385 = arith.constant 5 : index
      %c0_386 = arith.constant 0 : index
      %470 = vector.load %arg8[%c0_383, %c6_384, %c5_385, %c0_386] : memref<2x7x22x16xf32, #tpu.memory_space<vmem>>, vector<1x1x16x16xf32>
      %471 = vector.shape_cast %470 : vector<1x1x16x16xf32> to vector<16x16xf32>
      %472 = vector.broadcast %469 : f32 to vector<16x16xf32>
      %473 = arith.mulf %472, %471 : vector<16x16xf32>
      %474 = arith.addf %468, %473 : vector<16x16xf32>
      %c42 = arith.constant 42 : index
      %475 = memref.load %arg3[%c42] : memref<98xf32, #tpu.memory_space<smem>>
      %c0_387 = arith.constant 0 : index
      %c0_388 = arith.constant 0 : index
      %c6_389 = arith.constant 6 : index
      %c0_390 = arith.constant 0 : index
      %476 = vector.load %arg8[%c0_387, %c0_388, %c6_389, %c0_390] : memref<2x7x22x16xf32, #tpu.memory_space<vmem>>, vector<1x1x16x16xf32>
      %477 = vector.shape_cast %476 : vector<1x1x16x16xf32> to vector<16x16xf32>
      %478 = vector.broadcast %475 : f32 to vector<16x16xf32>
      %479 = arith.mulf %478, %477 : vector<16x16xf32>
      %480 = arith.addf %474, %479 : vector<16x16xf32>
      %c43 = arith.constant 43 : index
      %481 = memref.load %arg3[%c43] : memref<98xf32, #tpu.memory_space<smem>>
      %c0_391 = arith.constant 0 : index
      %c1_392 = arith.constant 1 : index
      %c6_393 = arith.constant 6 : index
      %c0_394 = arith.constant 0 : index
      %482 = vector.load %arg8[%c0_391, %c1_392, %c6_393, %c0_394] : memref<2x7x22x16xf32, #tpu.memory_space<vmem>>, vector<1x1x16x16xf32>
      %483 = vector.shape_cast %482 : vector<1x1x16x16xf32> to vector<16x16xf32>
      %484 = vector.broadcast %481 : f32 to vector<16x16xf32>
      %485 = arith.mulf %484, %483 : vector<16x16xf32>
      %486 = arith.addf %480, %485 : vector<16x16xf32>
      %c44 = arith.constant 44 : index
      %487 = memref.load %arg3[%c44] : memref<98xf32, #tpu.memory_space<smem>>
      %c0_395 = arith.constant 0 : index
      %c2_396 = arith.constant 2 : index
      %c6_397 = arith.constant 6 : index
      %c0_398 = arith.constant 0 : index
      %488 = vector.load %arg8[%c0_395, %c2_396, %c6_397, %c0_398] : memref<2x7x22x16xf32, #tpu.memory_space<vmem>>, vector<1x1x16x16xf32>
      %489 = vector.shape_cast %488 : vector<1x1x16x16xf32> to vector<16x16xf32>
      %490 = vector.broadcast %487 : f32 to vector<16x16xf32>
      %491 = arith.mulf %490, %489 : vector<16x16xf32>
      %492 = arith.addf %486, %491 : vector<16x16xf32>
      %c45 = arith.constant 45 : index
      %493 = memref.load %arg3[%c45] : memref<98xf32, #tpu.memory_space<smem>>
      %c0_399 = arith.constant 0 : index
      %c3_400 = arith.constant 3 : index
      %c6_401 = arith.constant 6 : index
      %c0_402 = arith.constant 0 : index
      %494 = vector.load %arg8[%c0_399, %c3_400, %c6_401, %c0_402] : memref<2x7x22x16xf32, #tpu.memory_space<vmem>>, vector<1x1x16x16xf32>
      %495 = vector.shape_cast %494 : vector<1x1x16x16xf32> to vector<16x16xf32>
      %496 = vector.broadcast %493 : f32 to vector<16x16xf32>
      %497 = arith.mulf %496, %495 : vector<16x16xf32>
      %498 = arith.addf %492, %497 : vector<16x16xf32>
      %c46 = arith.constant 46 : index
      %499 = memref.load %arg3[%c46] : memref<98xf32, #tpu.memory_space<smem>>
      %c0_403 = arith.constant 0 : index
      %c4_404 = arith.constant 4 : index
      %c6_405 = arith.constant 6 : index
      %c0_406 = arith.constant 0 : index
      %500 = vector.load %arg8[%c0_403, %c4_404, %c6_405, %c0_406] : memref<2x7x22x16xf32, #tpu.memory_space<vmem>>, vector<1x1x16x16xf32>
      %501 = vector.shape_cast %500 : vector<1x1x16x16xf32> to vector<16x16xf32>
      %502 = vector.broadcast %499 : f32 to vector<16x16xf32>
      %503 = arith.mulf %502, %501 : vector<16x16xf32>
      %504 = arith.addf %498, %503 : vector<16x16xf32>
      %c47 = arith.constant 47 : index
      %505 = memref.load %arg3[%c47] : memref<98xf32, #tpu.memory_space<smem>>
      %c0_407 = arith.constant 0 : index
      %c5_408 = arith.constant 5 : index
      %c6_409 = arith.constant 6 : index
      %c0_410 = arith.constant 0 : index
      %506 = vector.load %arg8[%c0_407, %c5_408, %c6_409, %c0_410] : memref<2x7x22x16xf32, #tpu.memory_space<vmem>>, vector<1x1x16x16xf32>
      %507 = vector.shape_cast %506 : vector<1x1x16x16xf32> to vector<16x16xf32>
      %508 = vector.broadcast %505 : f32 to vector<16x16xf32>
      %509 = arith.mulf %508, %507 : vector<16x16xf32>
      %510 = arith.addf %504, %509 : vector<16x16xf32>
      %c48 = arith.constant 48 : index
      %511 = memref.load %arg3[%c48] : memref<98xf32, #tpu.memory_space<smem>>
      %c0_411 = arith.constant 0 : index
      %c6_412 = arith.constant 6 : index
      %c6_413 = arith.constant 6 : index
      %c0_414 = arith.constant 0 : index
      %512 = vector.load %arg8[%c0_411, %c6_412, %c6_413, %c0_414] : memref<2x7x22x16xf32, #tpu.memory_space<vmem>>, vector<1x1x16x16xf32>
      %513 = vector.shape_cast %512 : vector<1x1x16x16xf32> to vector<16x16xf32>
      %514 = vector.broadcast %511 : f32 to vector<16x16xf32>
      %515 = arith.mulf %514, %513 : vector<16x16xf32>
      %516 = arith.addf %510, %515 : vector<16x16xf32>
      %c49 = arith.constant 49 : index
      %517 = memref.load %arg3[%c49] : memref<98xf32, #tpu.memory_space<smem>>
      %c1_415 = arith.constant 1 : index
      %c0_416 = arith.constant 0 : index
      %c0_417 = arith.constant 0 : index
      %c0_418 = arith.constant 0 : index
      %518 = vector.load %arg8[%c1_415, %c0_416, %c0_417, %c0_418] : memref<2x7x22x16xf32, #tpu.memory_space<vmem>>, vector<1x1x16x16xf32>
      %519 = vector.shape_cast %518 : vector<1x1x16x16xf32> to vector<16x16xf32>
      %520 = vector.broadcast %517 : f32 to vector<16x16xf32>
      %521 = arith.mulf %520, %519 : vector<16x16xf32>
      %522 = arith.addf %516, %521 : vector<16x16xf32>
      %c50 = arith.constant 50 : index
      %523 = memref.load %arg3[%c50] : memref<98xf32, #tpu.memory_space<smem>>
      %c1_419 = arith.constant 1 : index
      %c1_420 = arith.constant 1 : index
      %c0_421 = arith.constant 0 : index
      %c0_422 = arith.constant 0 : index
      %524 = vector.load %arg8[%c1_419, %c1_420, %c0_421, %c0_422] : memref<2x7x22x16xf32, #tpu.memory_space<vmem>>, vector<1x1x16x16xf32>
      %525 = vector.shape_cast %524 : vector<1x1x16x16xf32> to vector<16x16xf32>
      %526 = vector.broadcast %523 : f32 to vector<16x16xf32>
      %527 = arith.mulf %526, %525 : vector<16x16xf32>
      %528 = arith.addf %522, %527 : vector<16x16xf32>
      %c51 = arith.constant 51 : index
      %529 = memref.load %arg3[%c51] : memref<98xf32, #tpu.memory_space<smem>>
      %c1_423 = arith.constant 1 : index
      %c2_424 = arith.constant 2 : index
      %c0_425 = arith.constant 0 : index
      %c0_426 = arith.constant 0 : index
      %530 = vector.load %arg8[%c1_423, %c2_424, %c0_425, %c0_426] : memref<2x7x22x16xf32, #tpu.memory_space<vmem>>, vector<1x1x16x16xf32>
      %531 = vector.shape_cast %530 : vector<1x1x16x16xf32> to vector<16x16xf32>
      %532 = vector.broadcast %529 : f32 to vector<16x16xf32>
      %533 = arith.mulf %532, %531 : vector<16x16xf32>
      %534 = arith.addf %528, %533 : vector<16x16xf32>
      %c52 = arith.constant 52 : index
      %535 = memref.load %arg3[%c52] : memref<98xf32, #tpu.memory_space<smem>>
      %c1_427 = arith.constant 1 : index
      %c3_428 = arith.constant 3 : index
      %c0_429 = arith.constant 0 : index
      %c0_430 = arith.constant 0 : index
      %536 = vector.load %arg8[%c1_427, %c3_428, %c0_429, %c0_430] : memref<2x7x22x16xf32, #tpu.memory_space<vmem>>, vector<1x1x16x16xf32>
      %537 = vector.shape_cast %536 : vector<1x1x16x16xf32> to vector<16x16xf32>
      %538 = vector.broadcast %535 : f32 to vector<16x16xf32>
      %539 = arith.mulf %538, %537 : vector<16x16xf32>
      %540 = arith.addf %534, %539 : vector<16x16xf32>
      %c53 = arith.constant 53 : index
      %541 = memref.load %arg3[%c53] : memref<98xf32, #tpu.memory_space<smem>>
      %c1_431 = arith.constant 1 : index
      %c4_432 = arith.constant 4 : index
      %c0_433 = arith.constant 0 : index
      %c0_434 = arith.constant 0 : index
      %542 = vector.load %arg8[%c1_431, %c4_432, %c0_433, %c0_434] : memref<2x7x22x16xf32, #tpu.memory_space<vmem>>, vector<1x1x16x16xf32>
      %543 = vector.shape_cast %542 : vector<1x1x16x16xf32> to vector<16x16xf32>
      %544 = vector.broadcast %541 : f32 to vector<16x16xf32>
      %545 = arith.mulf %544, %543 : vector<16x16xf32>
      %546 = arith.addf %540, %545 : vector<16x16xf32>
      %c54 = arith.constant 54 : index
      %547 = memref.load %arg3[%c54] : memref<98xf32, #tpu.memory_space<smem>>
      %c1_435 = arith.constant 1 : index
      %c5_436 = arith.constant 5 : index
      %c0_437 = arith.constant 0 : index
      %c0_438 = arith.constant 0 : index
      %548 = vector.load %arg8[%c1_435, %c5_436, %c0_437, %c0_438] : memref<2x7x22x16xf32, #tpu.memory_space<vmem>>, vector<1x1x16x16xf32>
      %549 = vector.shape_cast %548 : vector<1x1x16x16xf32> to vector<16x16xf32>
      %550 = vector.broadcast %547 : f32 to vector<16x16xf32>
      %551 = arith.mulf %550, %549 : vector<16x16xf32>
      %552 = arith.addf %546, %551 : vector<16x16xf32>
      %c55 = arith.constant 55 : index
      %553 = memref.load %arg3[%c55] : memref<98xf32, #tpu.memory_space<smem>>
      %c1_439 = arith.constant 1 : index
      %c6_440 = arith.constant 6 : index
      %c0_441 = arith.constant 0 : index
      %c0_442 = arith.constant 0 : index
      %554 = vector.load %arg8[%c1_439, %c6_440, %c0_441, %c0_442] : memref<2x7x22x16xf32, #tpu.memory_space<vmem>>, vector<1x1x16x16xf32>
      %555 = vector.shape_cast %554 : vector<1x1x16x16xf32> to vector<16x16xf32>
      %556 = vector.broadcast %553 : f32 to vector<16x16xf32>
      %557 = arith.mulf %556, %555 : vector<16x16xf32>
      %558 = arith.addf %552, %557 : vector<16x16xf32>
      %c56 = arith.constant 56 : index
      %559 = memref.load %arg3[%c56] : memref<98xf32, #tpu.memory_space<smem>>
      %c1_443 = arith.constant 1 : index
      %c0_444 = arith.constant 0 : index
      %c1_445 = arith.constant 1 : index
      %c0_446 = arith.constant 0 : index
      %560 = vector.load %arg8[%c1_443, %c0_444, %c1_445, %c0_446] : memref<2x7x22x16xf32, #tpu.memory_space<vmem>>, vector<1x1x16x16xf32>
      %561 = vector.shape_cast %560 : vector<1x1x16x16xf32> to vector<16x16xf32>
      %562 = vector.broadcast %559 : f32 to vector<16x16xf32>
      %563 = arith.mulf %562, %561 : vector<16x16xf32>
      %564 = arith.addf %558, %563 : vector<16x16xf32>
      %c57 = arith.constant 57 : index
      %565 = memref.load %arg3[%c57] : memref<98xf32, #tpu.memory_space<smem>>
      %c1_447 = arith.constant 1 : index
      %c1_448 = arith.constant 1 : index
      %c1_449 = arith.constant 1 : index
      %c0_450 = arith.constant 0 : index
      %566 = vector.load %arg8[%c1_447, %c1_448, %c1_449, %c0_450] : memref<2x7x22x16xf32, #tpu.memory_space<vmem>>, vector<1x1x16x16xf32>
      %567 = vector.shape_cast %566 : vector<1x1x16x16xf32> to vector<16x16xf32>
      %568 = vector.broadcast %565 : f32 to vector<16x16xf32>
      %569 = arith.mulf %568, %567 : vector<16x16xf32>
      %570 = arith.addf %564, %569 : vector<16x16xf32>
      %c58 = arith.constant 58 : index
      %571 = memref.load %arg3[%c58] : memref<98xf32, #tpu.memory_space<smem>>
      %c1_451 = arith.constant 1 : index
      %c2_452 = arith.constant 2 : index
      %c1_453 = arith.constant 1 : index
      %c0_454 = arith.constant 0 : index
      %572 = vector.load %arg8[%c1_451, %c2_452, %c1_453, %c0_454] : memref<2x7x22x16xf32, #tpu.memory_space<vmem>>, vector<1x1x16x16xf32>
      %573 = vector.shape_cast %572 : vector<1x1x16x16xf32> to vector<16x16xf32>
      %574 = vector.broadcast %571 : f32 to vector<16x16xf32>
      %575 = arith.mulf %574, %573 : vector<16x16xf32>
      %576 = arith.addf %570, %575 : vector<16x16xf32>
      %c59 = arith.constant 59 : index
      %577 = memref.load %arg3[%c59] : memref<98xf32, #tpu.memory_space<smem>>
      %c1_455 = arith.constant 1 : index
      %c3_456 = arith.constant 3 : index
      %c1_457 = arith.constant 1 : index
      %c0_458 = arith.constant 0 : index
      %578 = vector.load %arg8[%c1_455, %c3_456, %c1_457, %c0_458] : memref<2x7x22x16xf32, #tpu.memory_space<vmem>>, vector<1x1x16x16xf32>
      %579 = vector.shape_cast %578 : vector<1x1x16x16xf32> to vector<16x16xf32>
      %580 = vector.broadcast %577 : f32 to vector<16x16xf32>
      %581 = arith.mulf %580, %579 : vector<16x16xf32>
      %582 = arith.addf %576, %581 : vector<16x16xf32>
      %c60 = arith.constant 60 : index
      %583 = memref.load %arg3[%c60] : memref<98xf32, #tpu.memory_space<smem>>
      %c1_459 = arith.constant 1 : index
      %c4_460 = arith.constant 4 : index
      %c1_461 = arith.constant 1 : index
      %c0_462 = arith.constant 0 : index
      %584 = vector.load %arg8[%c1_459, %c4_460, %c1_461, %c0_462] : memref<2x7x22x16xf32, #tpu.memory_space<vmem>>, vector<1x1x16x16xf32>
      %585 = vector.shape_cast %584 : vector<1x1x16x16xf32> to vector<16x16xf32>
      %586 = vector.broadcast %583 : f32 to vector<16x16xf32>
      %587 = arith.mulf %586, %585 : vector<16x16xf32>
      %588 = arith.addf %582, %587 : vector<16x16xf32>
      %c61 = arith.constant 61 : index
      %589 = memref.load %arg3[%c61] : memref<98xf32, #tpu.memory_space<smem>>
      %c1_463 = arith.constant 1 : index
      %c5_464 = arith.constant 5 : index
      %c1_465 = arith.constant 1 : index
      %c0_466 = arith.constant 0 : index
      %590 = vector.load %arg8[%c1_463, %c5_464, %c1_465, %c0_466] : memref<2x7x22x16xf32, #tpu.memory_space<vmem>>, vector<1x1x16x16xf32>
      %591 = vector.shape_cast %590 : vector<1x1x16x16xf32> to vector<16x16xf32>
      %592 = vector.broadcast %589 : f32 to vector<16x16xf32>
      %593 = arith.mulf %592, %591 : vector<16x16xf32>
      %594 = arith.addf %588, %593 : vector<16x16xf32>
      %c62 = arith.constant 62 : index
      %595 = memref.load %arg3[%c62] : memref<98xf32, #tpu.memory_space<smem>>
      %c1_467 = arith.constant 1 : index
      %c6_468 = arith.constant 6 : index
      %c1_469 = arith.constant 1 : index
      %c0_470 = arith.constant 0 : index
      %596 = vector.load %arg8[%c1_467, %c6_468, %c1_469, %c0_470] : memref<2x7x22x16xf32, #tpu.memory_space<vmem>>, vector<1x1x16x16xf32>
      %597 = vector.shape_cast %596 : vector<1x1x16x16xf32> to vector<16x16xf32>
      %598 = vector.broadcast %595 : f32 to vector<16x16xf32>
      %599 = arith.mulf %598, %597 : vector<16x16xf32>
      %600 = arith.addf %594, %599 : vector<16x16xf32>
      %c63 = arith.constant 63 : index
      %601 = memref.load %arg3[%c63] : memref<98xf32, #tpu.memory_space<smem>>
      %c1_471 = arith.constant 1 : index
      %c0_472 = arith.constant 0 : index
      %c2_473 = arith.constant 2 : index
      %c0_474 = arith.constant 0 : index
      %602 = vector.load %arg8[%c1_471, %c0_472, %c2_473, %c0_474] : memref<2x7x22x16xf32, #tpu.memory_space<vmem>>, vector<1x1x16x16xf32>
      %603 = vector.shape_cast %602 : vector<1x1x16x16xf32> to vector<16x16xf32>
      %604 = vector.broadcast %601 : f32 to vector<16x16xf32>
      %605 = arith.mulf %604, %603 : vector<16x16xf32>
      %606 = arith.addf %600, %605 : vector<16x16xf32>
      %c64 = arith.constant 64 : index
      %607 = memref.load %arg3[%c64] : memref<98xf32, #tpu.memory_space<smem>>
      %c1_475 = arith.constant 1 : index
      %c1_476 = arith.constant 1 : index
      %c2_477 = arith.constant 2 : index
      %c0_478 = arith.constant 0 : index
      %608 = vector.load %arg8[%c1_475, %c1_476, %c2_477, %c0_478] : memref<2x7x22x16xf32, #tpu.memory_space<vmem>>, vector<1x1x16x16xf32>
      %609 = vector.shape_cast %608 : vector<1x1x16x16xf32> to vector<16x16xf32>
      %610 = vector.broadcast %607 : f32 to vector<16x16xf32>
      %611 = arith.mulf %610, %609 : vector<16x16xf32>
      %612 = arith.addf %606, %611 : vector<16x16xf32>
      %c65 = arith.constant 65 : index
      %613 = memref.load %arg3[%c65] : memref<98xf32, #tpu.memory_space<smem>>
      %c1_479 = arith.constant 1 : index
      %c2_480 = arith.constant 2 : index
      %c2_481 = arith.constant 2 : index
      %c0_482 = arith.constant 0 : index
      %614 = vector.load %arg8[%c1_479, %c2_480, %c2_481, %c0_482] : memref<2x7x22x16xf32, #tpu.memory_space<vmem>>, vector<1x1x16x16xf32>
      %615 = vector.shape_cast %614 : vector<1x1x16x16xf32> to vector<16x16xf32>
      %616 = vector.broadcast %613 : f32 to vector<16x16xf32>
      %617 = arith.mulf %616, %615 : vector<16x16xf32>
      %618 = arith.addf %612, %617 : vector<16x16xf32>
      %c66 = arith.constant 66 : index
      %619 = memref.load %arg3[%c66] : memref<98xf32, #tpu.memory_space<smem>>
      %c1_483 = arith.constant 1 : index
      %c3_484 = arith.constant 3 : index
      %c2_485 = arith.constant 2 : index
      %c0_486 = arith.constant 0 : index
      %620 = vector.load %arg8[%c1_483, %c3_484, %c2_485, %c0_486] : memref<2x7x22x16xf32, #tpu.memory_space<vmem>>, vector<1x1x16x16xf32>
      %621 = vector.shape_cast %620 : vector<1x1x16x16xf32> to vector<16x16xf32>
      %622 = vector.broadcast %619 : f32 to vector<16x16xf32>
      %623 = arith.mulf %622, %621 : vector<16x16xf32>
      %624 = arith.addf %618, %623 : vector<16x16xf32>
      %c67 = arith.constant 67 : index
      %625 = memref.load %arg3[%c67] : memref<98xf32, #tpu.memory_space<smem>>
      %c1_487 = arith.constant 1 : index
      %c4_488 = arith.constant 4 : index
      %c2_489 = arith.constant 2 : index
      %c0_490 = arith.constant 0 : index
      %626 = vector.load %arg8[%c1_487, %c4_488, %c2_489, %c0_490] : memref<2x7x22x16xf32, #tpu.memory_space<vmem>>, vector<1x1x16x16xf32>
      %627 = vector.shape_cast %626 : vector<1x1x16x16xf32> to vector<16x16xf32>
      %628 = vector.broadcast %625 : f32 to vector<16x16xf32>
      %629 = arith.mulf %628, %627 : vector<16x16xf32>
      %630 = arith.addf %624, %629 : vector<16x16xf32>
      %c68 = arith.constant 68 : index
      %631 = memref.load %arg3[%c68] : memref<98xf32, #tpu.memory_space<smem>>
      %c1_491 = arith.constant 1 : index
      %c5_492 = arith.constant 5 : index
      %c2_493 = arith.constant 2 : index
      %c0_494 = arith.constant 0 : index
      %632 = vector.load %arg8[%c1_491, %c5_492, %c2_493, %c0_494] : memref<2x7x22x16xf32, #tpu.memory_space<vmem>>, vector<1x1x16x16xf32>
      %633 = vector.shape_cast %632 : vector<1x1x16x16xf32> to vector<16x16xf32>
      %634 = vector.broadcast %631 : f32 to vector<16x16xf32>
      %635 = arith.mulf %634, %633 : vector<16x16xf32>
      %636 = arith.addf %630, %635 : vector<16x16xf32>
      %c69 = arith.constant 69 : index
      %637 = memref.load %arg3[%c69] : memref<98xf32, #tpu.memory_space<smem>>
      %c1_495 = arith.constant 1 : index
      %c6_496 = arith.constant 6 : index
      %c2_497 = arith.constant 2 : index
      %c0_498 = arith.constant 0 : index
      %638 = vector.load %arg8[%c1_495, %c6_496, %c2_497, %c0_498] : memref<2x7x22x16xf32, #tpu.memory_space<vmem>>, vector<1x1x16x16xf32>
      %639 = vector.shape_cast %638 : vector<1x1x16x16xf32> to vector<16x16xf32>
      %640 = vector.broadcast %637 : f32 to vector<16x16xf32>
      %641 = arith.mulf %640, %639 : vector<16x16xf32>
      %642 = arith.addf %636, %641 : vector<16x16xf32>
      %c70 = arith.constant 70 : index
      %643 = memref.load %arg3[%c70] : memref<98xf32, #tpu.memory_space<smem>>
      %c1_499 = arith.constant 1 : index
      %c0_500 = arith.constant 0 : index
      %c3_501 = arith.constant 3 : index
      %c0_502 = arith.constant 0 : index
      %644 = vector.load %arg8[%c1_499, %c0_500, %c3_501, %c0_502] : memref<2x7x22x16xf32, #tpu.memory_space<vmem>>, vector<1x1x16x16xf32>
      %645 = vector.shape_cast %644 : vector<1x1x16x16xf32> to vector<16x16xf32>
      %646 = vector.broadcast %643 : f32 to vector<16x16xf32>
      %647 = arith.mulf %646, %645 : vector<16x16xf32>
      %648 = arith.addf %642, %647 : vector<16x16xf32>
      %c71 = arith.constant 71 : index
      %649 = memref.load %arg3[%c71] : memref<98xf32, #tpu.memory_space<smem>>
      %c1_503 = arith.constant 1 : index
      %c1_504 = arith.constant 1 : index
      %c3_505 = arith.constant 3 : index
      %c0_506 = arith.constant 0 : index
      %650 = vector.load %arg8[%c1_503, %c1_504, %c3_505, %c0_506] : memref<2x7x22x16xf32, #tpu.memory_space<vmem>>, vector<1x1x16x16xf32>
      %651 = vector.shape_cast %650 : vector<1x1x16x16xf32> to vector<16x16xf32>
      %652 = vector.broadcast %649 : f32 to vector<16x16xf32>
      %653 = arith.mulf %652, %651 : vector<16x16xf32>
      %654 = arith.addf %648, %653 : vector<16x16xf32>
      %c72 = arith.constant 72 : index
      %655 = memref.load %arg3[%c72] : memref<98xf32, #tpu.memory_space<smem>>
      %c1_507 = arith.constant 1 : index
      %c2_508 = arith.constant 2 : index
      %c3_509 = arith.constant 3 : index
      %c0_510 = arith.constant 0 : index
      %656 = vector.load %arg8[%c1_507, %c2_508, %c3_509, %c0_510] : memref<2x7x22x16xf32, #tpu.memory_space<vmem>>, vector<1x1x16x16xf32>
      %657 = vector.shape_cast %656 : vector<1x1x16x16xf32> to vector<16x16xf32>
      %658 = vector.broadcast %655 : f32 to vector<16x16xf32>
      %659 = arith.mulf %658, %657 : vector<16x16xf32>
      %660 = arith.addf %654, %659 : vector<16x16xf32>
      %c73 = arith.constant 73 : index
      %661 = memref.load %arg3[%c73] : memref<98xf32, #tpu.memory_space<smem>>
      %c1_511 = arith.constant 1 : index
      %c3_512 = arith.constant 3 : index
      %c3_513 = arith.constant 3 : index
      %c0_514 = arith.constant 0 : index
      %662 = vector.load %arg8[%c1_511, %c3_512, %c3_513, %c0_514] : memref<2x7x22x16xf32, #tpu.memory_space<vmem>>, vector<1x1x16x16xf32>
      %663 = vector.shape_cast %662 : vector<1x1x16x16xf32> to vector<16x16xf32>
      %664 = vector.broadcast %661 : f32 to vector<16x16xf32>
      %665 = arith.mulf %664, %663 : vector<16x16xf32>
      %666 = arith.addf %660, %665 : vector<16x16xf32>
      %c74 = arith.constant 74 : index
      %667 = memref.load %arg3[%c74] : memref<98xf32, #tpu.memory_space<smem>>
      %c1_515 = arith.constant 1 : index
      %c4_516 = arith.constant 4 : index
      %c3_517 = arith.constant 3 : index
      %c0_518 = arith.constant 0 : index
      %668 = vector.load %arg8[%c1_515, %c4_516, %c3_517, %c0_518] : memref<2x7x22x16xf32, #tpu.memory_space<vmem>>, vector<1x1x16x16xf32>
      %669 = vector.shape_cast %668 : vector<1x1x16x16xf32> to vector<16x16xf32>
      %670 = vector.broadcast %667 : f32 to vector<16x16xf32>
      %671 = arith.mulf %670, %669 : vector<16x16xf32>
      %672 = arith.addf %666, %671 : vector<16x16xf32>
      %c75 = arith.constant 75 : index
      %673 = memref.load %arg3[%c75] : memref<98xf32, #tpu.memory_space<smem>>
      %c1_519 = arith.constant 1 : index
      %c5_520 = arith.constant 5 : index
      %c3_521 = arith.constant 3 : index
      %c0_522 = arith.constant 0 : index
      %674 = vector.load %arg8[%c1_519, %c5_520, %c3_521, %c0_522] : memref<2x7x22x16xf32, #tpu.memory_space<vmem>>, vector<1x1x16x16xf32>
      %675 = vector.shape_cast %674 : vector<1x1x16x16xf32> to vector<16x16xf32>
      %676 = vector.broadcast %673 : f32 to vector<16x16xf32>
      %677 = arith.mulf %676, %675 : vector<16x16xf32>
      %678 = arith.addf %672, %677 : vector<16x16xf32>
      %c76 = arith.constant 76 : index
      %679 = memref.load %arg3[%c76] : memref<98xf32, #tpu.memory_space<smem>>
      %c1_523 = arith.constant 1 : index
      %c6_524 = arith.constant 6 : index
      %c3_525 = arith.constant 3 : index
      %c0_526 = arith.constant 0 : index
      %680 = vector.load %arg8[%c1_523, %c6_524, %c3_525, %c0_526] : memref<2x7x22x16xf32, #tpu.memory_space<vmem>>, vector<1x1x16x16xf32>
      %681 = vector.shape_cast %680 : vector<1x1x16x16xf32> to vector<16x16xf32>
      %682 = vector.broadcast %679 : f32 to vector<16x16xf32>
      %683 = arith.mulf %682, %681 : vector<16x16xf32>
      %684 = arith.addf %678, %683 : vector<16x16xf32>
      %c77 = arith.constant 77 : index
      %685 = memref.load %arg3[%c77] : memref<98xf32, #tpu.memory_space<smem>>
      %c1_527 = arith.constant 1 : index
      %c0_528 = arith.constant 0 : index
      %c4_529 = arith.constant 4 : index
      %c0_530 = arith.constant 0 : index
      %686 = vector.load %arg8[%c1_527, %c0_528, %c4_529, %c0_530] : memref<2x7x22x16xf32, #tpu.memory_space<vmem>>, vector<1x1x16x16xf32>
      %687 = vector.shape_cast %686 : vector<1x1x16x16xf32> to vector<16x16xf32>
      %688 = vector.broadcast %685 : f32 to vector<16x16xf32>
      %689 = arith.mulf %688, %687 : vector<16x16xf32>
      %690 = arith.addf %684, %689 : vector<16x16xf32>
      %c78 = arith.constant 78 : index
      %691 = memref.load %arg3[%c78] : memref<98xf32, #tpu.memory_space<smem>>
      %c1_531 = arith.constant 1 : index
      %c1_532 = arith.constant 1 : index
      %c4_533 = arith.constant 4 : index
      %c0_534 = arith.constant 0 : index
      %692 = vector.load %arg8[%c1_531, %c1_532, %c4_533, %c0_534] : memref<2x7x22x16xf32, #tpu.memory_space<vmem>>, vector<1x1x16x16xf32>
      %693 = vector.shape_cast %692 : vector<1x1x16x16xf32> to vector<16x16xf32>
      %694 = vector.broadcast %691 : f32 to vector<16x16xf32>
      %695 = arith.mulf %694, %693 : vector<16x16xf32>
      %696 = arith.addf %690, %695 : vector<16x16xf32>
      %c79 = arith.constant 79 : index
      %697 = memref.load %arg3[%c79] : memref<98xf32, #tpu.memory_space<smem>>
      %c1_535 = arith.constant 1 : index
      %c2_536 = arith.constant 2 : index
      %c4_537 = arith.constant 4 : index
      %c0_538 = arith.constant 0 : index
      %698 = vector.load %arg8[%c1_535, %c2_536, %c4_537, %c0_538] : memref<2x7x22x16xf32, #tpu.memory_space<vmem>>, vector<1x1x16x16xf32>
      %699 = vector.shape_cast %698 : vector<1x1x16x16xf32> to vector<16x16xf32>
      %700 = vector.broadcast %697 : f32 to vector<16x16xf32>
      %701 = arith.mulf %700, %699 : vector<16x16xf32>
      %702 = arith.addf %696, %701 : vector<16x16xf32>
      %c80 = arith.constant 80 : index
      %703 = memref.load %arg3[%c80] : memref<98xf32, #tpu.memory_space<smem>>
      %c1_539 = arith.constant 1 : index
      %c3_540 = arith.constant 3 : index
      %c4_541 = arith.constant 4 : index
      %c0_542 = arith.constant 0 : index
      %704 = vector.load %arg8[%c1_539, %c3_540, %c4_541, %c0_542] : memref<2x7x22x16xf32, #tpu.memory_space<vmem>>, vector<1x1x16x16xf32>
      %705 = vector.shape_cast %704 : vector<1x1x16x16xf32> to vector<16x16xf32>
      %706 = vector.broadcast %703 : f32 to vector<16x16xf32>
      %707 = arith.mulf %706, %705 : vector<16x16xf32>
      %708 = arith.addf %702, %707 : vector<16x16xf32>
      %c81 = arith.constant 81 : index
      %709 = memref.load %arg3[%c81] : memref<98xf32, #tpu.memory_space<smem>>
      %c1_543 = arith.constant 1 : index
      %c4_544 = arith.constant 4 : index
      %c4_545 = arith.constant 4 : index
      %c0_546 = arith.constant 0 : index
      %710 = vector.load %arg8[%c1_543, %c4_544, %c4_545, %c0_546] : memref<2x7x22x16xf32, #tpu.memory_space<vmem>>, vector<1x1x16x16xf32>
      %711 = vector.shape_cast %710 : vector<1x1x16x16xf32> to vector<16x16xf32>
      %712 = vector.broadcast %709 : f32 to vector<16x16xf32>
      %713 = arith.mulf %712, %711 : vector<16x16xf32>
      %714 = arith.addf %708, %713 : vector<16x16xf32>
      %c82 = arith.constant 82 : index
      %715 = memref.load %arg3[%c82] : memref<98xf32, #tpu.memory_space<smem>>
      %c1_547 = arith.constant 1 : index
      %c5_548 = arith.constant 5 : index
      %c4_549 = arith.constant 4 : index
      %c0_550 = arith.constant 0 : index
      %716 = vector.load %arg8[%c1_547, %c5_548, %c4_549, %c0_550] : memref<2x7x22x16xf32, #tpu.memory_space<vmem>>, vector<1x1x16x16xf32>
      %717 = vector.shape_cast %716 : vector<1x1x16x16xf32> to vector<16x16xf32>
      %718 = vector.broadcast %715 : f32 to vector<16x16xf32>
      %719 = arith.mulf %718, %717 : vector<16x16xf32>
      %720 = arith.addf %714, %719 : vector<16x16xf32>
      %c83 = arith.constant 83 : index
      %721 = memref.load %arg3[%c83] : memref<98xf32, #tpu.memory_space<smem>>
      %c1_551 = arith.constant 1 : index
      %c6_552 = arith.constant 6 : index
      %c4_553 = arith.constant 4 : index
      %c0_554 = arith.constant 0 : index
      %722 = vector.load %arg8[%c1_551, %c6_552, %c4_553, %c0_554] : memref<2x7x22x16xf32, #tpu.memory_space<vmem>>, vector<1x1x16x16xf32>
      %723 = vector.shape_cast %722 : vector<1x1x16x16xf32> to vector<16x16xf32>
      %724 = vector.broadcast %721 : f32 to vector<16x16xf32>
      %725 = arith.mulf %724, %723 : vector<16x16xf32>
      %726 = arith.addf %720, %725 : vector<16x16xf32>
      %c84 = arith.constant 84 : index
      %727 = memref.load %arg3[%c84] : memref<98xf32, #tpu.memory_space<smem>>
      %c1_555 = arith.constant 1 : index
      %c0_556 = arith.constant 0 : index
      %c5_557 = arith.constant 5 : index
      %c0_558 = arith.constant 0 : index
      %728 = vector.load %arg8[%c1_555, %c0_556, %c5_557, %c0_558] : memref<2x7x22x16xf32, #tpu.memory_space<vmem>>, vector<1x1x16x16xf32>
      %729 = vector.shape_cast %728 : vector<1x1x16x16xf32> to vector<16x16xf32>
      %730 = vector.broadcast %727 : f32 to vector<16x16xf32>
      %731 = arith.mulf %730, %729 : vector<16x16xf32>
      %732 = arith.addf %726, %731 : vector<16x16xf32>
      %c85 = arith.constant 85 : index
      %733 = memref.load %arg3[%c85] : memref<98xf32, #tpu.memory_space<smem>>
      %c1_559 = arith.constant 1 : index
      %c1_560 = arith.constant 1 : index
      %c5_561 = arith.constant 5 : index
      %c0_562 = arith.constant 0 : index
      %734 = vector.load %arg8[%c1_559, %c1_560, %c5_561, %c0_562] : memref<2x7x22x16xf32, #tpu.memory_space<vmem>>, vector<1x1x16x16xf32>
      %735 = vector.shape_cast %734 : vector<1x1x16x16xf32> to vector<16x16xf32>
      %736 = vector.broadcast %733 : f32 to vector<16x16xf32>
      %737 = arith.mulf %736, %735 : vector<16x16xf32>
      %738 = arith.addf %732, %737 : vector<16x16xf32>
      %c86 = arith.constant 86 : index
      %739 = memref.load %arg3[%c86] : memref<98xf32, #tpu.memory_space<smem>>
      %c1_563 = arith.constant 1 : index
      %c2_564 = arith.constant 2 : index
      %c5_565 = arith.constant 5 : index
      %c0_566 = arith.constant 0 : index
      %740 = vector.load %arg8[%c1_563, %c2_564, %c5_565, %c0_566] : memref<2x7x22x16xf32, #tpu.memory_space<vmem>>, vector<1x1x16x16xf32>
      %741 = vector.shape_cast %740 : vector<1x1x16x16xf32> to vector<16x16xf32>
      %742 = vector.broadcast %739 : f32 to vector<16x16xf32>
      %743 = arith.mulf %742, %741 : vector<16x16xf32>
      %744 = arith.addf %738, %743 : vector<16x16xf32>
      %c87 = arith.constant 87 : index
      %745 = memref.load %arg3[%c87] : memref<98xf32, #tpu.memory_space<smem>>
      %c1_567 = arith.constant 1 : index
      %c3_568 = arith.constant 3 : index
      %c5_569 = arith.constant 5 : index
      %c0_570 = arith.constant 0 : index
      %746 = vector.load %arg8[%c1_567, %c3_568, %c5_569, %c0_570] : memref<2x7x22x16xf32, #tpu.memory_space<vmem>>, vector<1x1x16x16xf32>
      %747 = vector.shape_cast %746 : vector<1x1x16x16xf32> to vector<16x16xf32>
      %748 = vector.broadcast %745 : f32 to vector<16x16xf32>
      %749 = arith.mulf %748, %747 : vector<16x16xf32>
      %750 = arith.addf %744, %749 : vector<16x16xf32>
      %c88 = arith.constant 88 : index
      %751 = memref.load %arg3[%c88] : memref<98xf32, #tpu.memory_space<smem>>
      %c1_571 = arith.constant 1 : index
      %c4_572 = arith.constant 4 : index
      %c5_573 = arith.constant 5 : index
      %c0_574 = arith.constant 0 : index
      %752 = vector.load %arg8[%c1_571, %c4_572, %c5_573, %c0_574] : memref<2x7x22x16xf32, #tpu.memory_space<vmem>>, vector<1x1x16x16xf32>
      %753 = vector.shape_cast %752 : vector<1x1x16x16xf32> to vector<16x16xf32>
      %754 = vector.broadcast %751 : f32 to vector<16x16xf32>
      %755 = arith.mulf %754, %753 : vector<16x16xf32>
      %756 = arith.addf %750, %755 : vector<16x16xf32>
      %c89 = arith.constant 89 : index
      %757 = memref.load %arg3[%c89] : memref<98xf32, #tpu.memory_space<smem>>
      %c1_575 = arith.constant 1 : index
      %c5_576 = arith.constant 5 : index
      %c5_577 = arith.constant 5 : index
      %c0_578 = arith.constant 0 : index
      %758 = vector.load %arg8[%c1_575, %c5_576, %c5_577, %c0_578] : memref<2x7x22x16xf32, #tpu.memory_space<vmem>>, vector<1x1x16x16xf32>
      %759 = vector.shape_cast %758 : vector<1x1x16x16xf32> to vector<16x16xf32>
      %760 = vector.broadcast %757 : f32 to vector<16x16xf32>
      %761 = arith.mulf %760, %759 : vector<16x16xf32>
      %762 = arith.addf %756, %761 : vector<16x16xf32>
      %c90 = arith.constant 90 : index
      %763 = memref.load %arg3[%c90] : memref<98xf32, #tpu.memory_space<smem>>
      %c1_579 = arith.constant 1 : index
      %c6_580 = arith.constant 6 : index
      %c5_581 = arith.constant 5 : index
      %c0_582 = arith.constant 0 : index
      %764 = vector.load %arg8[%c1_579, %c6_580, %c5_581, %c0_582] : memref<2x7x22x16xf32, #tpu.memory_space<vmem>>, vector<1x1x16x16xf32>
      %765 = vector.shape_cast %764 : vector<1x1x16x16xf32> to vector<16x16xf32>
      %766 = vector.broadcast %763 : f32 to vector<16x16xf32>
      %767 = arith.mulf %766, %765 : vector<16x16xf32>
      %768 = arith.addf %762, %767 : vector<16x16xf32>
      %c91 = arith.constant 91 : index
      %769 = memref.load %arg3[%c91] : memref<98xf32, #tpu.memory_space<smem>>
      %c1_583 = arith.constant 1 : index
      %c0_584 = arith.constant 0 : index
      %c6_585 = arith.constant 6 : index
      %c0_586 = arith.constant 0 : index
      %770 = vector.load %arg8[%c1_583, %c0_584, %c6_585, %c0_586] : memref<2x7x22x16xf32, #tpu.memory_space<vmem>>, vector<1x1x16x16xf32>
      %771 = vector.shape_cast %770 : vector<1x1x16x16xf32> to vector<16x16xf32>
      %772 = vector.broadcast %769 : f32 to vector<16x16xf32>
      %773 = arith.mulf %772, %771 : vector<16x16xf32>
      %774 = arith.addf %768, %773 : vector<16x16xf32>
      %c92 = arith.constant 92 : index
      %775 = memref.load %arg3[%c92] : memref<98xf32, #tpu.memory_space<smem>>
      %c1_587 = arith.constant 1 : index
      %c1_588 = arith.constant 1 : index
      %c6_589 = arith.constant 6 : index
      %c0_590 = arith.constant 0 : index
      %776 = vector.load %arg8[%c1_587, %c1_588, %c6_589, %c0_590] : memref<2x7x22x16xf32, #tpu.memory_space<vmem>>, vector<1x1x16x16xf32>
      %777 = vector.shape_cast %776 : vector<1x1x16x16xf32> to vector<16x16xf32>
      %778 = vector.broadcast %775 : f32 to vector<16x16xf32>
      %779 = arith.mulf %778, %777 : vector<16x16xf32>
      %780 = arith.addf %774, %779 : vector<16x16xf32>
      %c93 = arith.constant 93 : index
      %781 = memref.load %arg3[%c93] : memref<98xf32, #tpu.memory_space<smem>>
      %c1_591 = arith.constant 1 : index
      %c2_592 = arith.constant 2 : index
      %c6_593 = arith.constant 6 : index
      %c0_594 = arith.constant 0 : index
      %782 = vector.load %arg8[%c1_591, %c2_592, %c6_593, %c0_594] : memref<2x7x22x16xf32, #tpu.memory_space<vmem>>, vector<1x1x16x16xf32>
      %783 = vector.shape_cast %782 : vector<1x1x16x16xf32> to vector<16x16xf32>
      %784 = vector.broadcast %781 : f32 to vector<16x16xf32>
      %785 = arith.mulf %784, %783 : vector<16x16xf32>
      %786 = arith.addf %780, %785 : vector<16x16xf32>
      %c94 = arith.constant 94 : index
      %787 = memref.load %arg3[%c94] : memref<98xf32, #tpu.memory_space<smem>>
      %c1_595 = arith.constant 1 : index
      %c3_596 = arith.constant 3 : index
      %c6_597 = arith.constant 6 : index
      %c0_598 = arith.constant 0 : index
      %788 = vector.load %arg8[%c1_595, %c3_596, %c6_597, %c0_598] : memref<2x7x22x16xf32, #tpu.memory_space<vmem>>, vector<1x1x16x16xf32>
      %789 = vector.shape_cast %788 : vector<1x1x16x16xf32> to vector<16x16xf32>
      %790 = vector.broadcast %787 : f32 to vector<16x16xf32>
      %791 = arith.mulf %790, %789 : vector<16x16xf32>
      %792 = arith.addf %786, %791 : vector<16x16xf32>
      %c95 = arith.constant 95 : index
      %793 = memref.load %arg3[%c95] : memref<98xf32, #tpu.memory_space<smem>>
      %c1_599 = arith.constant 1 : index
      %c4_600 = arith.constant 4 : index
      %c6_601 = arith.constant 6 : index
      %c0_602 = arith.constant 0 : index
      %794 = vector.load %arg8[%c1_599, %c4_600, %c6_601, %c0_602] : memref<2x7x22x16xf32, #tpu.memory_space<vmem>>, vector<1x1x16x16xf32>
      %795 = vector.shape_cast %794 : vector<1x1x16x16xf32> to vector<16x16xf32>
      %796 = vector.broadcast %793 : f32 to vector<16x16xf32>
      %797 = arith.mulf %796, %795 : vector<16x16xf32>
      %798 = arith.addf %792, %797 : vector<16x16xf32>
      %c96 = arith.constant 96 : index
      %799 = memref.load %arg3[%c96] : memref<98xf32, #tpu.memory_space<smem>>
      %c1_603 = arith.constant 1 : index
      %c5_604 = arith.constant 5 : index
      %c6_605 = arith.constant 6 : index
      %c0_606 = arith.constant 0 : index
      %800 = vector.load %arg8[%c1_603, %c5_604, %c6_605, %c0_606] : memref<2x7x22x16xf32, #tpu.memory_space<vmem>>, vector<1x1x16x16xf32>
      %801 = vector.shape_cast %800 : vector<1x1x16x16xf32> to vector<16x16xf32>
      %802 = vector.broadcast %799 : f32 to vector<16x16xf32>
      %803 = arith.mulf %802, %801 : vector<16x16xf32>
      %804 = arith.addf %798, %803 : vector<16x16xf32>
      %c97 = arith.constant 97 : index
      %805 = memref.load %arg3[%c97] : memref<98xf32, #tpu.memory_space<smem>>
      %c1_607 = arith.constant 1 : index
      %c6_608 = arith.constant 6 : index
      %c6_609 = arith.constant 6 : index
      %c0_610 = arith.constant 0 : index
      %806 = vector.load %arg8[%c1_607, %c6_608, %c6_609, %c0_610] : memref<2x7x22x16xf32, #tpu.memory_space<vmem>>, vector<1x1x16x16xf32>
      %807 = vector.shape_cast %806 : vector<1x1x16x16xf32> to vector<16x16xf32>
      %808 = vector.broadcast %805 : f32 to vector<16x16xf32>
      %809 = arith.mulf %808, %807 : vector<16x16xf32>
      %810 = arith.addf %804, %809 : vector<16x16xf32>
      %811 = arith.negf %810 : vector<16x16xf32>
      %812 = math.exp %811 : vector<16x16xf32>
      %cst_611 = arith.constant 1.000000e+00 : f32
      %813 = vector.broadcast %cst_611 : f32 to vector<16x16xf32>
      %814 = arith.addf %813, %812 : vector<16x16xf32>
      %815 = arith.divf %813, %814 : vector<16x16xf32>
      %c0_612 = arith.constant 0 : index
      %c0_613 = arith.constant 0 : index
      %c0_614 = arith.constant 0 : index
      %c0_615 = arith.constant 0 : index
      %816 = vector.load %arg4[%c0_612, %c0_613, %c0_614, %c0_615] : memref<1x1x16x16xf32, #tpu.memory_space<vmem>>, vector<1x1x16x16xf32>
      %817 = vector.shape_cast %816 : vector<1x1x16x16xf32> to vector<16x16xf32>
      %818 = vector.shape_cast %815 : vector<16x16xf32> to vector<1x1x16x16xf32>
      tpu.vector_store %arg4[%c0_612, %c0_613, %c0_614, %c0_615], %818 {strides = array<i32>} : memref<1x1x16x16xf32, #tpu.memory_space<vmem>>, vector<1x1x16x16xf32>,
    } else {
    }
    return
  }
  func.func @transform_0(%arg0: i32, %arg1: i32) -> (i32, i32, i32) {
    %c0_i32 = arith.constant 0 : i32
    %c0_i32_0 = arith.constant 0 : i32
    return %arg0, %arg1, %c0_i32 : i32, i32, i32
  }
  func.func @transform_1(%arg0: i32, %arg1: i32) -> i32 {
    %c0_i32 = arith.constant 0 : i32
    %c0_i32_0 = arith.constant 0 : i32
    return %c0_i32 : i32
  }
  func.func @transform_2(%arg0: i32, %arg1: i32) -> (i32, i32, i32, i32) {
    %c0_i32 = arith.constant 0 : i32
    %c0_i32_0 = arith.constant 0 : i32
    %c0_i32_1 = arith.constant 0 : i32
    %c0_i32_2 = arith.constant 0 : i32
    return %arg0, %c0_i32, %c0_i32_0, %c0_i32_1 : i32, i32, i32, i32
  }
}

</mosaic_0001>

<llo_original>
// kernel: spatial_attention_forward.1
$region0: #{spatial_attention_forward.1}
  #allocation0 [shape = 'u32[]', space=smem, size = 0x4, offset = 0x4, fixed_abs, tag = 'smem constant byte address 0x4 - core index']
  #allocation1 [shape = 'u32[144,128]{1,0:T(1,128)}', space=vmem, size = 0x12000, scoped, tag = 'internal scratch']
  #allocation2 [shape = 'f32[1,256]{1,0:T(1,128)}', space=vmem, size = 0x400, scoped, tag = 'scratch operand']
  #allocation3 [shape = 'f32[1,256]{1,0:T(1,128)}', space=vmem, size = 0x400, scoped, tag = 'scratch operand']
  #allocation4 [shape = 'f32[2,22,22]{2,1,0:T(8,128)}', space=vmem, size = 0x6000, scoped, tag = 'scratch operand']
  #allocation5 [shape = 'f32[2,7,22,16]{3,2,1,0:T(8,128)}', space=vmem, size = 0x2a000, scoped, tag = 'scratch operand']
  %s0 = inlined_call_operand.vmem [shape: f32[2,64,256], index: 0, kind: input, shape index: {}]
  %s1 = inlined_call_operand.vmem [shape: f32[98], index: 1, kind: input, shape index: {}]
  %s2 = inlined_call_operand.hbm [shape: f32[2,1,16,16], index: 2, kind: output, shape index: {}]
  %s3 = sld [smem:[#allocation0]]
  $region53: #{spatial_attention_forward.1} parent=0
    _
  %s5 = ssub.s32 1, %s3
  %s6 = scalar_select 0, %s5, %s3
  $region1: #{spatial_attention_forward.1} parent=0
    #allocation6 [shape = 'u8[512]{0}', space=smem, size = 0x200, scoped, tag = 'input window, operand 1, single buffered']
    #allocation7 [shape = 's32[2]{0}', space=sflag, size = 0x8, scoped, tag = 'scoped memory for spatial_attention_forward.1']
    #allocation8 [shape = 's32[2]{0}', space=sflag, size = 0x8, scoped, tag = 'scoped memory for spatial_attention_forward.1']
    #allocation9 [shape = 'u8[16384]{0}', space=vmem, size = 0x4000, scoped, tag = 'output window, operand 0']
    %7 = vsyncpa [#allocation8], 0
    %8 = vsyncpa [#allocation7], 0
    %s9 = scalar_lea.sflag [#allocation7], 1
    %10 = vsyncpa %s9, 0
    loop: start=0, step=1, limit=4
    $region2: #{spatial_attention_forward.1} parent=1 // loop_pre_header
      _
    $region3: #{spatial_attention_forward.1} parent=1 // loop_header
      %s12 = sphi 0, %s16
      %p13 = scmp.ge.s32.totalorder %s12, 4
      %s19 = sphi 0, %s31
      %s20 = sphi 0, %s27
      %s21 = sphi 0, %s19
      %s22 = sphi 0, %s20
      %s23 = sphi 0, %s21
      %s24 = sphi 0, %s22
      %s36 = sphi 0, %s38
      %s39 = sphi 0, %s36
      %s40 = sphi 0, %s39
      %s56 = sphi 0, %s40
      %s60 = sphi 0, %s60
      %s62 = sphi 0, %s60
      %s63 = sphi 0, %s62
      %s77 = sphi 0, %s63
      %s83 = sphi 0, %s85
      %s86 = sphi 0, %s83
      %s87 = sphi 0, %s86
      %s103 = sphi 0, %s87
    $region4: #{spatial_attention_forward.1} parent=1 // loop_header_branch
      %15 = sbr.rel (%p13) target = $region8
    $region5: #{spatial_attention_forward.1} parent=1 // loop_body
      %s17 = ssub.s32 %s12, 1
      %s18 = ssub.s32 %s12, 2
      %s25 = sadd.s32 1, %s20
      %p26 = scmp.ge.s32.totalorder %s25, 1
      %s27 = scalar_select %p26, 0, %s25
      %s28 = sadd.s32 1, %s19
      %s29 = scalar_select %p26, %s28, %s19
      %p30 = scmp.ge.s32.totalorder %s29, 2
      %s31 = scalar_select %p30, 0, %s29
      %s32 = ssub.s32 %s19, %s31
      %s33 = ssub.s32 %s20, %s27
      %s34 = sor.u32 %s32, %s33
      %p35 = scmp.eq.s32.totalorder %s34, 0
      %s37 = sadd.s32 %s36, 1
      %s38 = scalar_select %p35, %s36, %s37
      %p41 = pneg %p35
      %p42 = scmp.eq.s32.totalorder %s12, 1
      %p43 = por %p41, %p42
      %p44 = scmp.ne.s32.totalorder %s36, %s39
      %p45 = scmp.eq.s32.totalorder %s12, 0
      %p46 = por %p44, %p45
      %p47 = scmp.ne.s32.totalorder %s36, %s39
      %p48 = scmp.eq.s32.totalorder %s17, 1
      %p49 = por %p47, %p48
      %p50 = scmp.ne.s32.totalorder %s39, %s40
      %p51 = scmp.eq.s32.totalorder %s17, 0
      %p52 = por %p50, %p51
      %p53 = scmp.ne.s32.totalorder %s39, %s40
      %p54 = scmp.eq.s32.totalorder %s18, 1
      %p55 = por %p53, %p54
      %p57 = scmp.ne.s32.totalorder %s40, %s56
      %p58 = scmp.eq.s32.totalorder %s18, 0
      %p59 = por %p57, %p58
      %s61 = sadd.s32 %s60, 1
      %p64 = scmp.eq.s32.totalorder %s12, 1
      %p65 = scmp.ne.s32.totalorder %s60, %s62
      %p66 = scmp.eq.s32.totalorder %s12, 0
      %p67 = por %p65, %p66
      %p68 = scmp.ne.s32.totalorder %s60, %s62
      %p69 = scmp.eq.s32.totalorder %s17, 1
      %p70 = por %p68, %p69
      %p71 = scmp.ne.s32.totalorder %s62, %s63
      %p72 = scmp.eq.s32.totalorder %s17, 0
      %p73 = por %p71, %p72
      %p74 = scmp.ne.s32.totalorder %s62, %s63
      %p75 = scmp.eq.s32.totalorder %s18, 1
      %p76 = por %p74, %p75
      %p78 = scmp.ne.s32.totalorder %s63, %s77
      %p79 = scmp.eq.s32.totalorder %s18, 0
      %p80 = por %p78, %p79
      %s81 = ssub.s32 %s19, %s31
      %p82 = scmp.eq.s32.totalorder %s81, 0
      %s84 = sadd.s32 %s83, 1
      %s85 = scalar_select %p82, %s83, %s84
      %p88 = pneg %p82
      %p89 = scmp.eq.s32.totalorder %s12, 1
      %p90 = por %p88, %p89
      %p91 = scmp.ne.s32.totalorder %s83, %s86
      %p92 = scmp.eq.s32.totalorder %s12, 0
      %p93 = por %p91, %p92
      %p94 = scmp.ne.s32.totalorder %s83, %s86
      %p95 = scmp.eq.s32.totalorder %s17, 1
      %p96 = por %p94, %p95
      %p97 = scmp.ne.s32.totalorder %s86, %s87
      %p98 = scmp.eq.s32.totalorder %s17, 0
      %p99 = por %p97, %p98
      %p100 = scmp.ne.s32.totalorder %s86, %s87
      %p101 = scmp.eq.s32.totalorder %s18, 1
      %p102 = por %p100, %p101
      %p104 = scmp.ne.s32.totalorder %s87, %s103
      %p105 = scmp.eq.s32.totalorder %s18, 0
      %p106 = por %p104, %p105
      %p107 = scmp.le.s32.totalorder 1, %s12
      %p108 = scmp.lt.s32.totalorder %s12, 3
      %p109 = pnand %p107, %p108
      %p110 = pneg %p109
      // Predicated region
      $region9: #{spatial_attention_forward.1} parent=5 // pred_check
        _
      $region10: #{spatial_attention_forward.1} parent=5 // pred_check_branch
        %112 = sbr.rel (%p109) target = $region12
      $region11: #{spatial_attention_forward.1} parent=5 // pred_region
        %s113 = ssub.s32 %s12, 1
        // Predicated region
        $region13: #{spatial_attention_forward.1} parent=11 // pred_check
          %p114 = pneg %p73
        $region14: #{spatial_attention_forward.1} parent=11 // pred_check_branch
          %116 = sbr.rel (%p114) target = $region16
        $region15: #{spatial_attention_forward.1} parent=11 // pred_region
          %s118 = ssub.s32 16, 16
          %119 = vsyncadd [#allocation8], %s118
          %s121 = sshll.u32 %s1, 4
          %s122 = int_to_ptr.vmem [resolvable:$true] %s121
          %124 = dma.vmem_to_smem %s122, 16, [#allocation6], [#allocation8]
        $region16: #{spatial_attention_forward.1} parent=11 // pred_fallthru
          _
      $region12: #{spatial_attention_forward.1} parent=5 // pred_fallthru
        _
      %p125 = scmp.lt.s32.totalorder %s12, 2
      // Predicated region
      $region17: #{spatial_attention_forward.1} parent=5 // pred_check
        %p126 = pneg %p125
      $region18: #{spatial_attention_forward.1} parent=5 // pred_check_branch
        %128 = sbr.rel (%p126) target = $region20
      $region19: #{spatial_attention_forward.1} parent=5 // pred_region
        // Predicated region
        $region21: #{spatial_attention_forward.1} parent=19 // pred_check
          %p129 = pneg %p46
        $region22: #{spatial_attention_forward.1} parent=19 // pred_check_branch
          %131 = sbr.rel (%p129) target = $region24
        $region23: #{spatial_attention_forward.1} parent=19 // pred_region
          %s132 = smul.u32 8, %s20
          %p133 = scmp.lt.s32.totalorder %s19, 1
          %s134 = scalar_select %p133, %s19, 1
          %p135 = scmp.lt.s32.totalorder %s132, 7
          %s136 = scalar_select %p135, %s132, 7
          %s137 = smul.addr %s136, 2
          %s138 = smul.addr %s134, 16
          %s139 = sadd.s32 %s137, %s138
          %s140 = smul.addr %s139, 8
          %s141 = scalar_lea.vmem %s0, %s140
          %s142 = smul.u32 8, %s20
        $region24: #{spatial_attention_forward.1} parent=19 // pred_fallthru
          _
      $region20: #{spatial_attention_forward.1} parent=5 // pred_fallthru
        _
      %p143 = scmp.le.s32.totalorder 1, %s12
      %p144 = scmp.lt.s32.totalorder %s12, 3
      %p145 = pnand %p143, %p144
      %p146 = pneg %p145
      // Predicated region
      $region25: #{spatial_attention_forward.1} parent=5 // pred_check
        _
      $region26: #{spatial_attention_forward.1} parent=5 // pred_check_branch
        %148 = sbr.rel (%p145) target = $region28
      $region27: #{spatial_attention_forward.1} parent=5 // pred_region
        %s149 = ssub.s32 %s12, 1
        // Predicated region
        $region29: #{spatial_attention_forward.1} parent=27 // pred_check
          %p150 = pneg %p73
        $region30: #{spatial_attention_forward.1} parent=27 // pred_check_branch
          %152 = sbr.rel (%p150) target = $region32
        $region31: #{spatial_attention_forward.1} parent=27 // pred_region
          %153 = dma.done [#allocation8], 16
        $region32: #{spatial_attention_forward.1} parent=27 // pred_fallthru
          _
        %154 = sfence
        %s155 = smul.u32 8, %s22
        %p156 = scmp.lt.s32.totalorder %s21, 1
        %s157 = scalar_select %p156, %s21, 1
        %p158 = scmp.lt.s32.totalorder %s155, 7
        %s159 = scalar_select %p158, %s155, 7
        %s160 = smul.addr %s159, 2
        %s161 = smul.addr %s157, 16
        %s162 = sadd.s32 %s160, %s161
        %s163 = smul.addr %s162, 8
        %s164 = scalar_lea.vmem %s0, %s163
        %p165 = pneg %p52
        %p166 = pneg %p49
        %p167 = pneg %p73
        %p168 = pneg %p70
        %p169 = pneg %p99
        %p170 = pneg %p96
        %s171 = sand.u32 %s86, 1
        %s172 = scalar_lea.sflag [#allocation7], %s171
        %s173 = sand.u32 %s86, 1
        %s174 = smul.addr %s173, 16
        %s175 = scalar_lea.vmem [#allocation9], %s174
        %s176 = smul.u32 8, %s22
        %p177 = scmp.lt.s32.totalorder %s21, 1
        %s178 = scalar_select %p177, %s21, 1
        %p179 = scmp.lt.s32.totalorder %s176, 7
        %s180 = scalar_select %p179, %s176, 7
        %s181 = smul.addr %s180, 2
        %s182 = smul.addr %s178, 16
        %s183 = sadd.s32 %s181, %s182
        %s184 = smul.addr %s183, 8
        %s185 = scalar_lea.vmem %s0, %s184
        %s186 = smul.u32 8, %s22
        %p187 = scmp.eq.s32.totalorder %s22, 0
        // Predicated region
        $region33: #{spatial_attention_forward.1} parent=27 // pred_check
          %p188 = pneg %p187
        $region34: #{spatial_attention_forward.1} parent=27 // pred_check_branch
          %190 = sbr.rel (%p188) target = $region36
        $region35: #{spatial_attention_forward.1} parent=27 // pred_region
          %v191 = vlaneseq
          %vm192 = vcmp.ge.s32.totalorder %v191, 0
          %vm193 = vcmp.lt.s32.totalorder %v191, 256
          %vm194 = vmand %vm192, %vm193
          %195 = vst.msk [vmem:[#allocation2] sm:$0x3] %vm194, 0.0
          %196 = vst.msk [vmem:[#allocation3] sm:$0x3] %vm194, -inf
        $region36: #{spatial_attention_forward.1} parent=27 // pred_fallthru
          _
        %v197 = vld [vmem:[%s185] sm:$0xff]
        %v198 = vld [vmem:[%s185 + $0x8] sm:$0xff]
        %v199 = vld [vmem:[%s185 + $0x10] sm:$0xff]
        %v200 = vld [vmem:[%s185 + $0x18] sm:$0xff]
        %v201 = vld [vmem:[%s185 + $0x20] sm:$0xff]
        %v202 = vld [vmem:[%s185 + $0x28] sm:$0xff]
        %v203 = vld [vmem:[%s185 + $0x30] sm:$0xff]
        %v204 = vld [vmem:[%s185 + $0x38] sm:$0xff]
        %v205 = vld [vmem:[%s185 + $0x40] sm:$0xff]
        %v206 = vld [vmem:[%s185 + $0x48] sm:$0xff]
        %v207 = vld [vmem:[%s185 + $0x50] sm:$0xff]
        %v208 = vld [vmem:[%s185 + $0x58] sm:$0xff]
        %v209 = vld [vmem:[%s185 + $0x60] sm:$0xff]
        %v210 = vld [vmem:[%s185 + $0x68] sm:$0xff]
        %v211 = vld [vmem:[%s185 + $0x70] sm:$0xff]
        %v212 = vld [vmem:[%s185 + $0x78] sm:$0xff]
        %v213 = vld [vmem:[#allocation2] sm:$0x3]
        %v214 = vadd.f32 %v197, %v199
        %v215 = vadd.f32 %v214, %v201
        %v216 = vadd.f32 %v215, %v203
        %v217 = vadd.f32 %v216, %v205
        %v218 = vadd.f32 %v217, %v207
        %v219 = vadd.f32 %v218, %v209
        %v220 = vadd.f32 %v219, %v211
        %v221 = vrot.slane %v220, 4
        %v222 = vadd.f32 %v220, %v221
        %v223 = vrot.slane %v222, 2
        %v224 = vadd.f32 %v222, %v223
        %v225 = vrot.slane %v224, 1
        %v226 = vadd.f32 %v224, %v225
        %v227 = vadd.f32 %v198, %v200
        %v228 = vadd.f32 %v227, %v202
        %v229 = vadd.f32 %v228, %v204
        %v230 = vadd.f32 %v229, %v206
        %v231 = vadd.f32 %v230, %v208
        %v232 = vadd.f32 %v231, %v210
        %v233 = vadd.f32 %v232, %v212
        %v234 = vrot.slane %v233, 4
        %v235 = vadd.f32 %v233, %v234
        %v236 = vrot.slane %v235, 2
        %v237 = vadd.f32 %v235, %v236
        %v238 = vrot.slane %v237, 1
        %v239 = vadd.f32 %v237, %v238
        %v242 = vcombine.low %v226, %v239
        %v244 = vunpack.c.l.s4 1966171168
        %v245 = vunpack.c.0.s8 %v244
        %v246 = vlaneseq
        %v247 = vshrl.u32 %v246, 7
        %v248 = vsub.s32 %v245, %v247
        %v249 = vrot.slane %v242, %v248
        %v251 = vunpack.c.l.s4 1966171168
        %v252 = vunpack.c.0.s8 %v251
        %v253 = vlaneseq
        %v254 = vshrl.u32 %v253, 7
        %v255 = vsub.s32 %v252, %v254
        %v256 = vrot.slane %v249, %v255
        %v258 = vadd.f32 %v213, %v256
        %v259 = vlaneseq
        %vm260 = vcmp.ge.s32.totalorder %v259, 0
        %vm261 = vcmp.lt.s32.totalorder %v259, 256
        %vm262 = vmand %vm260, %vm261
        %263 = vst.msk [vmem:[#allocation2] sm:$0x3] %vm262, %v258
        %v264 = vld [vmem:[#allocation3] sm:$0x3]
        %v265 = vmax.f32 %v197, %v201
        %v266 = vmax.f32 %v199, %v203
        %v267 = vmax.f32 %v265, %v205
        %v268 = vmax.f32 %v266, %v207
        %v269 = vmax.f32 %v267, %v209
        %v270 = vmax.f32 %v268, %v211
        %v271 = vmax.f32 %v269, %v270
        %v272 = vrot.slane %v271, 4
        %v273 = vmax.f32 %v271, %v272
        %v274 = vrot.slane %v273, 2
        %v275 = vmax.f32 %v273, %v274
        %v276 = vrot.slane %v275, 1
        %v277 = vmax.f32 %v275, %v276
        %v278 = vmax.f32 %v198, %v202
        %v279 = vmax.f32 %v200, %v204
        %v280 = vmax.f32 %v278, %v206
        %v281 = vmax.f32 %v279, %v208
        %v282 = vmax.f32 %v280, %v210
        %v283 = vmax.f32 %v281, %v212
        %v284 = vmax.f32 %v282, %v283
        %v285 = vrot.slane %v284, 4
        %v286 = vmax.f32 %v284, %v285
        %v287 = vrot.slane %v286, 2
        %v288 = vmax.f32 %v286, %v287
        %v289 = vrot.slane %v288, 1
        %v290 = vmax.f32 %v288, %v289
        %v293 = vcombine.low %v277, %v290
        %v295 = vunpack.c.l.s4 1966171168
        %v296 = vunpack.c.0.s8 %v295
        %v297 = vlaneseq
        %v298 = vshrl.u32 %v297, 7
        %v299 = vsub.s32 %v296, %v298
        %v300 = vrot.slane %v293, %v299
        %v302 = vunpack.c.l.s4 1966171168
        %v303 = vunpack.c.0.s8 %v302
        %v304 = vlaneseq
        %v305 = vshrl.u32 %v304, 7
        %v306 = vsub.s32 %v303, %v305
        %v307 = vrot.slane %v300, %v306
        %v309 = vmax.f32 %v264, %v307
        %310 = vst.msk [vmem:[#allocation3] sm:$0x3] %vm262, %v309
        // Predicated region
        $region37: #{spatial_attention_forward.1} parent=27 // pred_check
          %p311 = pneg %p187
        $region38: #{spatial_attention_forward.1} parent=27 // pred_check_branch
          %313 = sbr.rel (%p311) target = $region40
        $region39: #{spatial_attention_forward.1} parent=27 // pred_region
          %v314 = vld [vmem:[#allocation2] sm:$0x3]
          %v315 = vmul.f32 %v314, 0.015625
          %v316 = vld [vmem:[#allocation3] sm:$0x3]
          %vm317 = vcmask 179200
          %318 = vst.msk [vmem:[#allocation4] sm:$0xff] %vm317, 0.0
          %319 = vst.msk [vmem:[#allocation4 + $0x8] sm:$0xff] %vm317, 0.0
          %vm320 = vcmask 177152
          %321 = vst.msk [vmem:[#allocation4 + $0x10] sm:$0x3f] %vm320, 0.0
          %322 = vst.msk [vmem:[#allocation4 + $0x18] sm:$0xff] %vm317, 0.0
          %323 = vst.msk [vmem:[#allocation4 + $0x20] sm:$0xff] %vm317, 0.0
          %324 = vst.msk [vmem:[#allocation4 + $0x28] sm:$0x3f] %vm320, 0.0
          %v326 = vlaneseq
          %v327 = vshrl.u32 %v326, 7
          %v328 = vsub.s32 0, %v327
          %v329 = vrot.slane %v315, %v328
          %330 = vrot.lane.b32.xlu0 %v329, 3
          %v331 = vpop.permute.xlu0 %330
          %vm333 = vcmask 147480
          %334 = vst.msk [vmem:[#allocation4 + $0x3] sm:$0x1] %vm333, %v331
          %v336 = vlaneseq
          %v337 = vshrl.u32 %v336, 7
          %v338 = vsub.s32 0, %v337
          %v339 = vrot.slane %v316, %v338
          %340 = vrot.lane.b32.xlu0 %v339, 3
          %v341 = vpop.permute.xlu0 %340
          %s343 = scalar_lea.vmem [#allocation4], 24
          %344 = vst.msk [vmem:[%s343 + $0x3] sm:$0x1] %vm333, %v341
          %345 = vrot.lane.b32.xlu0 %v329, 115
          %v346 = vpop.permute.xlu0 %345
          %348 = vst.msk [vmem:[#allocation4 + $0x4] sm:$0x1] %vm333, %v346
          %349 = vrot.lane.b32.xlu0 %v339, 115
          %v350 = vpop.permute.xlu0 %349
          %352 = vst.msk [vmem:[%s343 + $0x4] sm:$0x1] %vm333, %v350
          %353 = vrot.lane.b32.xlu0 %v329, 99
          %v354 = vpop.permute.xlu0 %353
          %356 = vst.msk [vmem:[#allocation4 + $0x5] sm:$0x1] %vm333, %v354
          %357 = vrot.lane.b32.xlu0 %v339, 99
          %v358 = vpop.permute.xlu0 %357
          %360 = vst.msk [vmem:[%s343 + $0x5] sm:$0x1] %vm333, %v358
          %361 = vrot.lane.b32.xlu0 %v329, 83
          %v362 = vpop.permute.xlu0 %361
          %364 = vst.msk [vmem:[#allocation4 + $0x6] sm:$0x1] %vm333, %v362
          %365 = vrot.lane.b32.xlu0 %v339, 83
          %v366 = vpop.permute.xlu0 %365
          %368 = vst.msk [vmem:[%s343 + $0x6] sm:$0x1] %vm333, %v366
          %369 = vrot.lane.b32.xlu0 %v329, 67
          %v370 = vpop.permute.xlu0 %369
          %372 = vst.msk [vmem:[#allocation4 + $0x7] sm:$0x1] %vm333, %v370
          %373 = vrot.lane.b32.xlu0 %v339, 67
          %v374 = vpop.permute.xlu0 %373
          %376 = vst.msk [vmem:[%s343 + $0x7] sm:$0x1] %vm333, %v374
          %377 = vrot.lane.b32.xlu0 %v329, 51
          %v378 = vpop.permute.xlu0 %377
          %380 = vst.msk [vmem:[#allocation4 + $0x8] sm:$0x1] %vm333, %v378
          %381 = vrot.lane.b32.xlu0 %v339, 51
          %v382 = vpop.permute.xlu0 %381
          %384 = vst.msk [vmem:[%s343 + $0x8] sm:$0x1] %vm333, %v382
          %385 = vrot.lane.b32.xlu0 %v329, 35
          %v386 = vpop.permute.xlu0 %385
          %388 = vst.msk [vmem:[#allocation4 + $0x9] sm:$0x1] %vm333, %v386
          %389 = vrot.lane.b32.xlu0 %v339, 35
          %v390 = vpop.permute.xlu0 %389
          %392 = vst.msk [vmem:[%s343 + $0x9] sm:$0x1] %vm333, %v390
          %393 = vrot.lane.b32.xlu0 %v329, 19
          %v394 = vpop.permute.xlu0 %393
          %396 = vst.msk [vmem:[#allocation4 + $0xa] sm:$0x1] %vm333, %v394
          %397 = vrot.lane.b32.xlu0 %v339, 19
          %v398 = vpop.permute.xlu0 %397
          %400 = vst.msk [vmem:[%s343 + $0xa] sm:$0x1] %vm333, %v398
          %v401 = vrot.slane %v315, 1
          %v402 = vlaneseq
          %v403 = vshrl.u32 %v402, 7
          %v404 = vsub.s32 0, %v403
          %v405 = vrot.slane %v401, %v404
          %406 = vrot.lane.b32.xlu0 %v405, 3
          %v407 = vpop.permute.xlu0 %406
          %409 = vst.msk [vmem:[#allocation4 + $0xb] sm:$0x1] %vm333, %v407
          %v410 = vrot.slane %v316, 1
          %v411 = vlaneseq
          %v412 = vshrl.u32 %v411, 7
          %v413 = vsub.s32 0, %v412
          %v414 = vrot.slane %v410, %v413
          %415 = vrot.lane.b32.xlu0 %v414, 3
          %v416 = vpop.permute.xlu0 %415
          %418 = vst.msk [vmem:[%s343 + $0xb] sm:$0x1] %vm333, %v416
          %419 = vrot.lane.b32.xlu0 %v315, 112
          %v420 = vpop.permute.xlu0 %419
          %v421 = vrot.slane %v420, 1
          %v422 = vlaneseq
          %v423 = vshrl.u32 %v422, 7
          %v424 = vsub.s32 0, %v423
          %v425 = vrot.slane %v421, %v424
          %426 = vrot.lane.b32.xlu0 %v425, 3
          %v427 = vpop.permute.xlu0 %426
          %429 = vst.msk [vmem:[#allocation4 + $0xc] sm:$0x1] %vm333, %v427
          %430 = vrot.lane.b32.xlu0 %v316, 112
          %v431 = vpop.permute.xlu0 %430
          %v432 = vrot.slane %v431, 1
          %v433 = vlaneseq
          %v434 = vshrl.u32 %v433, 7
          %v435 = vsub.s32 0, %v434
          %v436 = vrot.slane %v432, %v435
          %437 = vrot.lane.b32.xlu0 %v436, 3
          %v438 = vpop.permute.xlu0 %437
          %440 = vst.msk [vmem:[%s343 + $0xc] sm:$0x1] %vm333, %v438
          %441 = vrot.lane.b32.xlu0 %v315, 96
          %v442 = vpop.permute.xlu0 %441
          %v443 = vrot.slane %v442, 1
          %v444 = vlaneseq
          %v445 = vshrl.u32 %v444, 7
          %v446 = vsub.s32 0, %v445
          %v447 = vrot.slane %v443, %v446
          %448 = vrot.lane.b32.xlu0 %v447, 3
          %v449 = vpop.permute.xlu0 %448
          %451 = vst.msk [vmem:[#allocation4 + $0xd] sm:$0x1] %vm333, %v449
          %452 = vrot.lane.b32.xlu0 %v316, 96
          %v453 = vpop.permute.xlu0 %452
          %v454 = vrot.slane %v453, 1
          %v455 = vlaneseq
          %v456 = vshrl.u32 %v455, 7
          %v457 = vsub.s32 0, %v456
          %v458 = vrot.slane %v454, %v457
          %459 = vrot.lane.b32.xlu0 %v458, 3
          %v460 = vpop.permute.xlu0 %459
          %462 = vst.msk [vmem:[%s343 + $0xd] sm:$0x1] %vm333, %v460
          %463 = vrot.lane.b32.xlu0 %v315, 80
          %v464 = vpop.permute.xlu0 %463
          %v465 = vrot.slane %v464, 1
          %v466 = vlaneseq
          %v467 = vshrl.u32 %v466, 7
          %v468 = vsub.s32 0, %v467
          %v469 = vrot.slane %v465, %v468
          %470 = vrot.lane.b32.xlu0 %v469, 3
          %v471 = vpop.permute.xlu0 %470
          %473 = vst.msk [vmem:[#allocation4 + $0xe] sm:$0x1] %vm333, %v471
          %474 = vrot.lane.b32.xlu0 %v316, 80
          %v475 = vpop.permute.xlu0 %474
          %v476 = vrot.slane %v475, 1
          %v477 = vlaneseq
          %v478 = vshrl.u32 %v477, 7
          %v479 = vsub.s32 0, %v478
          %v480 = vrot.slane %v476, %v479
          %481 = vrot.lane.b32.xlu0 %v480, 3
          %v482 = vpop.permute.xlu0 %481
          %484 = vst.msk [vmem:[%s343 + $0xe] sm:$0x1] %vm333, %v482
          %485 = vrot.lane.b32.xlu0 %v315, 64
          %v486 = vpop.permute.xlu0 %485
          %v487 = vrot.slane %v486, 1
          %v488 = vlaneseq
          %v489 = vshrl.u32 %v488, 7
          %v490 = vsub.s32 0, %v489
          %v491 = vrot.slane %v487, %v490
          %492 = vrot.lane.b32.xlu0 %v491, 3
          %v493 = vpop.permute.xlu0 %492
          %495 = vst.msk [vmem:[#allocation4 + $0xf] sm:$0x1] %vm333, %v493
          %496 = vrot.lane.b32.xlu0 %v316, 64
          %v497 = vpop.permute.xlu0 %496
          %v498 = vrot.slane %v497, 1
          %v499 = vlaneseq
          %v500 = vshrl.u32 %v499, 7
          %v501 = vsub.s32 0, %v500
          %v502 = vrot.slane %v498, %v501
          %503 = vrot.lane.b32.xlu0 %v502, 3
          %v504 = vpop.permute.xlu0 %503
          %506 = vst.msk [vmem:[%s343 + $0xf] sm:$0x1] %vm333, %v504
          %507 = vrot.lane.b32.xlu0 %v315, 48
          %v508 = vpop.permute.xlu0 %507
          %v509 = vrot.slane %v508, 1
          %v510 = vlaneseq
          %v511 = vshrl.u32 %v510, 7
          %v512 = vsub.s32 0, %v511
          %v513 = vrot.slane %v509, %v512
          %514 = vrot.lane.b32.xlu0 %v513, 3
          %v515 = vpop.permute.xlu0 %514
          %517 = vst.msk [vmem:[#allocation4 + $0x10] sm:$0x1] %vm333, %v515
          %518 = vrot.lane.b32.xlu0 %v316, 48
          %v519 = vpop.permute.xlu0 %518
          %v520 = vrot.slane %v519, 1
          %v521 = vlaneseq
          %v522 = vshrl.u32 %v521, 7
          %v523 = vsub.s32 0, %v522
          %v524 = vrot.slane %v520, %v523
          %525 = vrot.lane.b32.xlu0 %v524, 3
          %v526 = vpop.permute.xlu0 %525
          %528 = vst.msk [vmem:[%s343 + $0x10] sm:$0x1] %vm333, %v526
          %529 = vrot.lane.b32.xlu0 %v315, 32
          %v530 = vpop.permute.xlu0 %529
          %v531 = vrot.slane %v530, 1
          %v532 = vlaneseq
          %v533 = vshrl.u32 %v532, 7
          %v534 = vsub.s32 0, %v533
          %v535 = vrot.slane %v531, %v534
          %536 = vrot.lane.b32.xlu0 %v535, 3
          %v537 = vpop.permute.xlu0 %536
          %539 = vst.msk [vmem:[#allocation4 + $0x11] sm:$0x1] %vm333, %v537
          %540 = vrot.lane.b32.xlu0 %v316, 32
          %v541 = vpop.permute.xlu0 %540
          %v542 = vrot.slane %v541, 1
          %v543 = vlaneseq
          %v544 = vshrl.u32 %v543, 7
          %v545 = vsub.s32 0, %v544
          %v546 = vrot.slane %v542, %v545
          %547 = vrot.lane.b32.xlu0 %v546, 3
          %v548 = vpop.permute.xlu0 %547
          %550 = vst.msk [vmem:[%s343 + $0x11] sm:$0x1] %vm333, %v548
          %551 = vrot.lane.b32.xlu0 %v315, 16
          %v552 = vpop.permute.xlu0 %551
          %v553 = vrot.slane %v552, 1
          %v554 = vlaneseq
          %v555 = vshrl.u32 %v554, 7
          %v556 = vsub.s32 0, %v555
          %v557 = vrot.slane %v553, %v556
          %558 = vrot.lane.b32.xlu0 %v557, 3
          %v559 = vpop.permute.xlu0 %558
          %561 = vst.msk [vmem:[#allocation4 + $0x12] sm:$0x1] %vm333, %v559
          %562 = vrot.lane.b32.xlu0 %v316, 16
          %v563 = vpop.permute.xlu0 %562
          %v564 = vrot.slane %v563, 1
          %v565 = vlaneseq
          %v566 = vshrl.u32 %v565, 7
          %v567 = vsub.s32 0, %v566
          %v568 = vrot.slane %v564, %v567
          %569 = vrot.lane.b32.xlu0 %v568, 3
          %v570 = vpop.permute.xlu0 %569
          %572 = vst.msk [vmem:[%s343 + $0x12] sm:$0x1] %vm333, %v570
          %v573 = vld [vmem:[#allocation4] sm:$0xff]
          %v574 = vld [vmem:[#allocation4 + $0x8] sm:$0xff]
          %v575 = vld [vmem:[#allocation4 + $0x10] sm:$0x3f]
          %vm576 = vcmask 130048
          %577 = vst.msk [vmem:[#allocation5] sm:$0xff] %vm576, %v573
          %578 = vst.msk [vmem:[#allocation5 + $0x8] sm:$0xff] %vm576, %v574
          %vm579 = vcmask 128000
          %580 = vst.msk [vmem:[#allocation5 + $0x10] sm:$0x3f] %vm579, %v575
          %v581 = vld [vmem:[#allocation4] sm:$0xff]
          %v582 = vld [vmem:[#allocation4 + $0x8] sm:$0xff]
          %v583 = vld [vmem:[#allocation4 + $0x10] sm:$0x3f]
          %587 = vrot.lane.b32.xlu0 %v581, 127
          %v588 = vpop.permute.xlu0 %587
          %589 = vrot.lane.b32.xlu0 %v582, 127
          %v590 = vpop.permute.xlu0 %589
          %591 = vrot.lane.b32.xlu0 %v583, 127
          %v592 = vpop.permute.xlu0 %591
          %s596 = scalar_lea.vmem [#allocation5], 24
          %597 = vst.msk [vmem:[%s596] sm:$0xff] %vm576, %v588
          %598 = vst.msk [vmem:[%s596 + $0x8] sm:$0xff] %vm576, %v590
          %599 = vst.msk [vmem:[%s596 + $0x10] sm:$0x3f] %vm579, %v592
          %v600 = vld [vmem:[#allocation4] sm:$0xff]
          %v601 = vld [vmem:[#allocation4 + $0x8] sm:$0xff]
          %v602 = vld [vmem:[#allocation4 + $0x10] sm:$0x3f]
          %606 = vrot.lane.b32.xlu0 %v600, 126
          %v607 = vpop.permute.xlu0 %606
          %608 = vrot.lane.b32.xlu0 %v601, 126
          %v609 = vpop.permute.xlu0 %608
          %610 = vrot.lane.b32.xlu0 %v602, 126
          %v611 = vpop.permute.xlu0 %610
          %s615 = scalar_lea.vmem [#allocation5], 48
          %616 = vst.msk [vmem:[%s615] sm:$0xff] %vm576, %v607
          %617 = vst.msk [vmem:[%s615 + $0x8] sm:$0xff] %vm576, %v609
          %618 = vst.msk [vmem:[%s615 + $0x10] sm:$0x3f] %vm579, %v611
          %v619 = vld [vmem:[#allocation4] sm:$0xff]
          %v620 = vld [vmem:[#allocation4 + $0x8] sm:$0xff]
          %v621 = vld [vmem:[#allocation4 + $0x10] sm:$0x3f]
          %625 = vrot.lane.b32.xlu0 %v619, 125
          %v626 = vpop.permute.xlu0 %625
          %627 = vrot.lane.b32.xlu0 %v620, 125
          %v628 = vpop.permute.xlu0 %627
          %629 = vrot.lane.b32.xlu0 %v621, 125
          %v630 = vpop.permute.xlu0 %629
          %s634 = scalar_lea.vmem [#allocation5], 72
          %635 = vst.msk [vmem:[%s634] sm:$0xff] %vm576, %v626
          %636 = vst.msk [vmem:[%s634 + $0x8] sm:$0xff] %vm576, %v628
          %637 = vst.msk [vmem:[%s634 + $0x10] sm:$0x3f] %vm579, %v630
          %v638 = vld [vmem:[#allocation4] sm:$0xff]
          %v639 = vld [vmem:[#allocation4 + $0x8] sm:$0xff]
          %v640 = vld [vmem:[#allocation4 + $0x10] sm:$0x3f]
          %644 = vrot.lane.b32.xlu0 %v638, 124
          %v645 = vpop.permute.xlu0 %644
          %646 = vrot.lane.b32.xlu0 %v639, 124
          %v647 = vpop.permute.xlu0 %646
          %648 = vrot.lane.b32.xlu0 %v640, 124
          %v649 = vpop.permute.xlu0 %648
          %s653 = scalar_lea.vmem [#allocation5], 96
          %654 = vst.msk [vmem:[%s653] sm:$0xff] %vm576, %v645
          %655 = vst.msk [vmem:[%s653 + $0x8] sm:$0xff] %vm576, %v647
          %656 = vst.msk [vmem:[%s653 + $0x10] sm:$0x3f] %vm579, %v649
          %v657 = vld [vmem:[#allocation4] sm:$0xff]
          %v658 = vld [vmem:[#allocation4 + $0x8] sm:$0xff]
          %v659 = vld [vmem:[#allocation4 + $0x10] sm:$0x3f]
          %663 = vrot.lane.b32.xlu0 %v657, 123
          %v664 = vpop.permute.xlu0 %663
          %665 = vrot.lane.b32.xlu0 %v658, 123
          %v666 = vpop.permute.xlu0 %665
          %667 = vrot.lane.b32.xlu0 %v659, 123
          %v668 = vpop.permute.xlu0 %667
          %s672 = scalar_lea.vmem [#allocation5], 120
          %673 = vst.msk [vmem:[%s672] sm:$0xff] %vm576, %v664
          %674 = vst.msk [vmem:[%s672 + $0x8] sm:$0xff] %vm576, %v666
          %675 = vst.msk [vmem:[%s672 + $0x10] sm:$0x3f] %vm579, %v668
          %v676 = vld [vmem:[#allocation4] sm:$0xff]
          %v677 = vld [vmem:[#allocation4 + $0x8] sm:$0xff]
          %v678 = vld [vmem:[#allocation4 + $0x10] sm:$0x3f]
          %682 = vrot.lane.b32.xlu0 %v676, 122
          %v683 = vpop.permute.xlu0 %682
          %684 = vrot.lane.b32.xlu0 %v677, 122
          %v685 = vpop.permute.xlu0 %684
          %686 = vrot.lane.b32.xlu0 %v678, 122
          %v687 = vpop.permute.xlu0 %686
          %s691 = scalar_lea.vmem [#allocation5], 144
          %692 = vst.msk [vmem:[%s691] sm:$0xff] %vm576, %v683
          %693 = vst.msk [vmem:[%s691 + $0x8] sm:$0xff] %vm576, %v685
          %694 = vst.msk [vmem:[%s691 + $0x10] sm:$0x3f] %vm579, %v687
          %v695 = vld [vmem:[%s343] sm:$0xff]
          %v696 = vld [vmem:[%s343 + $0x8] sm:$0xff]
          %v697 = vld [vmem:[%s343 + $0x10] sm:$0x3f]
          %s698 = scalar_lea.vmem [#allocation5], 168
          %699 = vst.msk [vmem:[%s698] sm:$0xff] %vm576, %v695
          %700 = vst.msk [vmem:[%s698 + $0x8] sm:$0xff] %vm576, %v696
          %701 = vst.msk [vmem:[%s698 + $0x10] sm:$0x3f] %vm579, %v697
          %v702 = vld [vmem:[%s343] sm:$0xff]
          %v703 = vld [vmem:[%s343 + $0x8] sm:$0xff]
          %v704 = vld [vmem:[%s343 + $0x10] sm:$0x3f]
          %708 = vrot.lane.b32.xlu0 %v702, 127
          %v709 = vpop.permute.xlu0 %708
          %710 = vrot.lane.b32.xlu0 %v703, 127
          %v711 = vpop.permute.xlu0 %710
          %712 = vrot.lane.b32.xlu0 %v704, 127
          %v713 = vpop.permute.xlu0 %712
          %s717 = scalar_lea.vmem [#allocation5], 192
          %718 = vst.msk [vmem:[%s717] sm:$0xff] %vm576, %v709
          %719 = vst.msk [vmem:[%s717 + $0x8] sm:$0xff] %vm576, %v711
          %720 = vst.msk [vmem:[%s717 + $0x10] sm:$0x3f] %vm579, %v713
          %v721 = vld [vmem:[%s343] sm:$0xff]
          %v722 = vld [vmem:[%s343 + $0x8] sm:$0xff]
          %v723 = vld [vmem:[%s343 + $0x10] sm:$0x3f]
          %727 = vrot.lane.b32.xlu0 %v721, 126
          %v728 = vpop.permute.xlu0 %727
          %729 = vrot.lane.b32.xlu0 %v722, 126
          %v730 = vpop.permute.xlu0 %729
          %731 = vrot.lane.b32.xlu0 %v723, 126
          %v732 = vpop.permute.xlu0 %731
          %s736 = scalar_lea.vmem [#allocation5], 216
          %737 = vst.msk [vmem:[%s736] sm:$0xff] %vm576, %v728
          %738 = vst.msk [vmem:[%s736 + $0x8] sm:$0xff] %vm576, %v730
          %739 = vst.msk [vmem:[%s736 + $0x10] sm:$0x3f] %vm579, %v732
          %v740 = vld [vmem:[%s343] sm:$0xff]
          %v741 = vld [vmem:[%s343 + $0x8] sm:$0xff]
          %v742 = vld [vmem:[%s343 + $0x10] sm:$0x3f]
          %746 = vrot.lane.b32.xlu0 %v740, 125
          %v747 = vpop.permute.xlu0 %746
          %748 = vrot.lane.b32.xlu0 %v741, 125
          %v749 = vpop.permute.xlu0 %748
          %750 = vrot.lane.b32.xlu0 %v742, 125
          %v751 = vpop.permute.xlu0 %750
          %s755 = scalar_lea.vmem [#allocation5], 240
          %756 = vst.msk [vmem:[%s755] sm:$0xff] %vm576, %v747
          %757 = vst.msk [vmem:[%s755 + $0x8] sm:$0xff] %vm576, %v749
          %758 = vst.msk [vmem:[%s755 + $0x10] sm:$0x3f] %vm579, %v751
          %v759 = vld [vmem:[%s343] sm:$0xff]
          %v760 = vld [vmem:[%s343 + $0x8] sm:$0xff]
          %v761 = vld [vmem:[%s343 + $0x10] sm:$0x3f]
          %765 = vrot.lane.b32.xlu0 %v759, 124
          %v766 = vpop.permute.xlu0 %765
          %767 = vrot.lane.b32.xlu0 %v760, 124
          %v768 = vpop.permute.xlu0 %767
          %769 = vrot.lane.b32.xlu0 %v761, 124
          %v770 = vpop.permute.xlu0 %769
          %s774 = scalar_lea.vmem [#allocation5], 264
          %775 = vst.msk [vmem:[%s774] sm:$0xff] %vm576, %v766
          %776 = vst.msk [vmem:[%s774 + $0x8] sm:$0xff] %vm576, %v768
          %777 = vst.msk [vmem:[%s774 + $0x10] sm:$0x3f] %vm579, %v770
          %v778 = vld [vmem:[%s343] sm:$0xff]
          %v779 = vld [vmem:[%s343 + $0x8] sm:$0xff]
          %v780 = vld [vmem:[%s343 + $0x10] sm:$0x3f]
          %784 = vrot.lane.b32.xlu0 %v778, 123
          %v785 = vpop.permute.xlu0 %784
          %786 = vrot.lane.b32.xlu0 %v779, 123
          %v787 = vpop.permute.xlu0 %786
          %788 = vrot.lane.b32.xlu0 %v780, 123
          %v789 = vpop.permute.xlu0 %788
          %s793 = scalar_lea.vmem [#allocation5], 288
          %794 = vst.msk [vmem:[%s793] sm:$0xff] %vm576, %v785
          %795 = vst.msk [vmem:[%s793 + $0x8] sm:$0xff] %vm576, %v787
          %796 = vst.msk [vmem:[%s793 + $0x10] sm:$0x3f] %vm579, %v789
          %v797 = vld [vmem:[%s343] sm:$0xff]
          %v798 = vld [vmem:[%s343 + $0x8] sm:$0xff]
          %v799 = vld [vmem:[%s343 + $0x10] sm:$0x3f]
          %803 = vrot.lane.b32.xlu0 %v797, 122
          %v804 = vpop.permute.xlu0 %803
          %805 = vrot.lane.b32.xlu0 %v798, 122
          %v806 = vpop.permute.xlu0 %805
          %807 = vrot.lane.b32.xlu0 %v799, 122
          %v808 = vpop.permute.xlu0 %807
          %s812 = scalar_lea.vmem [#allocation5], 312
          %813 = vst.msk [vmem:[%s812] sm:$0xff] %vm576, %v804
          %814 = vst.msk [vmem:[%s812 + $0x8] sm:$0xff] %vm576, %v806
          %815 = vst.msk [vmem:[%s812 + $0x10] sm:$0x3f] %vm579, %v808
          %s816 = sld [smem:[#allocation6]]
          %v817 = vld [vmem:[#allocation5] sm:$0xff]
          %v818 = vld [vmem:[#allocation5 + $0x8] sm:$0xff]
          %v819 = vstv %s816
          %v820 = vmul.f32 %v819, %v817
          %v821 = vmul.f32 %v819, %v818
          %v822 = vadd.f32 %v820, 0.0
          %v823 = vadd.f32 %v821, 0.0
          %s824 = sld [smem:[#allocation6 + $0x1]]
          %v825 = vld [vmem:[%s596] sm:$0xff]
          %v826 = vld [vmem:[%s596 + $0x8] sm:$0xff]
          %v827 = vstv %s824
          %v828 = vmul.f32 %v827, %v825
          %v829 = vmul.f32 %v827, %v826
          %v830 = vadd.f32 %v822, %v828
          %v831 = vadd.f32 %v823, %v829
          %s832 = sld [smem:[#allocation6 + $0x2]]
          %v833 = vld [vmem:[%s615] sm:$0xff]
          %v834 = vld [vmem:[%s615 + $0x8] sm:$0xff]
          %v835 = vstv %s832
          %v836 = vmul.f32 %v835, %v833
          %v837 = vmul.f32 %v835, %v834
          %v838 = vadd.f32 %v830, %v836
          %v839 = vadd.f32 %v831, %v837
          %s840 = sld [smem:[#allocation6 + $0x3]]
          %v841 = vld [vmem:[%s634] sm:$0xff]
          %v842 = vld [vmem:[%s634 + $0x8] sm:$0xff]
          %v843 = vstv %s840
          %v844 = vmul.f32 %v843, %v841
          %v845 = vmul.f32 %v843, %v842
          %v846 = vadd.f32 %v838, %v844
          %v847 = vadd.f32 %v839, %v845
          %s848 = sld [smem:[#allocation6 + $0x4]]
          %v849 = vld [vmem:[%s653] sm:$0xff]
          %v850 = vld [vmem:[%s653 + $0x8] sm:$0xff]
          %v851 = vstv %s848
          %v852 = vmul.f32 %v851, %v849
          %v853 = vmul.f32 %v851, %v850
          %v854 = vadd.f32 %v846, %v852
          %v855 = vadd.f32 %v847, %v853
          %s856 = sld [smem:[#allocation6 + $0x5]]
          %v857 = vld [vmem:[%s672] sm:$0xff]
          %v858 = vld [vmem:[%s672 + $0x8] sm:$0xff]
          %v859 = vstv %s856
          %v860 = vmul.f32 %v859, %v857
          %v861 = vmul.f32 %v859, %v858
          %v862 = vadd.f32 %v854, %v860
          %v863 = vadd.f32 %v855, %v861
          %s864 = sld [smem:[#allocation6 + $0x6]]
          %v865 = vld [vmem:[%s691] sm:$0xff]
          %v866 = vld [vmem:[%s691 + $0x8] sm:$0xff]
          %v867 = vstv %s864
          %v868 = vmul.f32 %v867, %v865
          %v869 = vmul.f32 %v867, %v866
          %v870 = vadd.f32 %v862, %v868
          %v871 = vadd.f32 %v863, %v869
          %s872 = sld [smem:[#allocation6 + $0x7]]
          %v873 = vld [vmem:[#allocation5 + $0x1] sm:$0xff]
          %v874 = vld [vmem:[#allocation5 + $0x9] sm:$0xff]
          %v875 = vstv %s872
          %v876 = vmul.f32 %v875, %v873
          %v877 = vmul.f32 %v875, %v874
          %v878 = vadd.f32 %v870, %v876
          %v879 = vadd.f32 %v871, %v877
          %s880 = sld [smem:[#allocation6 + $0x8]]
          %v881 = vld [vmem:[%s596 + $0x1] sm:$0xff]
          %v882 = vld [vmem:[%s596 + $0x9] sm:$0xff]
          %v883 = vstv %s880
          %v884 = vmul.f32 %v883, %v881
          %v885 = vmul.f32 %v883, %v882
          %v886 = vadd.f32 %v878, %v884
          %v887 = vadd.f32 %v879, %v885
          %s888 = sld [smem:[#allocation6 + $0x9]]
          %v889 = vld [vmem:[%s615 + $0x1] sm:$0xff]
          %v890 = vld [vmem:[%s615 + $0x9] sm:$0xff]
          %v891 = vstv %s888
          %v892 = vmul.f32 %v891, %v889
          %v893 = vmul.f32 %v891, %v890
          %v894 = vadd.f32 %v886, %v892
          %v895 = vadd.f32 %v887, %v893
          %s896 = sld [smem:[#allocation6 + $0xa]]
          %v897 = vld [vmem:[%s634 + $0x1] sm:$0xff]
          %v898 = vld [vmem:[%s634 + $0x9] sm:$0xff]
          %v899 = vstv %s896
          %v900 = vmul.f32 %v899, %v897
          %v901 = vmul.f32 %v899, %v898
          %v902 = vadd.f32 %v894, %v900
          %v903 = vadd.f32 %v895, %v901
          %s904 = sld [smem:[#allocation6 + $0xb]]
          %v905 = vld [vmem:[%s653 + $0x1] sm:$0xff]
          %v906 = vld [vmem:[%s653 + $0x9] sm:$0xff]
          %v907 = vstv %s904
          %v908 = vmul.f32 %v907, %v905
          %v909 = vmul.f32 %v907, %v906
          %v910 = vadd.f32 %v902, %v908
          %v911 = vadd.f32 %v903, %v909
          %s912 = sld [smem:[#allocation6 + $0xc]]
          %v913 = vld [vmem:[%s672 + $0x1] sm:$0xff]
          %v914 = vld [vmem:[%s672 + $0x9] sm:$0xff]
          %v915 = vstv %s912
          %v916 = vmul.f32 %v915, %v913
          %v917 = vmul.f32 %v915, %v914
          %v918 = vadd.f32 %v910, %v916
          %v919 = vadd.f32 %v911, %v917
          %s920 = sld [smem:[#allocation6 + $0xd]]
          %v921 = vld [vmem:[%s691 + $0x1] sm:$0xff]
          %v922 = vld [vmem:[%s691 + $0x9] sm:$0xff]
          %v923 = vstv %s920
          %v924 = vmul.f32 %v923, %v921
          %v925 = vmul.f32 %v923, %v922
          %v926 = vadd.f32 %v918, %v924
          %v927 = vadd.f32 %v919, %v925
          %s928 = sld [smem:[#allocation6 + $0xe]]
          %v929 = vld [vmem:[#allocation5 + $0x2] sm:$0xff]
          %v930 = vld [vmem:[#allocation5 + $0xa] sm:$0xff]
          %v931 = vstv %s928
          %v932 = vmul.f32 %v931, %v929
          %v933 = vmul.f32 %v931, %v930
          %v934 = vadd.f32 %v926, %v932
          %v935 = vadd.f32 %v927, %v933
          %s936 = sld [smem:[#allocation6 + $0xf]]
          %v937 = vld [vmem:[%s596 + $0x2] sm:$0xff]
          %v938 = vld [vmem:[%s596 + $0xa] sm:$0xff]
          %v939 = vstv %s936
          %v940 = vmul.f32 %v939, %v937
          %v941 = vmul.f32 %v939, %v938
          %v942 = vadd.f32 %v934, %v940
          %v943 = vadd.f32 %v935, %v941
          %s944 = sld [smem:[#allocation6 + $0x10]]
          %v945 = vld [vmem:[%s615 + $0x2] sm:$0xff]
          %v946 = vld [vmem:[%s615 + $0xa] sm:$0xff]
          %v947 = vstv %s944
          %v948 = vmul.f32 %v947, %v945
          %v949 = vmul.f32 %v947, %v946
          %v950 = vadd.f32 %v942, %v948
          %v951 = vadd.f32 %v943, %v949
          %s952 = sld [smem:[#allocation6 + $0x11]]
          %v953 = vld [vmem:[%s634 + $0x2] sm:$0xff]
          %v954 = vld [vmem:[%s634 + $0xa] sm:$0xff]
          %v955 = vstv %s952
          %v956 = vmul.f32 %v955, %v953
          %v957 = vmul.f32 %v955, %v954
          %v958 = vadd.f32 %v950, %v956
          %v959 = vadd.f32 %v951, %v957
          %s960 = sld [smem:[#allocation6 + $0x12]]
          %v961 = vld [vmem:[%s653 + $0x2] sm:$0xff]
          %v962 = vld [vmem:[%s653 + $0xa] sm:$0xff]
          %v963 = vstv %s960
          %v964 = vmul.f32 %v963, %v961
          %v965 = vmul.f32 %v963, %v962
          %v966 = vadd.f32 %v958, %v964
          %v967 = vadd.f32 %v959, %v965
          %s968 = sld [smem:[#allocation6 + $0x13]]
          %v969 = vld [vmem:[%s672 + $0x2] sm:$0xff]
          %v970 = vld [vmem:[%s672 + $0xa] sm:$0xff]
          %v971 = vstv %s968
          %v972 = vmul.f32 %v971, %v969
          %v973 = vmul.f32 %v971, %v970
          %v974 = vadd.f32 %v966, %v972
          %v975 = vadd.f32 %v967, %v973
          %s976 = sld [smem:[#allocation6 + $0x14]]
          %v977 = vld [vmem:[%s691 + $0x2] sm:$0xff]
          %v978 = vld [vmem:[%s691 + $0xa] sm:$0xff]
          %v979 = vstv %s976
          %v980 = vmul.f32 %v979, %v977
          %v981 = vmul.f32 %v979, %v978
          %v982 = vadd.f32 %v974, %v980
          %v983 = vadd.f32 %v975, %v981
          %s984 = sld [smem:[#allocation6 + $0x15]]
          %v985 = vld [vmem:[#allocation5 + $0x3] sm:$0xff]
          %v986 = vld [vmem:[#allocation5 + $0xb] sm:$0xff]
          %v987 = vstv %s984
          %v988 = vmul.f32 %v987, %v985
          %v989 = vmul.f32 %v987, %v986
          %v990 = vadd.f32 %v982, %v988
          %v991 = vadd.f32 %v983, %v989
          %s992 = sld [smem:[#allocation6 + $0x16]]
          %v993 = vld [vmem:[%s596 + $0x3] sm:$0xff]
          %v994 = vld [vmem:[%s596 + $0xb] sm:$0xff]
          %v995 = vstv %s992
          %v996 = vmul.f32 %v995, %v993
          %v997 = vmul.f32 %v995, %v994
          %v998 = vadd.f32 %v990, %v996
          %v999 = vadd.f32 %v991, %v997
          %s1000 = sld [smem:[#allocation6 + $0x17]]
          %v1001 = vld [vmem:[%s615 + $0x3] sm:$0xff]
          %v1002 = vld [vmem:[%s615 + $0xb] sm:$0xff]
          %v1003 = vstv %s1000
          %v1004 = vmul.f32 %v1003, %v1001
          %v1005 = vmul.f32 %v1003, %v1002
          %v1006 = vadd.f32 %v998, %v1004
          %v1007 = vadd.f32 %v999, %v1005
          %s1008 = sld [smem:[#allocation6 + $0x18]]
          %v1009 = vld [vmem:[%s634 + $0x3] sm:$0xff]
          %v1010 = vld [vmem:[%s634 + $0xb] sm:$0xff]
          %v1011 = vstv %s1008
          %v1012 = vmul.f32 %v1011, %v1009
          %v1013 = vmul.f32 %v1011, %v1010
          %v1014 = vadd.f32 %v1006, %v1012
          %v1015 = vadd.f32 %v1007, %v1013
          %s1016 = sld [smem:[#allocation6 + $0x19]]
          %v1017 = vld [vmem:[%s653 + $0x3] sm:$0xff]
          %v1018 = vld [vmem:[%s653 + $0xb] sm:$0xff]
          %v1019 = vstv %s1016
          %v1020 = vmul.f32 %v1019, %v1017
          %v1021 = vmul.f32 %v1019, %v1018
          %v1022 = vadd.f32 %v1014, %v1020
          %v1023 = vadd.f32 %v1015, %v1021
          %s1024 = sld [smem:[#allocation6 + $0x1a]]
          %v1025 = vld [vmem:[%s672 + $0x3] sm:$0xff]
          %v1026 = vld [vmem:[%s672 + $0xb] sm:$0xff]
          %v1027 = vstv %s1024
          %v1028 = vmul.f32 %v1027, %v1025
          %v1029 = vmul.f32 %v1027, %v1026
          %v1030 = vadd.f32 %v1022, %v1028
          %v1031 = vadd.f32 %v1023, %v1029
          %s1032 = sld [smem:[#allocation6 + $0x1b]]
          %v1033 = vld [vmem:[%s691 + $0x3] sm:$0xff]
          %v1034 = vld [vmem:[%s691 + $0xb] sm:$0xff]
          %v1035 = vstv %s1032
          %v1036 = vmul.f32 %v1035, %v1033
          %v1037 = vmul.f32 %v1035, %v1034
          %v1038 = vadd.f32 %v1030, %v1036
          %v1039 = vadd.f32 %v1031, %v1037
          %s1040 = sld [smem:[#allocation6 + $0x1c]]
          %v1041 = vld [vmem:[#allocation5 + $0x4] sm:$0xff]
          %v1042 = vld [vmem:[#allocation5 + $0xc] sm:$0xff]
          %v1043 = vstv %s1040
          %v1044 = vmul.f32 %v1043, %v1041
          %v1045 = vmul.f32 %v1043, %v1042
          %v1046 = vadd.f32 %v1038, %v1044
          %v1047 = vadd.f32 %v1039, %v1045
          %s1048 = sld [smem:[#allocation6 + $0x1d]]
          %v1049 = vld [vmem:[%s596 + $0x4] sm:$0xff]
          %v1050 = vld [vmem:[%s596 + $0xc] sm:$0xff]
          %v1051 = vstv %s1048
          %v1052 = vmul.f32 %v1051, %v1049
          %v1053 = vmul.f32 %v1051, %v1050
          %v1054 = vadd.f32 %v1046, %v1052
          %v1055 = vadd.f32 %v1047, %v1053
          %s1056 = sld [smem:[#allocation6 + $0x1e]]
          %v1057 = vld [vmem:[%s615 + $0x4] sm:$0xff]
          %v1058 = vld [vmem:[%s615 + $0xc] sm:$0xff]
          %v1059 = vstv %s1056
          %v1060 = vmul.f32 %v1059, %v1057
          %v1061 = vmul.f32 %v1059, %v1058
          %v1062 = vadd.f32 %v1054, %v1060
          %v1063 = vadd.f32 %v1055, %v1061
          %s1064 = sld [smem:[#allocation6 + $0x1f]]
          %v1065 = vld [vmem:[%s634 + $0x4] sm:$0xff]
          %v1066 = vld [vmem:[%s634 + $0xc] sm:$0xff]
          %v1067 = vstv %s1064
          %v1068 = vmul.f32 %v1067, %v1065
          %v1069 = vmul.f32 %v1067, %v1066
          %v1070 = vadd.f32 %v1062, %v1068
          %v1071 = vadd.f32 %v1063, %v1069
          %s1072 = sld [smem:[#allocation6 + $0x20]]
          %v1073 = vld [vmem:[%s653 + $0x4] sm:$0xff]
          %v1074 = vld [vmem:[%s653 + $0xc] sm:$0xff]
          %v1075 = vstv %s1072
          %v1076 = vmul.f32 %v1075, %v1073
          %v1077 = vmul.f32 %v1075, %v1074
          %v1078 = vadd.f32 %v1070, %v1076
          %v1079 = vadd.f32 %v1071, %v1077
          %s1080 = sld [smem:[#allocation6 + $0x21]]
          %v1081 = vld [vmem:[%s672 + $0x4] sm:$0xff]
          %v1082 = vld [vmem:[%s672 + $0xc] sm:$0xff]
          %v1083 = vstv %s1080
          %v1084 = vmul.f32 %v1083, %v1081
          %v1085 = vmul.f32 %v1083, %v1082
          %v1086 = vadd.f32 %v1078, %v1084
          %v1087 = vadd.f32 %v1079, %v1085
          %s1088 = sld [smem:[#allocation6 + $0x22]]
          %v1089 = vld [vmem:[%s691 + $0x4] sm:$0xff]
          %v1090 = vld [vmem:[%s691 + $0xc] sm:$0xff]
          %v1091 = vstv %s1088
          %v1092 = vmul.f32 %v1091, %v1089
          %v1093 = vmul.f32 %v1091, %v1090
          %v1094 = vadd.f32 %v1086, %v1092
          %v1095 = vadd.f32 %v1087, %v1093
          %s1096 = sld [smem:[#allocation6 + $0x23]]
          %v1097 = vld [vmem:[#allocation5 + $0x5] sm:$0xff]
          %v1098 = vld [vmem:[#allocation5 + $0xd] sm:$0xff]
          %v1099 = vstv %s1096
          %v1100 = vmul.f32 %v1099, %v1097
          %v1101 = vmul.f32 %v1099, %v1098
          %v1102 = vadd.f32 %v1094, %v1100
          %v1103 = vadd.f32 %v1095, %v1101
          %s1104 = sld [smem:[#allocation6 + $0x24]]
          %v1105 = vld [vmem:[%s596 + $0x5] sm:$0xff]
          %v1106 = vld [vmem:[%s596 + $0xd] sm:$0xff]
          %v1107 = vstv %s1104
          %v1108 = vmul.f32 %v1107, %v1105
          %v1109 = vmul.f32 %v1107, %v1106
          %v1110 = vadd.f32 %v1102, %v1108
          %v1111 = vadd.f32 %v1103, %v1109
          %s1112 = sld [smem:[#allocation6 + $0x25]]
          %v1113 = vld [vmem:[%s615 + $0x5] sm:$0xff]
          %v1114 = vld [vmem:[%s615 + $0xd] sm:$0xff]
          %v1115 = vstv %s1112
          %v1116 = vmul.f32 %v1115, %v1113
          %v1117 = vmul.f32 %v1115, %v1114
          %v1118 = vadd.f32 %v1110, %v1116
          %v1119 = vadd.f32 %v1111, %v1117
          %s1120 = sld [smem:[#allocation6 + $0x26]]
          %v1121 = vld [vmem:[%s634 + $0x5] sm:$0xff]
          %v1122 = vld [vmem:[%s634 + $0xd] sm:$0xff]
          %v1123 = vstv %s1120
          %v1124 = vmul.f32 %v1123, %v1121
          %v1125 = vmul.f32 %v1123, %v1122
          %v1126 = vadd.f32 %v1118, %v1124
          %v1127 = vadd.f32 %v1119, %v1125
          %s1128 = sld [smem:[#allocation6 + $0x27]]
          %v1129 = vld [vmem:[%s653 + $0x5] sm:$0xff]
          %v1130 = vld [vmem:[%s653 + $0xd] sm:$0xff]
          %v1131 = vstv %s1128
          %v1132 = vmul.f32 %v1131, %v1129
          %v1133 = vmul.f32 %v1131, %v1130
          %v1134 = vadd.f32 %v1126, %v1132
          %v1135 = vadd.f32 %v1127, %v1133
          %s1136 = sld [smem:[#allocation6 + $0x28]]
          %v1137 = vld [vmem:[%s672 + $0x5] sm:$0xff]
          %v1138 = vld [vmem:[%s672 + $0xd] sm:$0xff]
          %v1139 = vstv %s1136
          %v1140 = vmul.f32 %v1139, %v1137
          %v1141 = vmul.f32 %v1139, %v1138
          %v1142 = vadd.f32 %v1134, %v1140
          %v1143 = vadd.f32 %v1135, %v1141
          %s1144 = sld [smem:[#allocation6 + $0x29]]
          %v1145 = vld [vmem:[%s691 + $0x5] sm:$0xff]
          %v1146 = vld [vmem:[%s691 + $0xd] sm:$0xff]
          %v1147 = vstv %s1144
          %v1148 = vmul.f32 %v1147, %v1145
          %v1149 = vmul.f32 %v1147, %v1146
          %v1150 = vadd.f32 %v1142, %v1148
          %v1151 = vadd.f32 %v1143, %v1149
          %s1152 = sld [smem:[#allocation6 + $0x2a]]
          %v1153 = vld [vmem:[#allocation5 + $0x6] sm:$0xff]
          %v1154 = vld [vmem:[#allocation5 + $0xe] sm:$0xff]
          %v1155 = vstv %s1152
          %v1156 = vmul.f32 %v1155, %v1153
          %v1157 = vmul.f32 %v1155, %v1154
          %v1158 = vadd.f32 %v1150, %v1156
          %v1159 = vadd.f32 %v1151, %v1157
          %s1160 = sld [smem:[#allocation6 + $0x2b]]
          %v1161 = vld [vmem:[%s596 + $0x6] sm:$0xff]
          %v1162 = vld [vmem:[%s596 + $0xe] sm:$0xff]
          %v1163 = vstv %s1160
          %v1164 = vmul.f32 %v1163, %v1161
          %v1165 = vmul.f32 %v1163, %v1162
          %v1166 = vadd.f32 %v1158, %v1164
          %v1167 = vadd.f32 %v1159, %v1165
          %s1168 = sld [smem:[#allocation6 + $0x2c]]
          %v1169 = vld [vmem:[%s615 + $0x6] sm:$0xff]
          %v1170 = vld [vmem:[%s615 + $0xe] sm:$0xff]
          %v1171 = vstv %s1168
          %v1172 = vmul.f32 %v1171, %v1169
          %v1173 = vmul.f32 %v1171, %v1170
          %v1174 = vadd.f32 %v1166, %v1172
          %v1175 = vadd.f32 %v1167, %v1173
          %s1176 = sld [smem:[#allocation6 + $0x2d]]
          %v1177 = vld [vmem:[%s634 + $0x6] sm:$0xff]
          %v1178 = vld [vmem:[%s634 + $0xe] sm:$0xff]
          %v1179 = vstv %s1176
          %v1180 = vmul.f32 %v1179, %v1177
          %v1181 = vmul.f32 %v1179, %v1178
          %v1182 = vadd.f32 %v1174, %v1180
          %v1183 = vadd.f32 %v1175, %v1181
          %s1184 = sld [smem:[#allocation6 + $0x2e]]
          %v1185 = vld [vmem:[%s653 + $0x6] sm:$0xff]
          %v1186 = vld [vmem:[%s653 + $0xe] sm:$0xff]
          %v1187 = vstv %s1184
          %v1188 = vmul.f32 %v1187, %v1185
          %v1189 = vmul.f32 %v1187, %v1186
          %v1190 = vadd.f32 %v1182, %v1188
          %v1191 = vadd.f32 %v1183, %v1189
          %s1192 = sld [smem:[#allocation6 + $0x2f]]
          %v1193 = vld [vmem:[%s672 + $0x6] sm:$0xff]
          %v1194 = vld [vmem:[%s672 + $0xe] sm:$0xff]
          %v1195 = vstv %s1192
          %v1196 = vmul.f32 %v1195, %v1193
          %v1197 = vmul.f32 %v1195, %v1194
          %v1198 = vadd.f32 %v1190, %v1196
          %v1199 = vadd.f32 %v1191, %v1197
          %s1200 = sld [smem:[#allocation6 + $0x30]]
          %v1201 = vld [vmem:[%s691 + $0x6] sm:$0xff]
          %v1202 = vld [vmem:[%s691 + $0xe] sm:$0xff]
          %v1203 = vstv %s1200
          %v1204 = vmul.f32 %v1203, %v1201
          %v1205 = vmul.f32 %v1203, %v1202
          %v1206 = vadd.f32 %v1198, %v1204
          %v1207 = vadd.f32 %v1199, %v1205
          %s1208 = sld [smem:[#allocation6 + $0x31]]
          %v1209 = vld [vmem:[%s698] sm:$0xff]
          %v1210 = vld [vmem:[%s698 + $0x8] sm:$0xff]
          %v1211 = vstv %s1208
          %v1212 = vmul.f32 %v1211, %v1209
          %v1213 = vmul.f32 %v1211, %v1210
          %v1214 = vadd.f32 %v1206, %v1212
          %v1215 = vadd.f32 %v1207, %v1213
          %s1216 = sld [smem:[#allocation6 + $0x32]]
          %v1217 = vld [vmem:[%s717] sm:$0xff]
          %v1218 = vld [vmem:[%s717 + $0x8] sm:$0xff]
          %v1219 = vstv %s1216
          %v1220 = vmul.f32 %v1219, %v1217
          %v1221 = vmul.f32 %v1219, %v1218
          %v1222 = vadd.f32 %v1214, %v1220
          %v1223 = vadd.f32 %v1215, %v1221
          %s1224 = sld [smem:[#allocation6 + $0x33]]
          %v1225 = vld [vmem:[%s736] sm:$0xff]
          %v1226 = vld [vmem:[%s736 + $0x8] sm:$0xff]
          %v1227 = vstv %s1224
          %v1228 = vmul.f32 %v1227, %v1225
          %v1229 = vmul.f32 %v1227, %v1226
          %v1230 = vadd.f32 %v1222, %v1228
          %v1231 = vadd.f32 %v1223, %v1229
          %s1232 = sld [smem:[#allocation6 + $0x34]]
          %v1233 = vld [vmem:[%s755] sm:$0xff]
          %v1234 = vld [vmem:[%s755 + $0x8] sm:$0xff]
          %v1235 = vstv %s1232
          %v1236 = vmul.f32 %v1235, %v1233
          %v1237 = vmul.f32 %v1235, %v1234
          %v1238 = vadd.f32 %v1230, %v1236
          %v1239 = vadd.f32 %v1231, %v1237
          %s1240 = sld [smem:[#allocation6 + $0x35]]
          %v1241 = vld [vmem:[%s774] sm:$0xff]
          %v1242 = vld [vmem:[%s774 + $0x8] sm:$0xff]
          %v1243 = vstv %s1240
          %v1244 = vmul.f32 %v1243, %v1241
          %v1245 = vmul.f32 %v1243, %v1242
          %v1246 = vadd.f32 %v1238, %v1244
          %v1247 = vadd.f32 %v1239, %v1245
          %s1248 = sld [smem:[#allocation6 + $0x36]]
          %v1249 = vld [vmem:[%s793] sm:$0xff]
          %v1250 = vld [vmem:[%s793 + $0x8] sm:$0xff]
          %v1251 = vstv %s1248
          %v1252 = vmul.f32 %v1251, %v1249
          %v1253 = vmul.f32 %v1251, %v1250
          %v1254 = vadd.f32 %v1246, %v1252
          %v1255 = vadd.f32 %v1247, %v1253
          %s1256 = sld [smem:[#allocation6 + $0x37]]
          %v1257 = vld [vmem:[%s812] sm:$0xff]
          %v1258 = vld [vmem:[%s812 + $0x8] sm:$0xff]
          %v1259 = vstv %s1256
          %v1260 = vmul.f32 %v1259, %v1257
          %v1261 = vmul.f32 %v1259, %v1258
          %v1262 = vadd.f32 %v1254, %v1260
          %v1263 = vadd.f32 %v1255, %v1261
          %s1264 = sld [smem:[#allocation6 + $0x38]]
          %v1265 = vld [vmem:[%s698 + $0x1] sm:$0xff]
          %v1266 = vld [vmem:[%s698 + $0x9] sm:$0xff]
          %v1267 = vstv %s1264
          %v1268 = vmul.f32 %v1267, %v1265
          %v1269 = vmul.f32 %v1267, %v1266
          %v1270 = vadd.f32 %v1262, %v1268
          %v1271 = vadd.f32 %v1263, %v1269
          %s1272 = sld [smem:[#allocation6 + $0x39]]
          %v1273 = vld [vmem:[%s717 + $0x1] sm:$0xff]
          %v1274 = vld [vmem:[%s717 + $0x9] sm:$0xff]
          %v1275 = vstv %s1272
          %v1276 = vmul.f32 %v1275, %v1273
          %v1277 = vmul.f32 %v1275, %v1274
          %v1278 = vadd.f32 %v1270, %v1276
          %v1279 = vadd.f32 %v1271, %v1277
          %s1280 = sld [smem:[#allocation6 + $0x3a]]
          %v1281 = vld [vmem:[%s736 + $0x1] sm:$0xff]
          %v1282 = vld [vmem:[%s736 + $0x9] sm:$0xff]
          %v1283 = vstv %s1280
          %v1284 = vmul.f32 %v1283, %v1281
          %v1285 = vmul.f32 %v1283, %v1282
          %v1286 = vadd.f32 %v1278, %v1284
          %v1287 = vadd.f32 %v1279, %v1285
          %s1288 = sld [smem:[#allocation6 + $0x3b]]
          %v1289 = vld [vmem:[%s755 + $0x1] sm:$0xff]
          %v1290 = vld [vmem:[%s755 + $0x9] sm:$0xff]
          %v1291 = vstv %s1288
          %v1292 = vmul.f32 %v1291, %v1289
          %v1293 = vmul.f32 %v1291, %v1290
          %v1294 = vadd.f32 %v1286, %v1292
          %v1295 = vadd.f32 %v1287, %v1293
          %s1296 = sld [smem:[#allocation6 + $0x3c]]
          %v1297 = vld [vmem:[%s774 + $0x1] sm:$0xff]
          %v1298 = vld [vmem:[%s774 + $0x9] sm:$0xff]
          %v1299 = vstv %s1296
          %v1300 = vmul.f32 %v1299, %v1297
          %v1301 = vmul.f32 %v1299, %v1298
          %v1302 = vadd.f32 %v1294, %v1300
          %v1303 = vadd.f32 %v1295, %v1301
          %s1304 = sld [smem:[#allocation6 + $0x3d]]
          %v1305 = vld [vmem:[%s793 + $0x1] sm:$0xff]
          %v1306 = vld [vmem:[%s793 + $0x9] sm:$0xff]
          %v1307 = vstv %s1304
          %v1308 = vmul.f32 %v1307, %v1305
          %v1309 = vmul.f32 %v1307, %v1306
          %v1310 = vadd.f32 %v1302, %v1308
          %v1311 = vadd.f32 %v1303, %v1309
          %s1312 = sld [smem:[#allocation6 + $0x3e]]
          %v1313 = vld [vmem:[%s812 + $0x1] sm:$0xff]
          %v1314 = vld [vmem:[%s812 + $0x9] sm:$0xff]
          %v1315 = vstv %s1312
          %v1316 = vmul.f32 %v1315, %v1313
          %v1317 = vmul.f32 %v1315, %v1314
          %v1318 = vadd.f32 %v1310, %v1316
          %v1319 = vadd.f32 %v1311, %v1317
          %s1320 = sld [smem:[#allocation6 + $0x3f]]
          %v1321 = vld [vmem:[%s698 + $0x2] sm:$0xff]
          %v1322 = vld [vmem:[%s698 + $0xa] sm:$0xff]
          %v1323 = vstv %s1320
          %v1324 = vmul.f32 %v1323, %v1321
          %v1325 = vmul.f32 %v1323, %v1322
          %v1326 = vadd.f32 %v1318, %v1324
          %v1327 = vadd.f32 %v1319, %v1325
          %s1328 = sld [smem:[#allocation6 + $0x40]]
          %v1329 = vld [vmem:[%s717 + $0x2] sm:$0xff]
          %v1330 = vld [vmem:[%s717 + $0xa] sm:$0xff]
          %v1331 = vstv %s1328
          %v1332 = vmul.f32 %v1331, %v1329
          %v1333 = vmul.f32 %v1331, %v1330
          %v1334 = vadd.f32 %v1326, %v1332
          %v1335 = vadd.f32 %v1327, %v1333
          %s1336 = sld [smem:[#allocation6 + $0x41]]
          %v1337 = vld [vmem:[%s736 + $0x2] sm:$0xff]
          %v1338 = vld [vmem:[%s736 + $0xa] sm:$0xff]
          %v1339 = vstv %s1336
          %v1340 = vmul.f32 %v1339, %v1337
          %v1341 = vmul.f32 %v1339, %v1338
          %v1342 = vadd.f32 %v1334, %v1340
          %v1343 = vadd.f32 %v1335, %v1341
          %s1344 = sld [smem:[#allocation6 + $0x42]]
          %v1345 = vld [vmem:[%s755 + $0x2] sm:$0xff]
          %v1346 = vld [vmem:[%s755 + $0xa] sm:$0xff]
          %v1347 = vstv %s1344
          %v1348 = vmul.f32 %v1347, %v1345
          %v1349 = vmul.f32 %v1347, %v1346
          %v1350 = vadd.f32 %v1342, %v1348
          %v1351 = vadd.f32 %v1343, %v1349
          %s1352 = sld [smem:[#allocation6 + $0x43]]
          %v1353 = vld [vmem:[%s774 + $0x2] sm:$0xff]
          %v1354 = vld [vmem:[%s774 + $0xa] sm:$0xff]
          %v1355 = vstv %s1352
          %v1356 = vmul.f32 %v1355, %v1353
          %v1357 = vmul.f32 %v1355, %v1354
          %v1358 = vadd.f32 %v1350, %v1356
          %v1359 = vadd.f32 %v1351, %v1357
          %s1360 = sld [smem:[#allocation6 + $0x44]]
          %v1361 = vld [vmem:[%s793 + $0x2] sm:$0xff]
          %v1362 = vld [vmem:[%s793 + $0xa] sm:$0xff]
          %v1363 = vstv %s1360
          %v1364 = vmul.f32 %v1363, %v1361
          %v1365 = vmul.f32 %v1363, %v1362
          %v1366 = vadd.f32 %v1358, %v1364
          %v1367 = vadd.f32 %v1359, %v1365
          %s1368 = sld [smem:[#allocation6 + $0x45]]
          %v1369 = vld [vmem:[%s812 + $0x2] sm:$0xff]
          %v1370 = vld [vmem:[%s812 + $0xa] sm:$0xff]
          %v1371 = vstv %s1368
          %v1372 = vmul.f32 %v1371, %v1369
          %v1373 = vmul.f32 %v1371, %v1370
          %v1374 = vadd.f32 %v1366, %v1372
          %v1375 = vadd.f32 %v1367, %v1373
          %s1376 = sld [smem:[#allocation6 + $0x46]]
          %v1377 = vld [vmem:[%s698 + $0x3] sm:$0xff]
          %v1378 = vld [vmem:[%s698 + $0xb] sm:$0xff]
          %v1379 = vstv %s1376
          %v1380 = vmul.f32 %v1379, %v1377
          %v1381 = vmul.f32 %v1379, %v1378
          %v1382 = vadd.f32 %v1374, %v1380
          %v1383 = vadd.f32 %v1375, %v1381
          %s1384 = sld [smem:[#allocation6 + $0x47]]
          %v1385 = vld [vmem:[%s717 + $0x3] sm:$0xff]
          %v1386 = vld [vmem:[%s717 + $0xb] sm:$0xff]
          %v1387 = vstv %s1384
          %v1388 = vmul.f32 %v1387, %v1385
          %v1389 = vmul.f32 %v1387, %v1386
          %v1390 = vadd.f32 %v1382, %v1388
          %v1391 = vadd.f32 %v1383, %v1389
          %s1392 = sld [smem:[#allocation6 + $0x48]]
          %v1393 = vld [vmem:[%s736 + $0x3] sm:$0xff]
          %v1394 = vld [vmem:[%s736 + $0xb] sm:$0xff]
          %v1395 = vstv %s1392
          %v1396 = vmul.f32 %v1395, %v1393
          %v1397 = vmul.f32 %v1395, %v1394
          %v1398 = vadd.f32 %v1390, %v1396
          %v1399 = vadd.f32 %v1391, %v1397
          %s1400 = sld [smem:[#allocation6 + $0x49]]
          %v1401 = vld [vmem:[%s755 + $0x3] sm:$0xff]
          %v1402 = vld [vmem:[%s755 + $0xb] sm:$0xff]
          %v1403 = vstv %s1400
          %v1404 = vmul.f32 %v1403, %v1401
          %v1405 = vmul.f32 %v1403, %v1402
          %v1406 = vadd.f32 %v1398, %v1404
          %v1407 = vadd.f32 %v1399, %v1405
          %s1408 = sld [smem:[#allocation6 + $0x4a]]
          %v1409 = vld [vmem:[%s774 + $0x3] sm:$0xff]
          %v1410 = vld [vmem:[%s774 + $0xb] sm:$0xff]
          %v1411 = vstv %s1408
          %v1412 = vmul.f32 %v1411, %v1409
          %v1413 = vmul.f32 %v1411, %v1410
          %v1414 = vadd.f32 %v1406, %v1412
          %v1415 = vadd.f32 %v1407, %v1413
          %s1416 = sld [smem:[#allocation6 + $0x4b]]
          %v1417 = vld [vmem:[%s793 + $0x3] sm:$0xff]
          %v1418 = vld [vmem:[%s793 + $0xb] sm:$0xff]
          %v1419 = vstv %s1416
          %v1420 = vmul.f32 %v1419, %v1417
          %v1421 = vmul.f32 %v1419, %v1418
          %v1422 = vadd.f32 %v1414, %v1420
          %v1423 = vadd.f32 %v1415, %v1421
          %s1424 = sld [smem:[#allocation6 + $0x4c]]
          %v1425 = vld [vmem:[%s812 + $0x3] sm:$0xff]
          %v1426 = vld [vmem:[%s812 + $0xb] sm:$0xff]
          %v1427 = vstv %s1424
          %v1428 = vmul.f32 %v1427, %v1425
          %v1429 = vmul.f32 %v1427, %v1426
          %v1430 = vadd.f32 %v1422, %v1428
          %v1431 = vadd.f32 %v1423, %v1429
          %s1432 = sld [smem:[#allocation6 + $0x4d]]
          %v1433 = vld [vmem:[%s698 + $0x4] sm:$0xff]
          %v1434 = vld [vmem:[%s698 + $0xc] sm:$0xff]
          %v1435 = vstv %s1432
          %v1436 = vmul.f32 %v1435, %v1433
          %v1437 = vmul.f32 %v1435, %v1434
          %v1438 = vadd.f32 %v1430, %v1436
          %v1439 = vadd.f32 %v1431, %v1437
          %s1440 = sld [smem:[#allocation6 + $0x4e]]
          %v1441 = vld [vmem:[%s717 + $0x4] sm:$0xff]
          %v1442 = vld [vmem:[%s717 + $0xc] sm:$0xff]
          %v1443 = vstv %s1440
          %v1444 = vmul.f32 %v1443, %v1441
          %v1445 = vmul.f32 %v1443, %v1442
          %v1446 = vadd.f32 %v1438, %v1444
          %v1447 = vadd.f32 %v1439, %v1445
          %s1448 = sld [smem:[#allocation6 + $0x4f]]
          %v1449 = vld [vmem:[%s736 + $0x4] sm:$0xff]
          %v1450 = vld [vmem:[%s736 + $0xc] sm:$0xff]
          %v1451 = vstv %s1448
          %v1452 = vmul.f32 %v1451, %v1449
          %v1453 = vmul.f32 %v1451, %v1450
          %v1454 = vadd.f32 %v1446, %v1452
          %v1455 = vadd.f32 %v1447, %v1453
          %s1456 = sld [smem:[#allocation6 + $0x50]]
          %v1457 = vld [vmem:[%s755 + $0x4] sm:$0xff]
          %v1458 = vld [vmem:[%s755 + $0xc] sm:$0xff]
          %v1459 = vstv %s1456
          %v1460 = vmul.f32 %v1459, %v1457
          %v1461 = vmul.f32 %v1459, %v1458
          %v1462 = vadd.f32 %v1454, %v1460
          %v1463 = vadd.f32 %v1455, %v1461
          %s1464 = sld [smem:[#allocation6 + $0x51]]
          %v1465 = vld [vmem:[%s774 + $0x4] sm:$0xff]
          %v1466 = vld [vmem:[%s774 + $0xc] sm:$0xff]
          %v1467 = vstv %s1464
          %v1468 = vmul.f32 %v1467, %v1465
          %v1469 = vmul.f32 %v1467, %v1466
          %v1470 = vadd.f32 %v1462, %v1468
          %v1471 = vadd.f32 %v1463, %v1469
          %s1472 = sld [smem:[#allocation6 + $0x52]]
          %v1473 = vld [vmem:[%s793 + $0x4] sm:$0xff]
          %v1474 = vld [vmem:[%s793 + $0xc] sm:$0xff]
          %v1475 = vstv %s1472
          %v1476 = vmul.f32 %v1475, %v1473
          %v1477 = vmul.f32 %v1475, %v1474
          %v1478 = vadd.f32 %v1470, %v1476
          %v1479 = vadd.f32 %v1471, %v1477
          %s1480 = sld [smem:[#allocation6 + $0x53]]
          %v1481 = vld [vmem:[%s812 + $0x4] sm:$0xff]
          %v1482 = vld [vmem:[%s812 + $0xc] sm:$0xff]
          %v1483 = vstv %s1480
          %v1484 = vmul.f32 %v1483, %v1481
          %v1485 = vmul.f32 %v1483, %v1482
          %v1486 = vadd.f32 %v1478, %v1484
          %v1487 = vadd.f32 %v1479, %v1485
          %s1488 = sld [smem:[#allocation6 + $0x54]]
          %v1489 = vld [vmem:[%s698 + $0x5] sm:$0xff]
          %v1490 = vld [vmem:[%s698 + $0xd] sm:$0xff]
          %v1491 = vstv %s1488
          %v1492 = vmul.f32 %v1491, %v1489
          %v1493 = vmul.f32 %v1491, %v1490
          %v1494 = vadd.f32 %v1486, %v1492
          %v1495 = vadd.f32 %v1487, %v1493
          %s1496 = sld [smem:[#allocation6 + $0x55]]
          %v1497 = vld [vmem:[%s717 + $0x5] sm:$0xff]
          %v1498 = vld [vmem:[%s717 + $0xd] sm:$0xff]
          %v1499 = vstv %s1496
          %v1500 = vmul.f32 %v1499, %v1497
          %v1501 = vmul.f32 %v1499, %v1498
          %v1502 = vadd.f32 %v1494, %v1500
          %v1503 = vadd.f32 %v1495, %v1501
          %s1504 = sld [smem:[#allocation6 + $0x56]]
          %v1505 = vld [vmem:[%s736 + $0x5] sm:$0xff]
          %v1506 = vld [vmem:[%s736 + $0xd] sm:$0xff]
          %v1507 = vstv %s1504
          %v1508 = vmul.f32 %v1507, %v1505
          %v1509 = vmul.f32 %v1507, %v1506
          %v1510 = vadd.f32 %v1502, %v1508
          %v1511 = vadd.f32 %v1503, %v1509
          %s1512 = sld [smem:[#allocation6 + $0x57]]
          %v1513 = vld [vmem:[%s755 + $0x5] sm:$0xff]
          %v1514 = vld [vmem:[%s755 + $0xd] sm:$0xff]
          %v1515 = vstv %s1512
          %v1516 = vmul.f32 %v1515, %v1513
          %v1517 = vmul.f32 %v1515, %v1514
          %v1518 = vadd.f32 %v1510, %v1516
          %v1519 = vadd.f32 %v1511, %v1517
          %s1520 = sld [smem:[#allocation6 + $0x58]]
          %v1521 = vld [vmem:[%s774 + $0x5] sm:$0xff]
          %v1522 = vld [vmem:[%s774 + $0xd] sm:$0xff]
          %v1523 = vstv %s1520
          %v1524 = vmul.f32 %v1523, %v1521
          %v1525 = vmul.f32 %v1523, %v1522
          %v1526 = vadd.f32 %v1518, %v1524
          %v1527 = vadd.f32 %v1519, %v1525
          %s1528 = sld [smem:[#allocation6 + $0x59]]
          %v1529 = vld [vmem:[%s793 + $0x5] sm:$0xff]
          %v1530 = vld [vmem:[%s793 + $0xd] sm:$0xff]
          %v1531 = vstv %s1528
          %v1532 = vmul.f32 %v1531, %v1529
          %v1533 = vmul.f32 %v1531, %v1530
          %v1534 = vadd.f32 %v1526, %v1532
          %v1535 = vadd.f32 %v1527, %v1533
          %s1536 = sld [smem:[#allocation6 + $0x5a]]
          %v1537 = vld [vmem:[%s812 + $0x5] sm:$0xff]
          %v1538 = vld [vmem:[%s812 + $0xd] sm:$0xff]
          %v1539 = vstv %s1536
          %v1540 = vmul.f32 %v1539, %v1537
          %v1541 = vmul.f32 %v1539, %v1538
          %v1542 = vadd.f32 %v1534, %v1540
          %v1543 = vadd.f32 %v1535, %v1541
          %s1544 = sld [smem:[#allocation6 + $0x5b]]
          %v1545 = vld [vmem:[%s698 + $0x6] sm:$0xff]
          %v1546 = vld [vmem:[%s698 + $0xe] sm:$0xff]
          %v1547 = vstv %s1544
          %v1548 = vmul.f32 %v1547, %v1545
          %v1549 = vmul.f32 %v1547, %v1546
          %v1550 = vadd.f32 %v1542, %v1548
          %v1551 = vadd.f32 %v1543, %v1549
          %s1552 = sld [smem:[#allocation6 + $0x5c]]
          %v1553 = vld [vmem:[%s717 + $0x6] sm:$0xff]
          %v1554 = vld [vmem:[%s717 + $0xe] sm:$0xff]
          %v1555 = vstv %s1552
          %v1556 = vmul.f32 %v1555, %v1553
          %v1557 = vmul.f32 %v1555, %v1554
          %v1558 = vadd.f32 %v1550, %v1556
          %v1559 = vadd.f32 %v1551, %v1557
          %s1560 = sld [smem:[#allocation6 + $0x5d]]
          %v1561 = vld [vmem:[%s736 + $0x6] sm:$0xff]
          %v1562 = vld [vmem:[%s736 + $0xe] sm:$0xff]
          %v1563 = vstv %s1560
          %v1564 = vmul.f32 %v1563, %v1561
          %v1565 = vmul.f32 %v1563, %v1562
          %v1566 = vadd.f32 %v1558, %v1564
          %v1567 = vadd.f32 %v1559, %v1565
          %s1568 = sld [smem:[#allocation6 + $0x5e]]
          %v1569 = vld [vmem:[%s755 + $0x6] sm:$0xff]
          %v1570 = vld [vmem:[%s755 + $0xe] sm:$0xff]
          %v1571 = vstv %s1568
          %v1572 = vmul.f32 %v1571, %v1569
          %v1573 = vmul.f32 %v1571, %v1570
          %v1574 = vadd.f32 %v1566, %v1572
          %v1575 = vadd.f32 %v1567, %v1573
          %s1576 = sld [smem:[#allocation6 + $0x5f]]
          %v1577 = vld [vmem:[%s774 + $0x6] sm:$0xff]
          %v1578 = vld [vmem:[%s774 + $0xe] sm:$0xff]
          %v1579 = vstv %s1576
          %v1580 = vmul.f32 %v1579, %v1577
          %v1581 = vmul.f32 %v1579, %v1578
          %v1582 = vadd.f32 %v1574, %v1580
          %v1583 = vadd.f32 %v1575, %v1581
          %s1584 = sld [smem:[#allocation6 + $0x60]]
          %v1585 = vld [vmem:[%s793 + $0x6] sm:$0xff]
          %v1586 = vld [vmem:[%s793 + $0xe] sm:$0xff]
          %v1587 = vstv %s1584
          %v1588 = vmul.f32 %v1587, %v1585
          %v1589 = vmul.f32 %v1587, %v1586
          %v1590 = vadd.f32 %v1582, %v1588
          %v1591 = vadd.f32 %v1583, %v1589
          %s1592 = sld [smem:[#allocation6 + $0x61]]
          %v1593 = vld [vmem:[%s812 + $0x6] sm:$0xff]
          %v1594 = vld [vmem:[%s812 + $0xe] sm:$0xff]
          %v1595 = vstv %s1592
          %v1596 = vmul.f32 %v1595, %v1593
          %v1597 = vmul.f32 %v1595, %v1594
          %v1598 = vadd.f32 %v1590, %v1596
          %v1599 = vadd.f32 %v1591, %v1597
          %v1600 = vxor.u32 %v1598, 2147483648
          %v1601 = vxor.u32 %v1599, 2147483648
          %v1602 = vmul.f32 %v1600, 1.442695
          %v1603 = vpow.pop %v1602
          %v1604 = vmul.f32 %v1601, 1.442695
          %v1605 = vpow.pop %v1604
          %v1606 = vadd.f32 %v1603, 1.0
          %v1607 = vadd.f32 %v1605, 1.0
          %v1608 = vrcp.pop %v1606
          %v1609 = vmul.f32 1.0, %v1608
          %v1610 = vrcp.pop %v1607
          %v1611 = vmul.f32 1.0, %v1610
          %1612 = vst.msk [vmem:[%s175] sm:$0xff] %vm576, %v1609
          %1613 = vst.msk [vmem:[%s175 + $0x8] sm:$0xff] %vm576, %v1611
        $region40: #{spatial_attention_forward.1} parent=27 // pred_fallthru
          _
        %s1614 = sand.u32 %s86, 1
        %s1615 = scalar_lea.sflag [#allocation7], %s1614
        %s1616 = sand.u32 %s86, 1
        %s1617 = smul.addr %s1616, 16
        %s1618 = scalar_lea.vmem [#allocation9], %s1617
        // Predicated region
        $region41: #{spatial_attention_forward.1} parent=27 // pred_check
          %p1619 = pneg %p96
        $region42: #{spatial_attention_forward.1} parent=27 // pred_check_branch
          %1621 = sbr.rel (%p1619) target = $region44
        $region43: #{spatial_attention_forward.1} parent=27 // pred_region
          %s1623 = ssub.s32 256, 256
          %1624 = vsyncadd %s1615, %s1623
          %s1625 = smul.addr %s21, 2
          %s1626 = smul.addr %s1625, 128
          %s1627 = scalar_lea.hbm %s2, %s1626
          %s1628 = sshll.u32 %s1618, 4
          %s1629 = int_to_ptr.vmem [resolvable:$true] %s1628
          %1634 = dma.vmem_to_hbm [thread:$0]  %s1629, 256, %s1627, %s1615, 128, 128, 8
        $region44: #{spatial_attention_forward.1} parent=27 // pred_fallthru
          _
      $region28: #{spatial_attention_forward.1} parent=5 // pred_fallthru
        _
      %p1635 = scmp.le.s32.totalorder 2, %s12
      // Predicated region
      $region45: #{spatial_attention_forward.1} parent=5 // pred_check
        %p1636 = pneg %p1635
      $region46: #{spatial_attention_forward.1} parent=5 // pred_check_branch
        %1638 = sbr.rel (%p1636) target = $region48
      $region47: #{spatial_attention_forward.1} parent=5 // pred_region
        %s1639 = ssub.s32 %s12, 2
        // Predicated region
        $region49: #{spatial_attention_forward.1} parent=47 // pred_check
          %p1640 = pneg %p102
        $region50: #{spatial_attention_forward.1} parent=47 // pred_check_branch
          %1642 = sbr.rel (%p1640) target = $region52
        $region51: #{spatial_attention_forward.1} parent=47 // pred_region
          %s1643 = sand.u32 %s87, 1
          %s1644 = scalar_lea.sflag [#allocation7], %s1643
          %s1645 = sand.u32 %s87, 1
          %s1646 = smul.addr %s1645, 16
          %s1647 = scalar_lea.vmem [#allocation9], %s1646
          %1648 = dma.done %s1644, 256
        $region52: #{spatial_attention_forward.1} parent=47 // pred_fallthru
          _
      $region48: #{spatial_attention_forward.1} parent=5 // pred_fallthru
        _
    $region6: #{spatial_attention_forward.1} parent=1 // loop_footer
      %s16 = sadd.s32 1, %s12
    $region7: #{spatial_attention_forward.1} parent=1 // loop_footer_branch
      %11 = sbr.rel target = $region3
    $region8: #{spatial_attention_forward.1} parent=1 // loop_exit
      _
    %1649 = vsyncpa [#allocation7], 1
    %s1650 = scalar_lea.sflag [#allocation7], 1
    %1651 = vsyncpa %s1650, 1
    %1652 = vsyncpa [#allocation8], 1
    %s1653 = scalar_lea.sflag [#allocation8], 1
    %1654 = vsyncpa %s1653, 1

</llo_original>
